<compile_context>
chip_gen: v7x
topology: tpu7x:2x2x1
jax: 0.10.0
libtpu: 0.0.40
codegen_flags: <defaults>
</compile_context>

<pallas_src>
import math

import jax
import jax.numpy as jnp
from jax.experimental import pallas as pl
from jax.experimental.pallas import tpu as pltpu

# ----------------------------- model configuration ---------------------------
B = 2                 # batch
S = 8                 # sequence length
H = 128               # hidden size (stand-in for 768) -- multiple of 128 lanes
NH = 4                # attention heads
DH = H // NH          # head dim
I = 4 * H             # intermediate size = 512
L = 4                 # label_nums
LP = 128              # classifier output padded to a full lane group
NUM_BACK_LAYERS = 2   # stand-in for layers split_num..11
LN_EPS = 1e-12


# ----------------------------- in-kernel helpers ------------------------------
def _gelu(x):
    # TODO(synk): HF BERT's default act is exact erf-GELU; erf has no guaranteed
    # Mosaic lowering, so the tanh approximation ("gelu_new") is used here.
    c = jnp.float32(math.sqrt(2.0 / math.pi))
    return 0.5 * x * (1.0 + jnp.tanh(c * (x + 0.044715 * x * x * x)))


def _layernorm(x, g, b):
    mu = jnp.mean(x, axis=-1, keepdims=True)
    var = jnp.mean((x - mu) ** 2, axis=-1, keepdims=True)
    return (x - mu) * jax.lax.rsqrt(var + LN_EPS) * g + b


def _mm(a, b):
    """2-D matmul on the MXU: bf16 operands, f32 accumulation."""
    return jnp.dot(a.astype(jnp.bfloat16), b.astype(jnp.bfloat16),
                   preferred_element_type=jnp.float32)


# -------- fused kernel: FFN back-half + all encoder layers + pooler/classifier --------
def bert_back_kernel(h_in_ref, mask_ref,
                     dw_ref, dsmall_ref,
                     wqkv_ref, wo_ref, wi_ref, wo2_ref, slab_ref,
                     wp_ref, hsmall_ref, wc_ref,
                     o_ref, h_sc):
    l = pl.program_id(0)

    # ---- split layer back half: gelu -> output.dense -> LayerNorm (once) ----
    @pl.when(l == 0)
    def _init():
        x0 = _gelu(h_in_ref[...].reshape(B * S, I))                    # (B*S, I) f32
        # NOTE: dropout(p=0.1) after output.dense is identity in eval mode.
        h_sc[...] = _layernorm(_mm(x0, dw_ref[...]) + dsmall_ref[0:1, :],
                               dsmall_ref[1:2, :], dsmall_ref[2:3, :])

    # ---- one BERT encoder layer (layer index = grid axis 0) ----
    x = h_sc[...]                                                       # (B*S, H) f32

    # fused lane-dense QKV projection: (B*S, H) @ (H, 3H)
    qkv = _mm(x, wqkv_ref[...]) + slab_ref[1:2, 0:3 * H]                # (B*S, 3H)

    mask = mask_ref[...]                                                # (B, 1, S)
    scale = jnp.float32(1.0 / math.sqrt(DH))
    ctx_heads = []
    for h in range(NH):                                                 # static unroll
        qh = qkv[:, h * DH:(h + 1) * DH].reshape(B, S, DH)
        kh = qkv[:, H + h * DH:H + (h + 1) * DH].reshape(B, S, DH)
        vh = qkv[:, 2 * H + h * DH:2 * H + (h + 1) * DH].reshape(B, S, DH)
        s = jnp.einsum('bqd,bkd->bqk',
                       qh.astype(jnp.bfloat16), kh.astype(jnp.bfloat16),
                       preferred_element_type=jnp.float32)              # (B, S, S)
        s = s * scale + mask                                            # + (B,1,S)
        s = s - jnp.max(s, axis=-1, keepdims=True)
        p = jnp.exp(s)
        p = p * pl.reciprocal(jnp.sum(p, axis=-1, keepdims=True), approx=True)
        # NOTE: attention-prob dropout is identity in eval mode.
        ctx_heads.append(jnp.einsum('bqk,bkd->bqd',
                                    p.astype(jnp.bfloat16), vh.astype(jnp.bfloat16),
                                    preferred_element_type=jnp.float32))  # (B, S, DH)
    ctx = jnp.concatenate(ctx_heads, axis=-1).reshape(B * S, H)         # head-major feats

    attn = _mm(ctx, wo_ref[...]) + slab_ref[2:3, 0:H]                   # single K=H matmul
    h1 = _layernorm(attn + x, slab_ref[2:3, H:2 * H], slab_ref[2:3, 2 * H:3 * H])

    inter = _gelu(_mm(h1, wi_ref[...]) + slab_ref[0:1, :])              # (B*S, I)
    out = _mm(inter, wo2_ref[...]) + slab_ref[2:3, 3 * H:4 * H]
    h_sc[...] = _layernorm(out + h1, slab_ref[3:4, 0:H], slab_ref[3:4, H:2 * H])

    # ---- fused pooler + classification head on the final hidden state ----
    @pl.when(l == pl.num_programs(0) - 1)
    def _head():
        # BertPooler: take token 0 of every batch element (rows 0, S, 2S, ...)
        cls = jnp.concatenate([h_sc[b * S:b * S + 1, :] for b in range(B)], axis=0)
        pooled = jnp.tanh(_mm(cls, wp_ref[...]) + hsmall_ref[0:1, 0:H])  # (B, H)
        # NOTE: dropout(p=0.1) on the pooled embedding is identity in eval mode.
        o_ref[...] = _mm(pooled, wc_ref[...]) + hsmall_ref[1:2, :]       # (B, LP)


def bert_back_main(h_in, ext_mask, packed, cost):
    C2 = lambda l: (0, 0)              # layer-invariant 2-D params / activations
    C3 = lambda l: (0, 0, 0)
    L3 = lambda l: (l, 0, 0)           # per-layer stacked tensors (layer dim squeezed)

    in_specs = [
        pl.BlockSpec((B, S, I), C3),            # hidden_states (intermediate acts)
        pl.BlockSpec((B, 1, S), C3),            # extended attention mask
        pl.BlockSpec((I, H), C2),               # split output.dense W (bf16)
        pl.BlockSpec((8, H), C2),               # split small params: rows b / gamma / beta
        pl.BlockSpec((None, H, 3 * H), L3),     # fused Wqkv (bf16)
        pl.BlockSpec((None, H, H), L3),         # Wo (bf16, flat)
        pl.BlockSpec((None, H, I), L3),         # Wi (bf16)
        pl.BlockSpec((None, I, H), L3),         # Wo2 (bf16)
        pl.BlockSpec((None, 8, I), L3),         # per-layer small-param slab (f32)
        pl.BlockSpec((H, H), C2),               # pooler W (bf16)
        pl.BlockSpec((8, LP), C2),              # pooler bias / classifier bias slab
        pl.BlockSpec((H, LP), C2),              # classifier W (bf16, lane-padded)
    ]
    return pl.pallas_call(
        bert_back_kernel,
        out_shape=jax.ShapeDtypeStruct((B, LP), jnp.float32),
        grid_spec=pltpu.PrefetchScalarGridSpec(
            num_scalar_prefetch=0,
            grid=(NUM_BACK_LAYERS,),
            in_specs=in_specs,
            out_specs=pl.BlockSpec((B, LP), lambda l: (0, 0)),
            scratch_shapes=[pltpu.VMEM((B * S, H), jnp.float32)],
        ),
        compiler_params=pltpu.CompilerParams(
            dimension_semantics=("arbitrary",)),
        cost_estimate=cost,
    )(h_in, ext_mask, *packed)


# ----------------------------- parameter handling ------------------------------
def init_params(key):
    def linear(k, n_in, n_out):
        return (0.02 * jax.random.normal(k, (n_in, n_out), jnp.float32),
                jnp.zeros((1, n_out), jnp.float32))

    keys = jax.random.split(key, 4 + 8 * NUM_BACK_LAYERS)
    ki = iter(keys)
    p = {}
    p["out_dense_w"], p["out_dense_b"] = linear(next(ki), I, H)
    p["out_ln_g"] = jnp.ones((1, H), jnp.float32)
    p["out_ln_b"] = jnp.zeros((1, H), jnp.float32)
    layers = []
    for _ in range(NUM_BACK_LAYERS):
        lp = {}
        lp["wq"], lp["bq"] = linear(next(ki), H, H)
        lp["wk"], lp["bk"] = linear(next(ki), H, H)
        lp["wv"], lp["bv"] = linear(next(ki), H, H)
        lp["wo"], lp["bo"] = linear(next(ki), H, H)
        lp["ln1_g"] = jnp.ones((1, H), jnp.float32)
        lp["ln1_b"] = jnp.zeros((1, H), jnp.float32)
        lp["wi"], lp["bi"] = linear(next(ki), H, I)
        lp["wo2"], lp["bo2"] = linear(next(ki), I, H)
        lp["ln2_g"] = jnp.ones((1, H), jnp.float32)
        lp["ln2_b"] = jnp.zeros((1, H), jnp.float32)
        layers.append(lp)
    p["layers"] = layers
    p["pooler_w"], p["pooler_b"] = linear(next(ki), H, H)
    p["fc_w"], p["fc_b"] = linear(next(ki), H, L)
    return p


def pack_params(p):
    """Pack weights into kernel-friendly layouts (done once, outside the kernel).

    - matmul weights -> bf16 (MXU path)
    - Wq/Wk/Wv fused along the output dim into a single (L, H, 3H) tensor
    - the many tiny per-layer params packed into one (L, 8, I) f32 slab
    - per-layer tensors stacked on a leading layer axis for the layer grid dim
    - classifier weight lane-padded to LP=128 columns
    """
    bf = jnp.bfloat16

    dw = p["out_dense_w"].astype(bf)                                    # (I, H)
    dsmall = (jnp.zeros((8, H), jnp.float32)
              .at[0].set(p["out_dense_b"][0])
              .at[1].set(p["out_ln_g"][0])
              .at[2].set(p["out_ln_b"][0]))

    wqkv = jnp.stack([jnp.concatenate([lp["wq"], lp["wk"], lp["wv"]], axis=1).astype(bf)
                      for lp in p["layers"]])                            # (L, H, 3H)
    wo = jnp.stack([lp["wo"].astype(bf) for lp in p["layers"]])          # (L, H, H)
    wi = jnp.stack([lp["wi"].astype(bf) for lp in p["layers"]])          # (L, H, I)
    wo2 = jnp.stack([lp["wo2"].astype(bf) for lp in p["layers"]])        # (L, I, H)

    def layer_slab(lp):
        slab = jnp.zeros((8, I), jnp.float32)
        slab = slab.at[0, :].set(lp["bi"][0])
        slab = slab.at[1, 0:3 * H].set(
            jnp.concatenate([lp["bq"][0], lp["bk"][0], lp["bv"][0]]))
        slab = slab.at[2, 0:H].set(lp["bo"][0])
        slab = slab.at[2, H:2 * H].set(lp["ln1_g"][0])
        slab = slab.at[2, 2 * H:3 * H].set(lp["ln1_b"][0])
        slab = slab.at[2, 3 * H:4 * H].set(lp["bo2"][0])
        slab = slab.at[3, 0:H].set(lp["ln2_g"][0])
        slab = slab.at[3, H:2 * H].set(lp["ln2_b"][0])
        return slab
    slab = jnp.stack([layer_slab(lp) for lp in p["layers"]])             # (L, 8, I)

    wp = p["pooler_w"].astype(bf)                                        # (H, H)
    wc = jnp.zeros((H, LP), bf).at[:, :L].set(p["fc_w"].astype(bf))
    hsmall = (jnp.zeros((8, LP), jnp.float32)
              .at[0, :H].set(p["pooler_b"][0])
              .at[1, :L].set(p["fc_b"][0]))

    return (dw, dsmall, wqkv, wo, wi, wo2, slab, wp, hsmall, wc)


# ----------------------------- full forward -----------------------------------
def bert_back_ffn_forward(hidden_states, attention_mask, packed):
    # extended_attention_mask = (1 - mask)[:, None, None, :] * -10000
    # kept as [B, 1, S]; head/query broadcast happens inside the kernel.
    ext_mask = ((1.0 - attention_mask) * -10000.0)[:, None, :].astype(jnp.float32)

    mm_flops = int(
        2 * B * S * I * H
        + NUM_BACK_LAYERS * (2 * B * S * H * (3 * H)     # fused QKV
                             + 2 * B * S * S * H         # QK^T (all heads)
                             + 2 * B * S * S * H         # P @ V
                             + 2 * B * S * H * H         # O projection
                             + 2 * B * S * H * I         # FFN up
                             + 2 * B * S * I * H)        # FFN down
        + 2 * B * H * H + 2 * B * H * LP)                # pooler + classifier
    transcendentals = int(B * S * I
                          + NUM_BACK_LAYERS * (B * NH * S * S + B * S * I)
                          + B * H)
    bytes_accessed = int(hidden_states.size * 4 + ext_mask.size * 4 + B * LP * 4
                         + sum(int(a.size) * a.dtype.itemsize for a in packed))
    cost = pl.CostEstimate(flops=mm_flops, transcendentals=transcendentals,
                           bytes_accessed=bytes_accessed)

    logits = bert_back_main(hidden_states, ext_mask, packed, cost)   # (B, LP)
    return logits[:, :L]                      # drop the lane padding of the logits


# ----------------------------- main --------------------------------------------
if __name__ == "__main__":
    key = jax.random.PRNGKey(0)
    k_param, k_hid = jax.random.split(key)

    params = init_params(k_param)
    packed = pack_params(params)

    # hidden_states arriving from the front half: intermediate activations [B, S, I]
    hidden_states = 0.5 * jax.random.normal(k_hid, (B, S, I), jnp.float32)
    # attention mask [B, S]: second example has padding on the last 2 positions
    attention_mask = jnp.ones((B, S), jnp.float32).at[1, S - 2:].set(0.0)

    prediction = bert_back_ffn_forward(hidden_states, attention_mask, packed)
    jax.block_until_ready(prediction)
    assert prediction.shape == (B, L)
    assert bool(jnp.all(jnp.isfinite(prediction)))
    print("KERNEL_OK")
</pallas_src>

<mosaic_0001>
module attributes {stable_mosaic.version = 11 : i64} {
  func.func @bert_back_kernel(%arg0: i32, %arg1: memref<2x8x512xf32, #tpu.memory_space<vmem>>, %arg2: memref<2x1x8xf32, #tpu.memory_space<vmem>>, %arg3: memref<512x128xbf16, #tpu.memory_space<vmem>>, %arg4: memref<8x128xf32, #tpu.memory_space<vmem>>, %arg5: memref<1x128x384xbf16, #tpu.memory_space<vmem>>, %arg6: memref<1x128x128xbf16, #tpu.memory_space<vmem>>, %arg7: memref<1x128x512xbf16, #tpu.memory_space<vmem>>, %arg8: memref<1x512x128xbf16, #tpu.memory_space<vmem>>, %arg9: memref<1x8x512xf32, #tpu.memory_space<vmem>>, %arg10: memref<128x128xbf16, #tpu.memory_space<vmem>>, %arg11: memref<8x128xf32, #tpu.memory_space<vmem>>, %arg12: memref<128x128xbf16, #tpu.memory_space<vmem>>, %arg13: memref<2x128xf32, #tpu.memory_space<vmem>>, %arg14: memref<16x128xf32, #tpu.memory_space<vmem>>) attributes {dimension_semantics = [#tpu.dimension_semantics<arbitrary>], iteration_bounds = array<i64: 2>, scalar_prefetch = 0 : i64, scratch_operands = 1 : i64, tpu.core_type = #tpu.core_type<tc>, window_params = [{pipeline_mode = #tpu.pipeline_mode<synchronous>, transform_indices = @transform_0, window_bounds = array<i64: 2, 8, 512>}, {pipeline_mode = #tpu.pipeline_mode<synchronous>, transform_indices = @transform_1, window_bounds = array<i64: 2, 1, 8>}, {pipeline_mode = #tpu.pipeline_mode<synchronous>, transform_indices = @transform_2, window_bounds = array<i64: 512, 128>}, {pipeline_mode = #tpu.pipeline_mode<synchronous>, transform_indices = @transform_3, window_bounds = array<i64: 8, 128>}, {transform_indices = @transform_4, window_bounds = array<i64: 1, 128, 384>}, {transform_indices = @transform_5, window_bounds = array<i64: 1, 128, 128>}, {transform_indices = @transform_6, window_bounds = array<i64: 1, 128, 512>}, {transform_indices = @transform_7, window_bounds = array<i64: 1, 512, 128>}, {transform_indices = @transform_8, window_bounds = array<i64: 1, 8, 512>}, {pipeline_mode = #tpu.pipeline_mode<synchronous>, transform_indices = @transform_9, window_bounds = array<i64: 128, 128>}, {pipeline_mode = #tpu.pipeline_mode<synchronous>, transform_indices = @transform_10, window_bounds = array<i64: 8, 128>}, {pipeline_mode = #tpu.pipeline_mode<synchronous>, transform_indices = @transform_11, window_bounds = array<i64: 128, 128>}, {pipeline_mode = #tpu.pipeline_mode<synchronous>, transform_indices = @transform_12, window_bounds = array<i64: 2, 128>}]} {
    %c0_i32 = arith.constant 0 : i32
    %0 = arith.cmpi eq, %arg0, %c0_i32 : i32
    %1 = arith.extui %0 : i1 to i32
    %c0_i32_0 = arith.constant 0 : i32
    %2 = arith.cmpi ne, %1, %c0_i32_0 : i32
    scf.if %2 {
      %c0_75 = arith.constant 0 : index
      %c0_76 = arith.constant 0 : index
      %c0_77 = arith.constant 0 : index
      %214 = vector.load %arg1[%c0_75, %c0_76, %c0_77] : memref<2x8x512xf32, #tpu.memory_space<vmem>>, vector<2x8x512xf32>
      %215 = vector.shape_cast %214 : vector<2x8x512xf32> to vector<16x512xf32>
      %cst_78 = arith.constant 5.000000e-01 : f32
      %216 = vector.broadcast %cst_78 : f32 to vector<16x512xf32>
      %217 = arith.mulf %216, %215 : vector<16x512xf32>
      %cst_79 = arith.constant 4.471500e-02 : f32
      %218 = vector.broadcast %cst_79 : f32 to vector<16x512xf32>
      %219 = arith.mulf %218, %215 : vector<16x512xf32>
      %220 = arith.mulf %219, %215 : vector<16x512xf32>
      %221 = arith.mulf %220, %215 : vector<16x512xf32>
      %222 = arith.addf %215, %221 : vector<16x512xf32>
      %cst_80 = arith.constant 0.797884583 : f32
      %223 = vector.broadcast %cst_80 : f32 to vector<16x512xf32>
      %224 = arith.mulf %223, %222 : vector<16x512xf32>
      %225 = math.tanh %224 : vector<16x512xf32>
      %cst_81 = arith.constant 1.000000e+00 : f32
      %226 = vector.broadcast %cst_81 : f32 to vector<16x512xf32>
      %227 = arith.addf %226, %225 : vector<16x512xf32>
      %228 = arith.mulf %217, %227 : vector<16x512xf32>
      %c0_82 = arith.constant 0 : index
      %c0_83 = arith.constant 0 : index
      %229 = vector.load %arg3[%c0_82, %c0_83] : memref<512x128xbf16, #tpu.memory_space<vmem>>, vector<512x128xbf16>
      %230 = arith.truncf %228 : vector<16x512xf32> to vector<16x512xbf16>
      %cst_84 = arith.constant dense<0.000000e+00> : vector<16x128xf32>
      %231 = tpu.matmul %230, %229, %cst_84 {dimension_numbers = #tpu.dot_dimension_numbers<[1], [0], [0], [1], [0, 0, 1, 1], [], []>} : vector<16x512xbf16>, vector<512x128xbf16>, vector<16x128xf32> -> vector<16x128xf32>
      %c0_85 = arith.constant 0 : index
      %c0_86 = arith.constant 0 : index
      %232 = vector.load %arg4[%c0_85, %c0_86] : memref<8x128xf32, #tpu.memory_space<vmem>>, vector<1x128xf32>
      %233 = vector.broadcast %232 : vector<1x128xf32> to vector<16x128xf32>
      %234 = arith.addf %231, %233 : vector<16x128xf32>
      %c1_87 = arith.constant 1 : index
      %c0_88 = arith.constant 0 : index
      %235 = vector.load %arg4[%c1_87, %c0_88] : memref<8x128xf32, #tpu.memory_space<vmem>>, vector<1x128xf32>
      %c2_89 = arith.constant 2 : index
      %c0_90 = arith.constant 0 : index
      %236 = vector.load %arg4[%c2_89, %c0_90] : memref<8x128xf32, #tpu.memory_space<vmem>>, vector<1x128xf32>
      %cst_91 = arith.constant dense<0.000000e+00> : vector<16xf32>
      %237 = vector.multi_reduction <add>, %234, %cst_91 [1] : vector<16x128xf32> to vector<16xf32>
      %238 = vector.shape_cast %237 : vector<16xf32> to vector<16x1xf32>
      %cst_92 = arith.constant 1.280000e+02 : f32
      %239 = vector.broadcast %cst_92 : f32 to vector<16x1xf32>
      %240 = arith.divf %238, %239 : vector<16x1xf32>
      %241 = vector.broadcast %240 : vector<16x1xf32> to vector<16x128xf32>
      %242 = arith.subf %234, %241 : vector<16x128xf32>
      %243 = arith.mulf %242, %242 : vector<16x128xf32>
      %cst_93 = arith.constant dense<0.000000e+00> : vector<16xf32>
      %244 = vector.multi_reduction <add>, %243, %cst_93 [1] : vector<16x128xf32> to vector<16xf32>
      %245 = vector.shape_cast %244 : vector<16xf32> to vector<16x1xf32>
      %cst_94 = arith.constant 1.280000e+02 : f32
      %246 = vector.broadcast %cst_94 : f32 to vector<16x1xf32>
      %247 = arith.divf %245, %246 : vector<16x1xf32>
      %248 = vector.broadcast %240 : vector<16x1xf32> to vector<16x128xf32>
      %249 = arith.subf %234, %248 : vector<16x128xf32>
      %cst_95 = arith.constant 9.99999996E-13 : f32
      %250 = vector.broadcast %cst_95 : f32 to vector<16x1xf32>
      %251 = arith.addf %247, %250 : vector<16x1xf32>
      %252 = math.rsqrt %251 : vector<16x1xf32>
      %253 = vector.broadcast %252 : vector<16x1xf32> to vector<16x128xf32>
      %254 = arith.mulf %249, %253 : vector<16x128xf32>
      %255 = vector.broadcast %235 : vector<1x128xf32> to vector<16x128xf32>
      %256 = arith.mulf %254, %255 : vector<16x128xf32>
      %257 = vector.broadcast %236 : vector<1x128xf32> to vector<16x128xf32>
      %258 = arith.addf %256, %257 : vector<16x128xf32>
      %c0_96 = arith.constant 0 : index
      %c0_97 = arith.constant 0 : index
      %259 = vector.load %arg14[%c0_96, %c0_97] : memref<16x128xf32, #tpu.memory_space<vmem>>, vector<16x128xf32>
      tpu.vector_store %arg14[%c0_96, %c0_97], %258 {strides = array<i32>} : memref<16x128xf32, #tpu.memory_space<vmem>>, vector<16x128xf32>,
    } else {
    }
    %c0 = arith.constant 0 : index
    %c0_1 = arith.constant 0 : index
    %3 = vector.load %arg14[%c0, %c0_1] : memref<16x128xf32, #tpu.memory_space<vmem>>, vector<16x128xf32>
    %c0_2 = arith.constant 0 : index
    %c0_3 = arith.constant 0 : index
    %c0_4 = arith.constant 0 : index
    %4 = vector.load %arg5[%c0_2, %c0_3, %c0_4] : memref<1x128x384xbf16, #tpu.memory_space<vmem>>, vector<1x128x384xbf16>
    %5 = vector.shape_cast %4 : vector<1x128x384xbf16> to vector<128x384xbf16>
    %6 = arith.truncf %3 : vector<16x128xf32> to vector<16x128xbf16>
    %cst = arith.constant dense<0.000000e+00> : vector<16x384xf32>
    %7 = tpu.matmul %6, %5, %cst {dimension_numbers = #tpu.dot_dimension_numbers<[1], [0], [0], [1], [0, 0, 1, 1], [], []>} : vector<16x128xbf16>, vector<128x384xbf16>, vector<16x384xf32> -> vector<16x384xf32>
    %c0_5 = arith.constant 0 : index
    %c1 = arith.constant 1 : index
    %c0_6 = arith.constant 0 : index
    %8 = vector.load %arg9[%c0_5, %c1, %c0_6] : memref<1x8x512xf32, #tpu.memory_space<vmem>>, vector<1x1x384xf32>
    %9 = vector.shape_cast %8 : vector<1x1x384xf32> to vector<1x384xf32>
    %10 = vector.broadcast %9 : vector<1x384xf32> to vector<16x384xf32>
    %11 = arith.addf %7, %10 : vector<16x384xf32>
    %c0_7 = arith.constant 0 : index
    %c0_8 = arith.constant 0 : index
    %c0_9 = arith.constant 0 : index
    %12 = vector.load %arg2[%c0_7, %c0_8, %c0_9] : memref<2x1x8xf32, #tpu.memory_space<vmem>>, vector<2x1x8xf32>
    %13 = vector.extract_strided_slice %11 {offsets = [0, 0], sizes = [16, 32], strides = [1, 1]} : vector<16x384xf32> to vector<16x32xf32>
    %14 = vector.shape_cast %13 : vector<16x32xf32> to vector<2x8x32xf32>
    %15 = vector.extract_strided_slice %11 {offsets = [0, 128], sizes = [16, 32], strides = [1, 1]} : vector<16x384xf32> to vector<16x32xf32>
    %16 = vector.shape_cast %15 : vector<16x32xf32> to vector<2x8x32xf32>
    %17 = vector.extract_strided_slice %11 {offsets = [0, 256], sizes = [16, 32], strides = [1, 1]} : vector<16x384xf32> to vector<16x32xf32>
    %18 = vector.shape_cast %17 : vector<16x32xf32> to vector<2x8x32xf32>
    %19 = arith.truncf %14 : vector<2x8x32xf32> to vector<2x8x32xbf16>
    %20 = arith.truncf %16 : vector<2x8x32xf32> to vector<2x8x32xbf16>
    "tpu.trace_start"() <{level = 10 : i32, message = "bqd,bkd->bqk"}> : () -> ()
    %cst_10 = arith.constant dense<0.000000e+00> : vector<2x8x8xf32>
    %21 = tpu.matmul %19, %20, %cst_10 {dimension_numbers = #tpu.dot_dimension_numbers<[2], [2], [1], [1], [0, 0, 0, 1, 1, 1], [0], [0]>} : vector<2x8x32xbf16>, vector<2x8x32xbf16>, vector<2x8x8xf32> -> vector<2x8x8xf32>
    "tpu.trace_stop"() : () -> ()
    %cst_11 = arith.constant 0.176776692 : f32
    %22 = vector.broadcast %cst_11 : f32 to vector<2x8x8xf32>
    %23 = arith.mulf %21, %22 : vector<2x8x8xf32>
    %24 = vector.broadcast %12 : vector<2x1x8xf32> to vector<2x8x8xf32>
    %25 = arith.addf %23, %24 : vector<2x8x8xf32>
    %cst_12 = arith.constant dense<0xFF800000> : vector<2x8xf32>
    %26 = vector.multi_reduction <maximumf>, %25, %cst_12 [2] : vector<2x8x8xf32> to vector<2x8xf32>
    %27 = vector.shape_cast %26 : vector<2x8xf32> to vector<2x8x1xf32>
    %28 = vector.broadcast %27 : vector<2x8x1xf32> to vector<2x8x8xf32>
    %29 = arith.subf %25, %28 : vector<2x8x8xf32>
    %30 = math.exp %29 : vector<2x8x8xf32>
    %cst_13 = arith.constant dense<0.000000e+00> : vector<2x8xf32>
    %31 = vector.multi_reduction <add>, %30, %cst_13 [2] : vector<2x8x8xf32> to vector<2x8xf32>
    %32 = vector.shape_cast %31 : vector<2x8xf32> to vector<2x8x1xf32>
    %33 = tpu.reciprocal %32 {approx = true} : vector<2x8x1xf32> -> vector<2x8x1xf32>
    %34 = vector.broadcast %33 : vector<2x8x1xf32> to vector<2x8x8xf32>
    %35 = arith.mulf %30, %34 : vector<2x8x8xf32>
    %36 = arith.truncf %35 : vector<2x8x8xf32> to vector<2x8x8xbf16>
    %37 = arith.truncf %18 : vector<2x8x32xf32> to vector<2x8x32xbf16>
    "tpu.trace_start"() <{level = 10 : i32, message = "bqk,bkd->bqd"}> : () -> ()
    %cst_14 = arith.constant dense<0.000000e+00> : vector<2x8x32xf32>
    %38 = tpu.matmul %36, %37, %cst_14 {dimension_numbers = #tpu.dot_dimension_numbers<[2], [1], [1], [2], [0, 0, 0, 1, 1, 2], [0], [0]>} : vector<2x8x8xbf16>, vector<2x8x32xbf16>, vector<2x8x32xf32> -> vector<2x8x32xf32>
    "tpu.trace_stop"() : () -> ()
    %39 = vector.extract_strided_slice %11 {offsets = [0, 32], sizes = [16, 32], strides = [1, 1]} : vector<16x384xf32> to vector<16x32xf32>
    %40 = vector.shape_cast %39 : vector<16x32xf32> to vector<2x8x32xf32>
    %41 = vector.extract_strided_slice %11 {offsets = [0, 160], sizes = [16, 32], strides = [1, 1]} : vector<16x384xf32> to vector<16x32xf32>
    %42 = vector.shape_cast %41 : vector<16x32xf32> to vector<2x8x32xf32>
    %43 = vector.extract_strided_slice %11 {offsets = [0, 288], sizes = [16, 32], strides = [1, 1]} : vector<16x384xf32> to vector<16x32xf32>
    %44 = vector.shape_cast %43 : vector<16x32xf32> to vector<2x8x32xf32>
    %45 = arith.truncf %40 : vector<2x8x32xf32> to vector<2x8x32xbf16>
    %46 = arith.truncf %42 : vector<2x8x32xf32> to vector<2x8x32xbf16>
    "tpu.trace_start"() <{level = 10 : i32, message = "bqd,bkd->bqk"}> : () -> ()
    %cst_15 = arith.constant dense<0.000000e+00> : vector<2x8x8xf32>
    %47 = tpu.matmul %45, %46, %cst_15 {dimension_numbers = #tpu.dot_dimension_numbers<[2], [2], [1], [1], [0, 0, 0, 1, 1, 1], [0], [0]>} : vector<2x8x32xbf16>, vector<2x8x32xbf16>, vector<2x8x8xf32> -> vector<2x8x8xf32>
    "tpu.trace_stop"() : () -> ()
    %cst_16 = arith.constant 0.176776692 : f32
    %48 = vector.broadcast %cst_16 : f32 to vector<2x8x8xf32>
    %49 = arith.mulf %47, %48 : vector<2x8x8xf32>
    %50 = vector.broadcast %12 : vector<2x1x8xf32> to vector<2x8x8xf32>
    %51 = arith.addf %49, %50 : vector<2x8x8xf32>
    %cst_17 = arith.constant dense<0xFF800000> : vector<2x8xf32>
    %52 = vector.multi_reduction <maximumf>, %51, %cst_17 [2] : vector<2x8x8xf32> to vector<2x8xf32>
    %53 = vector.shape_cast %52 : vector<2x8xf32> to vector<2x8x1xf32>
    %54 = vector.broadcast %53 : vector<2x8x1xf32> to vector<2x8x8xf32>
    %55 = arith.subf %51, %54 : vector<2x8x8xf32>
    %56 = math.exp %55 : vector<2x8x8xf32>
    %cst_18 = arith.constant dense<0.000000e+00> : vector<2x8xf32>
    %57 = vector.multi_reduction <add>, %56, %cst_18 [2] : vector<2x8x8xf32> to vector<2x8xf32>
    %58 = vector.shape_cast %57 : vector<2x8xf32> to vector<2x8x1xf32>
    %59 = tpu.reciprocal %58 {approx = true} : vector<2x8x1xf32> -> vector<2x8x1xf32>
    %60 = vector.broadcast %59 : vector<2x8x1xf32> to vector<2x8x8xf32>
    %61 = arith.mulf %56, %60 : vector<2x8x8xf32>
    %62 = arith.truncf %61 : vector<2x8x8xf32> to vector<2x8x8xbf16>
    %63 = arith.truncf %44 : vector<2x8x32xf32> to vector<2x8x32xbf16>
    "tpu.trace_start"() <{level = 10 : i32, message = "bqk,bkd->bqd"}> : () -> ()
    %cst_19 = arith.constant dense<0.000000e+00> : vector<2x8x32xf32>
    %64 = tpu.matmul %62, %63, %cst_19 {dimension_numbers = #tpu.dot_dimension_numbers<[2], [1], [1], [2], [0, 0, 0, 1, 1, 2], [0], [0]>} : vector<2x8x8xbf16>, vector<2x8x32xbf16>, vector<2x8x32xf32> -> vector<2x8x32xf32>
    "tpu.trace_stop"() : () -> ()
    %65 = vector.extract_strided_slice %11 {offsets = [0, 64], sizes = [16, 32], strides = [1, 1]} : vector<16x384xf32> to vector<16x32xf32>
    %66 = vector.shape_cast %65 : vector<16x32xf32> to vector<2x8x32xf32>
    %67 = vector.extract_strided_slice %11 {offsets = [0, 192], sizes = [16, 32], strides = [1, 1]} : vector<16x384xf32> to vector<16x32xf32>
    %68 = vector.shape_cast %67 : vector<16x32xf32> to vector<2x8x32xf32>
    %69 = vector.extract_strided_slice %11 {offsets = [0, 320], sizes = [16, 32], strides = [1, 1]} : vector<16x384xf32> to vector<16x32xf32>
    %70 = vector.shape_cast %69 : vector<16x32xf32> to vector<2x8x32xf32>
    %71 = arith.truncf %66 : vector<2x8x32xf32> to vector<2x8x32xbf16>
    %72 = arith.truncf %68 : vector<2x8x32xf32> to vector<2x8x32xbf16>
    "tpu.trace_start"() <{level = 10 : i32, message = "bqd,bkd->bqk"}> : () -> ()
    %cst_20 = arith.constant dense<0.000000e+00> : vector<2x8x8xf32>
    %73 = tpu.matmul %71, %72, %cst_20 {dimension_numbers = #tpu.dot_dimension_numbers<[2], [2], [1], [1], [0, 0, 0, 1, 1, 1], [0], [0]>} : vector<2x8x32xbf16>, vector<2x8x32xbf16>, vector<2x8x8xf32> -> vector<2x8x8xf32>
    "tpu.trace_stop"() : () -> ()
    %cst_21 = arith.constant 0.176776692 : f32
    %74 = vector.broadcast %cst_21 : f32 to vector<2x8x8xf32>
    %75 = arith.mulf %73, %74 : vector<2x8x8xf32>
    %76 = vector.broadcast %12 : vector<2x1x8xf32> to vector<2x8x8xf32>
    %77 = arith.addf %75, %76 : vector<2x8x8xf32>
    %cst_22 = arith.constant dense<0xFF800000> : vector<2x8xf32>
    %78 = vector.multi_reduction <maximumf>, %77, %cst_22 [2] : vector<2x8x8xf32> to vector<2x8xf32>
    %79 = vector.shape_cast %78 : vector<2x8xf32> to vector<2x8x1xf32>
    %80 = vector.broadcast %79 : vector<2x8x1xf32> to vector<2x8x8xf32>
    %81 = arith.subf %77, %80 : vector<2x8x8xf32>
    %82 = math.exp %81 : vector<2x8x8xf32>
    %cst_23 = arith.constant dense<0.000000e+00> : vector<2x8xf32>
    %83 = vector.multi_reduction <add>, %82, %cst_23 [2] : vector<2x8x8xf32> to vector<2x8xf32>
    %84 = vector.shape_cast %83 : vector<2x8xf32> to vector<2x8x1xf32>
    %85 = tpu.reciprocal %84 {approx = true} : vector<2x8x1xf32> -> vector<2x8x1xf32>
    %86 = vector.broadcast %85 : vector<2x8x1xf32> to vector<2x8x8xf32>
    %87 = arith.mulf %82, %86 : vector<2x8x8xf32>
    %88 = arith.truncf %87 : vector<2x8x8xf32> to vector<2x8x8xbf16>
    %89 = arith.truncf %70 : vector<2x8x32xf32> to vector<2x8x32xbf16>
    "tpu.trace_start"() <{level = 10 : i32, message = "bqk,bkd->bqd"}> : () -> ()
    %cst_24 = arith.constant dense<0.000000e+00> : vector<2x8x32xf32>
    %90 = tpu.matmul %88, %89, %cst_24 {dimension_numbers = #tpu.dot_dimension_numbers<[2], [1], [1], [2], [0, 0, 0, 1, 1, 2], [0], [0]>} : vector<2x8x8xbf16>, vector<2x8x32xbf16>, vector<2x8x32xf32> -> vector<2x8x32xf32>
    "tpu.trace_stop"() : () -> ()
    %91 = vector.extract_strided_slice %11 {offsets = [0, 96], sizes = [16, 32], strides = [1, 1]} : vector<16x384xf32> to vector<16x32xf32>
    %92 = vector.shape_cast %91 : vector<16x32xf32> to vector<2x8x32xf32>
    %93 = vector.extract_strided_slice %11 {offsets = [0, 224], sizes = [16, 32], strides = [1, 1]} : vector<16x384xf32> to vector<16x32xf32>
    %94 = vector.shape_cast %93 : vector<16x32xf32> to vector<2x8x32xf32>
    %95 = vector.extract_strided_slice %11 {offsets = [0, 352], sizes = [16, 32], strides = [1, 1]} : vector<16x384xf32> to vector<16x32xf32>
    %96 = vector.shape_cast %95 : vector<16x32xf32> to vector<2x8x32xf32>
    %97 = arith.truncf %92 : vector<2x8x32xf32> to vector<2x8x32xbf16>
    %98 = arith.truncf %94 : vector<2x8x32xf32> to vector<2x8x32xbf16>
    "tpu.trace_start"() <{level = 10 : i32, message = "bqd,bkd->bqk"}> : () -> ()
    %cst_25 = arith.constant dense<0.000000e+00> : vector<2x8x8xf32>
    %99 = tpu.matmul %97, %98, %cst_25 {dimension_numbers = #tpu.dot_dimension_numbers<[2], [2], [1], [1], [0, 0, 0, 1, 1, 1], [0], [0]>} : vector<2x8x32xbf16>, vector<2x8x32xbf16>, vector<2x8x8xf32> -> vector<2x8x8xf32>
    "tpu.trace_stop"() : () -> ()
    %cst_26 = arith.constant 0.176776692 : f32
    %100 = vector.broadcast %cst_26 : f32 to vector<2x8x8xf32>
    %101 = arith.mulf %99, %100 : vector<2x8x8xf32>
    %102 = vector.broadcast %12 : vector<2x1x8xf32> to vector<2x8x8xf32>
    %103 = arith.addf %101, %102 : vector<2x8x8xf32>
    %cst_27 = arith.constant dense<0xFF800000> : vector<2x8xf32>
    %104 = vector.multi_reduction <maximumf>, %103, %cst_27 [2] : vector<2x8x8xf32> to vector<2x8xf32>
    %105 = vector.shape_cast %104 : vector<2x8xf32> to vector<2x8x1xf32>
    %106 = vector.broadcast %105 : vector<2x8x1xf32> to vector<2x8x8xf32>
    %107 = arith.subf %103, %106 : vector<2x8x8xf32>
    %108 = math.exp %107 : vector<2x8x8xf32>
    %cst_28 = arith.constant dense<0.000000e+00> : vector<2x8xf32>
    %109 = vector.multi_reduction <add>, %108, %cst_28 [2] : vector<2x8x8xf32> to vector<2x8xf32>
    %110 = vector.shape_cast %109 : vector<2x8xf32> to vector<2x8x1xf32>
    %111 = tpu.reciprocal %110 {approx = true} : vector<2x8x1xf32> -> vector<2x8x1xf32>
    %112 = vector.broadcast %111 : vector<2x8x1xf32> to vector<2x8x8xf32>
    %113 = arith.mulf %108, %112 : vector<2x8x8xf32>
    %114 = arith.truncf %113 : vector<2x8x8xf32> to vector<2x8x8xbf16>
    %115 = arith.truncf %96 : vector<2x8x32xf32> to vector<2x8x32xbf16>
    "tpu.trace_start"() <{level = 10 : i32, message = "bqk,bkd->bqd"}> : () -> ()
    %cst_29 = arith.constant dense<0.000000e+00> : vector<2x8x32xf32>
    %116 = tpu.matmul %114, %115, %cst_29 {dimension_numbers = #tpu.dot_dimension_numbers<[2], [1], [1], [2], [0, 0, 0, 1, 1, 2], [0], [0]>} : vector<2x8x8xbf16>, vector<2x8x32xbf16>, vector<2x8x32xf32> -> vector<2x8x32xf32>
    "tpu.trace_stop"() : () -> ()
    %117 = tpu.concatenate %38, %64, %90, %116 in 2 : vector<2x8x32xf32>, vector<2x8x32xf32>, vector<2x8x32xf32>, vector<2x8x32xf32> -> vector<2x8x128xf32>
    %118 = vector.shape_cast %117 : vector<2x8x128xf32> to vector<16x128xf32>
    %c0_30 = arith.constant 0 : index
    %c0_31 = arith.constant 0 : index
    %c0_32 = arith.constant 0 : index
    %119 = vector.load %arg6[%c0_30, %c0_31, %c0_32] : memref<1x128x128xbf16, #tpu.memory_space<vmem>>, vector<1x128x128xbf16>
    %120 = vector.shape_cast %119 : vector<1x128x128xbf16> to vector<128x128xbf16>
    %121 = arith.truncf %118 : vector<16x128xf32> to vector<16x128xbf16>
    %cst_33 = arith.constant dense<0.000000e+00> : vector<16x128xf32>
    %122 = tpu.matmul %121, %120, %cst_33 {dimension_numbers = #tpu.dot_dimension_numbers<[1], [0], [0], [1], [0, 0, 1, 1], [], []>} : vector<16x128xbf16>, vector<128x128xbf16>, vector<16x128xf32> -> vector<16x128xf32>
    %c0_34 = arith.constant 0 : index
    %c2 = arith.constant 2 : index
    %c0_35 = arith.constant 0 : index
    %123 = vector.load %arg9[%c0_34, %c2, %c0_35] : memref<1x8x512xf32, #tpu.memory_space<vmem>>, vector<1x1x128xf32>
    %124 = vector.shape_cast %123 : vector<1x1x128xf32> to vector<1x128xf32>
    %125 = vector.broadcast %124 : vector<1x128xf32> to vector<16x128xf32>
    %126 = arith.addf %122, %125 : vector<16x128xf32>
    %127 = arith.addf %126, %3 : vector<16x128xf32>
    %c0_36 = arith.constant 0 : index
    %c2_37 = arith.constant 2 : index
    %c128 = arith.constant 128 : index
    %128 = vector.load %arg9[%c0_36, %c2_37, %c128] : memref<1x8x512xf32, #tpu.memory_space<vmem>>, vector<1x1x128xf32>
    %129 = vector.shape_cast %128 : vector<1x1x128xf32> to vector<1x128xf32>
    %c0_38 = arith.constant 0 : index
    %c2_39 = arith.constant 2 : index
    %c256 = arith.constant 256 : index
    %130 = vector.load %arg9[%c0_38, %c2_39, %c256] : memref<1x8x512xf32, #tpu.memory_space<vmem>>, vector<1x1x128xf32>
    %131 = vector.shape_cast %130 : vector<1x1x128xf32> to vector<1x128xf32>
    %cst_40 = arith.constant dense<0.000000e+00> : vector<16xf32>
    %132 = vector.multi_reduction <add>, %127, %cst_40 [1] : vector<16x128xf32> to vector<16xf32>
    %133 = vector.shape_cast %132 : vector<16xf32> to vector<16x1xf32>
    %cst_41 = arith.constant 1.280000e+02 : f32
    %134 = vector.broadcast %cst_41 : f32 to vector<16x1xf32>
    %135 = arith.divf %133, %134 : vector<16x1xf32>
    %136 = vector.broadcast %135 : vector<16x1xf32> to vector<16x128xf32>
    %137 = arith.subf %127, %136 : vector<16x128xf32>
    %138 = arith.mulf %137, %137 : vector<16x128xf32>
    %cst_42 = arith.constant dense<0.000000e+00> : vector<16xf32>
    %139 = vector.multi_reduction <add>, %138, %cst_42 [1] : vector<16x128xf32> to vector<16xf32>
    %140 = vector.shape_cast %139 : vector<16xf32> to vector<16x1xf32>
    %cst_43 = arith.constant 1.280000e+02 : f32
    %141 = vector.broadcast %cst_43 : f32 to vector<16x1xf32>
    %142 = arith.divf %140, %141 : vector<16x1xf32>
    %143 = vector.broadcast %135 : vector<16x1xf32> to vector<16x128xf32>
    %144 = arith.subf %127, %143 : vector<16x128xf32>
    %cst_44 = arith.constant 9.99999996E-13 : f32
    %145 = vector.broadcast %cst_44 : f32 to vector<16x1xf32>
    %146 = arith.addf %142, %145 : vector<16x1xf32>
    %147 = math.rsqrt %146 : vector<16x1xf32>
    %148 = vector.broadcast %147 : vector<16x1xf32> to vector<16x128xf32>
    %149 = arith.mulf %144, %148 : vector<16x128xf32>
    %150 = vector.broadcast %129 : vector<1x128xf32> to vector<16x128xf32>
    %151 = arith.mulf %149, %150 : vector<16x128xf32>
    %152 = vector.broadcast %131 : vector<1x128xf32> to vector<16x128xf32>
    %153 = arith.addf %151, %152 : vector<16x128xf32>
    %c0_45 = arith.constant 0 : index
    %c0_46 = arith.constant 0 : index
    %c0_47 = arith.constant 0 : index
    %154 = vector.load %arg7[%c0_45, %c0_46, %c0_47] : memref<1x128x512xbf16, #tpu.memory_space<vmem>>, vector<1x128x512xbf16>
    %155 = vector.shape_cast %154 : vector<1x128x512xbf16> to vector<128x512xbf16>
    %156 = arith.truncf %153 : vector<16x128xf32> to vector<16x128xbf16>
    %cst_48 = arith.constant dense<0.000000e+00> : vector<16x512xf32>
    %157 = tpu.matmul %156, %155, %cst_48 {dimension_numbers = #tpu.dot_dimension_numbers<[1], [0], [0], [1], [0, 0, 1, 1], [], []>} : vector<16x128xbf16>, vector<128x512xbf16>, vector<16x512xf32> -> vector<16x512xf32>
    %c0_49 = arith.constant 0 : index
    %c0_50 = arith.constant 0 : index
    %c0_51 = arith.constant 0 : index
    %158 = vector.load %arg9[%c0_49, %c0_50, %c0_51] : memref<1x8x512xf32, #tpu.memory_space<vmem>>, vector<1x1x512xf32>
    %159 = vector.shape_cast %158 : vector<1x1x512xf32> to vector<1x512xf32>
    %160 = vector.broadcast %159 : vector<1x512xf32> to vector<16x512xf32>
    %161 = arith.addf %157, %160 : vector<16x512xf32>
    %cst_52 = arith.constant 5.000000e-01 : f32
    %162 = vector.broadcast %cst_52 : f32 to vector<16x512xf32>
    %163 = arith.mulf %162, %161 : vector<16x512xf32>
    %cst_53 = arith.constant 4.471500e-02 : f32
    %164 = vector.broadcast %cst_53 : f32 to vector<16x512xf32>
    %165 = arith.mulf %164, %161 : vector<16x512xf32>
    %166 = arith.mulf %165, %161 : vector<16x512xf32>
    %167 = arith.mulf %166, %161 : vector<16x512xf32>
    %168 = arith.addf %161, %167 : vector<16x512xf32>
    %cst_54 = arith.constant 0.797884583 : f32
    %169 = vector.broadcast %cst_54 : f32 to vector<16x512xf32>
    %170 = arith.mulf %169, %168 : vector<16x512xf32>
    %171 = math.tanh %170 : vector<16x512xf32>
    %cst_55 = arith.constant 1.000000e+00 : f32
    %172 = vector.broadcast %cst_55 : f32 to vector<16x512xf32>
    %173 = arith.addf %172, %171 : vector<16x512xf32>
    %174 = arith.mulf %163, %173 : vector<16x512xf32>
    %c0_56 = arith.constant 0 : index
    %c0_57 = arith.constant 0 : index
    %c0_58 = arith.constant 0 : index
    %175 = vector.load %arg8[%c0_56, %c0_57, %c0_58] : memref<1x512x128xbf16, #tpu.memory_space<vmem>>, vector<1x512x128xbf16>
    %176 = vector.shape_cast %175 : vector<1x512x128xbf16> to vector<512x128xbf16>
    %177 = arith.truncf %174 : vector<16x512xf32> to vector<16x512xbf16>
    %cst_59 = arith.constant dense<0.000000e+00> : vector<16x128xf32>
    %178 = tpu.matmul %177, %176, %cst_59 {dimension_numbers = #tpu.dot_dimension_numbers<[1], [0], [0], [1], [0, 0, 1, 1], [], []>} : vector<16x512xbf16>, vector<512x128xbf16>, vector<16x128xf32> -> vector<16x128xf32>
    %c0_60 = arith.constant 0 : index
    %c2_61 = arith.constant 2 : index
    %c384 = arith.constant 384 : index
    %179 = vector.load %arg9[%c0_60, %c2_61, %c384] : memref<1x8x512xf32, #tpu.memory_space<vmem>>, vector<1x1x128xf32>
    %180 = vector.shape_cast %179 : vector<1x1x128xf32> to vector<1x128xf32>
    %181 = vector.broadcast %180 : vector<1x128xf32> to vector<16x128xf32>
    %182 = arith.addf %178, %181 : vector<16x128xf32>
    %183 = arith.addf %182, %153 : vector<16x128xf32>
    %c0_62 = arith.constant 0 : index
    %c3 = arith.constant 3 : index
    %c0_63 = arith.constant 0 : index
    %184 = vector.load %arg9[%c0_62, %c3, %c0_63] : memref<1x8x512xf32, #tpu.memory_space<vmem>>, vector<1x1x128xf32>
    %185 = vector.shape_cast %184 : vector<1x1x128xf32> to vector<1x128xf32>
    %c0_64 = arith.constant 0 : index
    %c3_65 = arith.constant 3 : index
    %c128_66 = arith.constant 128 : index
    %186 = vector.load %arg9[%c0_64, %c3_65, %c128_66] : memref<1x8x512xf32, #tpu.memory_space<vmem>>, vector<1x1x128xf32>
    %187 = vector.shape_cast %186 : vector<1x1x128xf32> to vector<1x128xf32>
    %cst_67 = arith.constant dense<0.000000e+00> : vector<16xf32>
    %188 = vector.multi_reduction <add>, %183, %cst_67 [1] : vector<16x128xf32> to vector<16xf32>
    %189 = vector.shape_cast %188 : vector<16xf32> to vector<16x1xf32>
    %cst_68 = arith.constant 1.280000e+02 : f32
    %190 = vector.broadcast %cst_68 : f32 to vector<16x1xf32>
    %191 = arith.divf %189, %190 : vector<16x1xf32>
    %192 = vector.broadcast %191 : vector<16x1xf32> to vector<16x128xf32>
    %193 = arith.subf %183, %192 : vector<16x128xf32>
    %194 = arith.mulf %193, %193 : vector<16x128xf32>
    %cst_69 = arith.constant dense<0.000000e+00> : vector<16xf32>
    %195 = vector.multi_reduction <add>, %194, %cst_69 [1] : vector<16x128xf32> to vector<16xf32>
    %196 = vector.shape_cast %195 : vector<16xf32> to vector<16x1xf32>
    %cst_70 = arith.constant 1.280000e+02 : f32
    %197 = vector.broadcast %cst_70 : f32 to vector<16x1xf32>
    %198 = arith.divf %196, %197 : vector<16x1xf32>
    %199 = vector.broadcast %191 : vector<16x1xf32> to vector<16x128xf32>
    %200 = arith.subf %183, %199 : vector<16x128xf32>
    %cst_71 = arith.constant 9.99999996E-13 : f32
    %201 = vector.broadcast %cst_71 : f32 to vector<16x1xf32>
    %202 = arith.addf %198, %201 : vector<16x1xf32>
    %203 = math.rsqrt %202 : vector<16x1xf32>
    %204 = vector.broadcast %203 : vector<16x1xf32> to vector<16x128xf32>
    %205 = arith.mulf %200, %204 : vector<16x128xf32>
    %206 = vector.broadcast %185 : vector<1x128xf32> to vector<16x128xf32>
    %207 = arith.mulf %205, %206 : vector<16x128xf32>
    %208 = vector.broadcast %187 : vector<1x128xf32> to vector<16x128xf32>
    %209 = arith.addf %207, %208 : vector<16x128xf32>
    %c0_72 = arith.constant 0 : index
    %c0_73 = arith.constant 0 : index
    %210 = vector.load %arg14[%c0_72, %c0_73] : memref<16x128xf32, #tpu.memory_space<vmem>>, vector<16x128xf32>
    tpu.vector_store %arg14[%c0_72, %c0_73], %209 {strides = array<i32>} : memref<16x128xf32, #tpu.memory_space<vmem>>, vector<16x128xf32>,
    %c1_i32 = arith.constant 1 : i32
    %211 = arith.cmpi eq, %arg0, %c1_i32 : i32
    %212 = arith.extui %211 : i1 to i32
    %c0_i32_74 = arith.constant 0 : i32
    %213 = arith.cmpi ne, %212, %c0_i32_74 : i32
    scf.if %213 {
      %c0_75 = arith.constant 0 : index
      %c0_76 = arith.constant 0 : index
      %214 = vector.load %arg14[%c0_75, %c0_76] : memref<16x128xf32, #tpu.memory_space<vmem>>, vector<1x128xf32>
      %c8 = arith.constant 8 : index
      %c0_77 = arith.constant 0 : index
      %215 = vector.load %arg14[%c8, %c0_77] : memref<16x128xf32, #tpu.memory_space<vmem>>, vector<1x128xf32>
      %216 = tpu.concatenate %214, %215 in 0 : vector<1x128xf32>, vector<1x128xf32> -> vector<2x128xf32>
      %c0_78 = arith.constant 0 : index
      %c0_79 = arith.constant 0 : index
      %217 = vector.load %arg10[%c0_78, %c0_79] : memref<128x128xbf16, #tpu.memory_space<vmem>>, vector<128x128xbf16>
      %218 = arith.truncf %216 : vector<2x128xf32> to vector<2x128xbf16>
      %cst_80 = arith.constant dense<0.000000e+00> : vector<2x128xf32>
      %219 = tpu.matmul %218, %217, %cst_80 {dimension_numbers = #tpu.dot_dimension_numbers<[1], [0], [0], [1], [0, 0, 1, 1], [], []>} : vector<2x128xbf16>, vector<128x128xbf16>, vector<2x128xf32> -> vector<2x128xf32>
      %c0_81 = arith.constant 0 : index
      %c0_82 = arith.constant 0 : index
      %220 = vector.load %arg11[%c0_81, %c0_82] : memref<8x128xf32, #tpu.memory_space<vmem>>, vector<1x128xf32>
      %221 = vector.broadcast %220 : vector<1x128xf32> to vector<2x128xf32>
      %222 = arith.addf %219, %221 : vector<2x128xf32>
      %223 = math.tanh %222 : vector<2x128xf32>
      %c0_83 = arith.constant 0 : index
      %c0_84 = arith.constant 0 : index
      %224 = vector.load %arg12[%c0_83, %c0_84] : memref<128x128xbf16, #tpu.memory_space<vmem>>, vector<128x128xbf16>
      %225 = arith.truncf %223 : vector<2x128xf32> to vector<2x128xbf16>
      %cst_85 = arith.constant dense<0.000000e+00> : vector<2x128xf32>
      %226 = tpu.matmul %225, %224, %cst_85 {dimension_numbers = #tpu.dot_dimension_numbers<[1], [0], [0], [1], [0, 0, 1, 1], [], []>} : vector<2x128xbf16>, vector<128x128xbf16>, vector<2x128xf32> -> vector<2x128xf32>
      %c1_86 = arith.constant 1 : index
      %c0_87 = arith.constant 0 : index
      %227 = vector.load %arg11[%c1_86, %c0_87] : memref<8x128xf32, #tpu.memory_space<vmem>>, vector<1x128xf32>
      %228 = vector.broadcast %227 : vector<1x128xf32> to vector<2x128xf32>
      %229 = arith.addf %226, %228 : vector<2x128xf32>
      %c0_88 = arith.constant 0 : index
      %c0_89 = arith.constant 0 : index
      %230 = vector.load %arg13[%c0_88, %c0_89] : memref<2x128xf32, #tpu.memory_space<vmem>>, vector<2x128xf32>
      tpu.vector_store %arg13[%c0_88, %c0_89], %229 {strides = array<i32>} : memref<2x128xf32, #tpu.memory_space<vmem>>, vector<2x128xf32>,
    } else {
    }
    return
  }
  func.func @transform_0(%arg0: i32) -> (i32, i32, i32) {
    %c0_i32 = arith.constant 0 : i32
    %c0_i32_0 = arith.constant 0 : i32
    %c0_i32_1 = arith.constant 0 : i32
    %c0_i32_2 = arith.constant 0 : i32
    return %c0_i32, %c0_i32_0, %c0_i32_1 : i32, i32, i32
  }
  func.func @transform_1(%arg0: i32) -> (i32, i32, i32) {
    %c0_i32 = arith.constant 0 : i32
    %c0_i32_0 = arith.constant 0 : i32
    %c0_i32_1 = arith.constant 0 : i32
    %c0_i32_2 = arith.constant 0 : i32
    return %c0_i32, %c0_i32_0, %c0_i32_1 : i32, i32, i32
  }
  func.func @transform_2(%arg0: i32) -> (i32, i32) {
    %c0_i32 = arith.constant 0 : i32
    %c0_i32_0 = arith.constant 0 : i32
    %c0_i32_1 = arith.constant 0 : i32
    return %c0_i32, %c0_i32_0 : i32, i32
  }
  func.func @transform_3(%arg0: i32) -> (i32, i32) {
    %c0_i32 = arith.constant 0 : i32
    %c0_i32_0 = arith.constant 0 : i32
    %c0_i32_1 = arith.constant 0 : i32
    return %c0_i32, %c0_i32_0 : i32, i32
  }
  func.func @transform_4(%arg0: i32) -> (i32, i32, i32) {
    %c0_i32 = arith.constant 0 : i32
    %c0_i32_0 = arith.constant 0 : i32
    %c0_i32_1 = arith.constant 0 : i32
    return %arg0, %c0_i32, %c0_i32_0 : i32, i32, i32
  }
  func.func @transform_5(%arg0: i32) -> (i32, i32, i32) {
    %c0_i32 = arith.constant 0 : i32
    %c0_i32_0 = arith.constant 0 : i32
    %c0_i32_1 = arith.constant 0 : i32
    return %arg0, %c0_i32, %c0_i32_0 : i32, i32, i32
  }
  func.func @transform_6(%arg0: i32) -> (i32, i32, i32) {
    %c0_i32 = arith.constant 0 : i32
    %c0_i32_0 = arith.constant 0 : i32
    %c0_i32_1 = arith.constant 0 : i32
    return %arg0, %c0_i32, %c0_i32_0 : i32, i32, i32
  }
  func.func @transform_7(%arg0: i32) -> (i32, i32, i32) {
    %c0_i32 = arith.constant 0 : i32
    %c0_i32_0 = arith.constant 0 : i32
    %c0_i32_1 = arith.constant 0 : i32
    return %arg0, %c0_i32, %c0_i32_0 : i32, i32, i32
  }
  func.func @transform_8(%arg0: i32) -> (i32, i32, i32) {
    %c0_i32 = arith.constant 0 : i32
    %c0_i32_0 = arith.constant 0 : i32
    %c0_i32_1 = arith.constant 0 : i32
    return %arg0, %c0_i32, %c0_i32_0 : i32, i32, i32
  }
  func.func @transform_9(%arg0: i32) -> (i32, i32) {
    %c0_i32 = arith.constant 0 : i32
    %c0_i32_0 = arith.constant 0 : i32
    %c0_i32_1 = arith.constant 0 : i32
    return %c0_i32, %c0_i32_0 : i32, i32
  }
  func.func @transform_10(%arg0: i32) -> (i32, i32) {
    %c0_i32 = arith.constant 0 : i32
    %c0_i32_0 = arith.constant 0 : i32
    %c0_i32_1 = arith.constant 0 : i32
    return %c0_i32, %c0_i32_0 : i32, i32
  }
  func.func @transform_11(%arg0: i32) -> (i32, i32) {
    %c0_i32 = arith.constant 0 : i32
    %c0_i32_0 = arith.constant 0 : i32
    %c0_i32_1 = arith.constant 0 : i32
    return %c0_i32, %c0_i32_0 : i32, i32
  }
  func.func @transform_12(%arg0: i32) -> (i32, i32) {
    %c0_i32 = arith.constant 0 : i32
    %c0_i32_0 = arith.constant 0 : i32
    %c0_i32_1 = arith.constant 0 : i32
    return %c0_i32, %c0_i32_0 : i32, i32
  }
}

</mosaic_0001>

<llo_original>
// kernel: tpu_custom_call.1
$region0: #{tpu_custom_call.1}
  #allocation0 [shape = 'u32[]', space=smem, size = 0x4, offset = 0x4, fixed_abs, tag = 'smem constant byte address 0x4 - core index']
  #allocation1 [shape = 'u32[144,128]{1,0:T(1,128)}', space=vmem, size = 0x12000, scoped, tag = 'internal scratch']
  #allocation2 [shape = 'f32[16,128]{1,0:T(8,128)}', space=vmem, size = 0x2000, scoped, tag = 'scratch operand']
  %s0 = inlined_call_operand.hbm [shape: f32[2,8,512], index: 0, kind: input, shape index: {}]
  %s1 = inlined_call_operand.vmem [shape: f32[2,1,8], index: 1, kind: input, shape index: {}]
  %s2 = inlined_call_operand.hbm [shape: bf16[512,128], index: 2, kind: input, shape index: {}]
  %s3 = inlined_call_operand.vmem [shape: f32[8,128], index: 3, kind: input, shape index: {}]
  %s4 = inlined_call_operand.hbm [shape: bf16[2,128,384], index: 4, kind: input, shape index: {}]
  %s5 = inlined_call_operand.hbm [shape: bf16[2,128,128], index: 5, kind: input, shape index: {}]
  %s6 = inlined_call_operand.hbm [shape: bf16[2,128,512], index: 6, kind: input, shape index: {}]
  %s7 = inlined_call_operand.hbm [shape: bf16[2,512,128], index: 7, kind: input, shape index: {}]
  %s8 = inlined_call_operand.hbm [shape: f32[2,8,512], index: 8, kind: input, shape index: {}]
  %s9 = inlined_call_operand.hbm [shape: bf16[128,128], index: 9, kind: input, shape index: {}]
  %s10 = inlined_call_operand.vmem [shape: f32[8,128], index: 10, kind: input, shape index: {}]
  %s11 = inlined_call_operand.hbm [shape: bf16[128,128], index: 11, kind: input, shape index: {}]
  %s12 = inlined_call_operand.hbm [shape: f32[2,128], index: 12, kind: output, shape index: {}]
  %s13 = sld [smem:[#allocation0]]
  $region125: #{tpu_custom_call.1} parent=0
    _
  %s15 = ssub.s32 1, %s13
  %s16 = scalar_select 0, %s15, %s13
  $region1: #{tpu_custom_call.1} parent=0
    #allocation3 [shape = 'u8[32768]{0}', space=vmem, size = 0x8000, scoped, tag = 'input window, operand 0, single buffered']
    #allocation4 [shape = 's32[2]{0}', space=sflag, size = 0x8, scoped, tag = 'scoped memory for tpu_custom_call.1']
    #allocation5 [shape = 's32[2]{0}', space=sflag, size = 0x8, scoped, tag = 'scoped memory for tpu_custom_call.1']
    #allocation6 [shape = 'u8[131072]{0}', space=vmem, size = 0x20000, scoped, tag = 'input window, operand 2, single buffered']
    #allocation7 [shape = 's32[1]{0}', space=sflag, size = 0x4, scoped, tag = 'scoped memory for tpu_custom_call.1']
    #allocation8 [shape = 'u8[196608]{0}', space=vmem, size = 0x30000, scoped, tag = 'input window, operand 4']
    #allocation9 [shape = 'u8[65536]{0}', space=vmem, size = 0x10000, scoped, tag = 'input window, operand 5']
    #allocation10 [shape = 'u8[262144]{0}', space=vmem, size = 0x40000, scoped, tag = 'input window, operand 6']
    #allocation11 [shape = 'u8[262144]{0}', space=vmem, size = 0x40000, scoped, tag = 'input window, operand 7']
    #allocation12 [shape = 'u8[32768]{0}', space=vmem, size = 0x8000, scoped, tag = 'input window, operand 8']
    #allocation13 [shape = 'u8[32768]{0}', space=vmem, size = 0x8000, scoped, tag = 'input window, operand 9, single buffered']
    #allocation14 [shape = 'u8[32768]{0}', space=vmem, size = 0x8000, scoped, tag = 'input window, operand 11, single buffered']
    #allocation15 [shape = 's32[1]{0}', space=sflag, size = 0x4, scoped, tag = 'scoped memory for tpu_custom_call.1']
    #allocation16 [shape = 'u8[1024]{0}', space=vmem, size = 0x400, scoped, tag = 'output window, operand 0, single buffered']
    %17 = vsyncpa [#allocation4], 0
    %18 = vsyncpa [#allocation7], 0
    %19 = vsyncpa [#allocation15], 0
    %20 = vsyncpa [#allocation5], 0
    loop: start=0, step=1, limit=4
    $region2: #{tpu_custom_call.1} parent=1 // loop_pre_header
      _
    $region3: #{tpu_custom_call.1} parent=1 // loop_header
      %s22 = sphi 0, %s26
      %p23 = scmp.ge.s32.totalorder %s22, 4
      %s30 = sphi 0, %s30
      %s32 = sphi 0, %s30
      %s33 = sphi 0, %s32
      %s47 = sphi 0, %s33
      %s51 = sphi 0, %s51
      %s53 = sphi 0, %s51
      %s54 = sphi 0, %s53
      %s68 = sphi 0, %s54
      %s72 = sphi 0, %s72
      %s74 = sphi 0, %s72
      %s75 = sphi 0, %s74
      %s89 = sphi 0, %s75
      %s93 = sphi 0, %s93
      %s95 = sphi 0, %s93
      %s96 = sphi 0, %s95
      %s110 = sphi 0, %s96
      %s116 = sphi 0, %s118
      %s119 = sphi 0, %s116
      %s120 = sphi 0, %s119
      %s136 = sphi 0, %s120
      %s142 = sphi 0, %s144
      %s145 = sphi 0, %s142
      %s146 = sphi 0, %s145
      %s162 = sphi 0, %s146
      %s168 = sphi 0, %s170
      %s171 = sphi 0, %s168
      %s172 = sphi 0, %s171
      %s188 = sphi 0, %s172
      %s194 = sphi 0, %s196
      %s197 = sphi 0, %s194
      %s198 = sphi 0, %s197
      %s214 = sphi 0, %s198
      %s220 = sphi 0, %s222
      %s223 = sphi 0, %s220
      %s224 = sphi 0, %s223
      %s240 = sphi 0, %s224
      %s244 = sphi 0, %s244
      %s246 = sphi 0, %s244
      %s247 = sphi 0, %s246
      %s261 = sphi 0, %s247
      %s265 = sphi 0, %s265
      %s267 = sphi 0, %s265
      %s268 = sphi 0, %s267
      %s282 = sphi 0, %s268
      %s286 = sphi 0, %s286
      %s288 = sphi 0, %s286
      %s289 = sphi 0, %s288
      %s303 = sphi 0, %s289
      %s307 = sphi 0, %s307
      %s309 = sphi 0, %s307
      %s310 = sphi 0, %s309
      %s324 = sphi 0, %s310
    $region4: #{tpu_custom_call.1} parent=1 // loop_header_branch
      %25 = sbr.rel (%p23) target = $region8
    $region5: #{tpu_custom_call.1} parent=1 // loop_body
      %s27 = ssub.s32 %s22, 1
      %s28 = ssub.s32 %s22, 2
      %s29 = sadd.s32 %s22, 1
      %s31 = sadd.s32 %s30, 1
      %p34 = scmp.eq.s32.totalorder %s22, 1
      %p35 = scmp.ne.s32.totalorder %s30, %s32
      %p36 = scmp.eq.s32.totalorder %s22, 0
      %p37 = por %p35, %p36
      %p38 = scmp.ne.s32.totalorder %s30, %s32
      %p39 = scmp.eq.s32.totalorder %s27, 1
      %p40 = por %p38, %p39
      %p41 = scmp.ne.s32.totalorder %s32, %s33
      %p42 = scmp.eq.s32.totalorder %s27, 0
      %p43 = por %p41, %p42
      %p44 = scmp.ne.s32.totalorder %s32, %s33
      %p45 = scmp.eq.s32.totalorder %s28, 1
      %p46 = por %p44, %p45
      %p48 = scmp.ne.s32.totalorder %s33, %s47
      %p49 = scmp.eq.s32.totalorder %s28, 0
      %p50 = por %p48, %p49
      %s52 = sadd.s32 %s51, 1
      %p55 = scmp.eq.s32.totalorder %s22, 1
      %p56 = scmp.ne.s32.totalorder %s51, %s53
      %p57 = scmp.eq.s32.totalorder %s22, 0
      %p58 = por %p56, %p57
      %p59 = scmp.ne.s32.totalorder %s51, %s53
      %p60 = scmp.eq.s32.totalorder %s27, 1
      %p61 = por %p59, %p60
      %p62 = scmp.ne.s32.totalorder %s53, %s54
      %p63 = scmp.eq.s32.totalorder %s27, 0
      %p64 = por %p62, %p63
      %p65 = scmp.ne.s32.totalorder %s53, %s54
      %p66 = scmp.eq.s32.totalorder %s28, 1
      %p67 = por %p65, %p66
      %p69 = scmp.ne.s32.totalorder %s54, %s68
      %p70 = scmp.eq.s32.totalorder %s28, 0
      %p71 = por %p69, %p70
      %s73 = sadd.s32 %s72, 1
      %p76 = scmp.eq.s32.totalorder %s22, 1
      %p77 = scmp.ne.s32.totalorder %s72, %s74
      %p78 = scmp.eq.s32.totalorder %s22, 0
      %p79 = por %p77, %p78
      %p80 = scmp.ne.s32.totalorder %s72, %s74
      %p81 = scmp.eq.s32.totalorder %s27, 1
      %p82 = por %p80, %p81
      %p83 = scmp.ne.s32.totalorder %s74, %s75
      %p84 = scmp.eq.s32.totalorder %s27, 0
      %p85 = por %p83, %p84
      %p86 = scmp.ne.s32.totalorder %s74, %s75
      %p87 = scmp.eq.s32.totalorder %s28, 1
      %p88 = por %p86, %p87
      %p90 = scmp.ne.s32.totalorder %s75, %s89
      %p91 = scmp.eq.s32.totalorder %s28, 0
      %p92 = por %p90, %p91
      %s94 = sadd.s32 %s93, 1
      %p97 = scmp.eq.s32.totalorder %s22, 1
      %p98 = scmp.ne.s32.totalorder %s93, %s95
      %p99 = scmp.eq.s32.totalorder %s22, 0
      %p100 = por %p98, %p99
      %p101 = scmp.ne.s32.totalorder %s93, %s95
      %p102 = scmp.eq.s32.totalorder %s27, 1
      %p103 = por %p101, %p102
      %p104 = scmp.ne.s32.totalorder %s95, %s96
      %p105 = scmp.eq.s32.totalorder %s27, 0
      %p106 = por %p104, %p105
      %p107 = scmp.ne.s32.totalorder %s95, %s96
      %p108 = scmp.eq.s32.totalorder %s28, 1
      %p109 = por %p107, %p108
      %p111 = scmp.ne.s32.totalorder %s96, %s110
      %p112 = scmp.eq.s32.totalorder %s28, 0
      %p113 = por %p111, %p112
      %s114 = ssub.s32 %s22, %s29
      %p115 = scmp.eq.s32.totalorder %s114, 0
      %s117 = sadd.s32 %s116, 1
      %s118 = scalar_select %p115, %s116, %s117
      %p121 = pneg %p115
      %p122 = scmp.eq.s32.totalorder %s22, 1
      %p123 = por %p121, %p122
      %p124 = scmp.ne.s32.totalorder %s116, %s119
      %p125 = scmp.eq.s32.totalorder %s22, 0
      %p126 = por %p124, %p125
      %p127 = scmp.ne.s32.totalorder %s116, %s119
      %p128 = scmp.eq.s32.totalorder %s27, 1
      %p129 = por %p127, %p128
      %p130 = scmp.ne.s32.totalorder %s119, %s120
      %p131 = scmp.eq.s32.totalorder %s27, 0
      %p132 = por %p130, %p131
      %p133 = scmp.ne.s32.totalorder %s119, %s120
      %p134 = scmp.eq.s32.totalorder %s28, 1
      %p135 = por %p133, %p134
      %p137 = scmp.ne.s32.totalorder %s120, %s136
      %p138 = scmp.eq.s32.totalorder %s28, 0
      %p139 = por %p137, %p138
      %s140 = ssub.s32 %s22, %s29
      %p141 = scmp.eq.s32.totalorder %s140, 0
      %s143 = sadd.s32 %s142, 1
      %s144 = scalar_select %p141, %s142, %s143
      %p147 = pneg %p141
      %p148 = scmp.eq.s32.totalorder %s22, 1
      %p149 = por %p147, %p148
      %p150 = scmp.ne.s32.totalorder %s142, %s145
      %p151 = scmp.eq.s32.totalorder %s22, 0
      %p152 = por %p150, %p151
      %p153 = scmp.ne.s32.totalorder %s142, %s145
      %p154 = scmp.eq.s32.totalorder %s27, 1
      %p155 = por %p153, %p154
      %p156 = scmp.ne.s32.totalorder %s145, %s146
      %p157 = scmp.eq.s32.totalorder %s27, 0
      %p158 = por %p156, %p157
      %p159 = scmp.ne.s32.totalorder %s145, %s146
      %p160 = scmp.eq.s32.totalorder %s28, 1
      %p161 = por %p159, %p160
      %p163 = scmp.ne.s32.totalorder %s146, %s162
      %p164 = scmp.eq.s32.totalorder %s28, 0
      %p165 = por %p163, %p164
      %s166 = ssub.s32 %s22, %s29
      %p167 = scmp.eq.s32.totalorder %s166, 0
      %s169 = sadd.s32 %s168, 1
      %s170 = scalar_select %p167, %s168, %s169
      %p173 = pneg %p167
      %p174 = scmp.eq.s32.totalorder %s22, 1
      %p175 = por %p173, %p174
      %p176 = scmp.ne.s32.totalorder %s168, %s171
      %p177 = scmp.eq.s32.totalorder %s22, 0
      %p178 = por %p176, %p177
      %p179 = scmp.ne.s32.totalorder %s168, %s171
      %p180 = scmp.eq.s32.totalorder %s27, 1
      %p181 = por %p179, %p180
      %p182 = scmp.ne.s32.totalorder %s171, %s172
      %p183 = scmp.eq.s32.totalorder %s27, 0
      %p184 = por %p182, %p183
      %p185 = scmp.ne.s32.totalorder %s171, %s172
      %p186 = scmp.eq.s32.totalorder %s28, 1
      %p187 = por %p185, %p186
      %p189 = scmp.ne.s32.totalorder %s172, %s188
      %p190 = scmp.eq.s32.totalorder %s28, 0
      %p191 = por %p189, %p190
      %s192 = ssub.s32 %s22, %s29
      %p193 = scmp.eq.s32.totalorder %s192, 0
      %s195 = sadd.s32 %s194, 1
      %s196 = scalar_select %p193, %s194, %s195
      %p199 = pneg %p193
      %p200 = scmp.eq.s32.totalorder %s22, 1
      %p201 = por %p199, %p200
      %p202 = scmp.ne.s32.totalorder %s194, %s197
      %p203 = scmp.eq.s32.totalorder %s22, 0
      %p204 = por %p202, %p203
      %p205 = scmp.ne.s32.totalorder %s194, %s197
      %p206 = scmp.eq.s32.totalorder %s27, 1
      %p207 = por %p205, %p206
      %p208 = scmp.ne.s32.totalorder %s197, %s198
      %p209 = scmp.eq.s32.totalorder %s27, 0
      %p210 = por %p208, %p209
      %p211 = scmp.ne.s32.totalorder %s197, %s198
      %p212 = scmp.eq.s32.totalorder %s28, 1
      %p213 = por %p211, %p212
      %p215 = scmp.ne.s32.totalorder %s198, %s214
      %p216 = scmp.eq.s32.totalorder %s28, 0
      %p217 = por %p215, %p216
      %s218 = ssub.s32 %s22, %s29
      %p219 = scmp.eq.s32.totalorder %s218, 0
      %s221 = sadd.s32 %s220, 1
      %s222 = scalar_select %p219, %s220, %s221
      %p225 = pneg %p219
      %p226 = scmp.eq.s32.totalorder %s22, 1
      %p227 = por %p225, %p226
      %p228 = scmp.ne.s32.totalorder %s220, %s223
      %p229 = scmp.eq.s32.totalorder %s22, 0
      %p230 = por %p228, %p229
      %p231 = scmp.ne.s32.totalorder %s220, %s223
      %p232 = scmp.eq.s32.totalorder %s27, 1
      %p233 = por %p231, %p232
      %p234 = scmp.ne.s32.totalorder %s223, %s224
      %p235 = scmp.eq.s32.totalorder %s27, 0
      %p236 = por %p234, %p235
      %p237 = scmp.ne.s32.totalorder %s223, %s224
      %p238 = scmp.eq.s32.totalorder %s28, 1
      %p239 = por %p237, %p238
      %p241 = scmp.ne.s32.totalorder %s224, %s240
      %p242 = scmp.eq.s32.totalorder %s28, 0
      %p243 = por %p241, %p242
      %s245 = sadd.s32 %s244, 1
      %p248 = scmp.eq.s32.totalorder %s22, 1
      %p249 = scmp.ne.s32.totalorder %s244, %s246
      %p250 = scmp.eq.s32.totalorder %s22, 0
      %p251 = por %p249, %p250
      %p252 = scmp.ne.s32.totalorder %s244, %s246
      %p253 = scmp.eq.s32.totalorder %s27, 1
      %p254 = por %p252, %p253
      %p255 = scmp.ne.s32.totalorder %s246, %s247
      %p256 = scmp.eq.s32.totalorder %s27, 0
      %p257 = por %p255, %p256
      %p258 = scmp.ne.s32.totalorder %s246, %s247
      %p259 = scmp.eq.s32.totalorder %s28, 1
      %p260 = por %p258, %p259
      %p262 = scmp.ne.s32.totalorder %s247, %s261
      %p263 = scmp.eq.s32.totalorder %s28, 0
      %p264 = por %p262, %p263
      %s266 = sadd.s32 %s265, 1
      %p269 = scmp.eq.s32.totalorder %s22, 1
      %p270 = scmp.ne.s32.totalorder %s265, %s267
      %p271 = scmp.eq.s32.totalorder %s22, 0
      %p272 = por %p270, %p271
      %p273 = scmp.ne.s32.totalorder %s265, %s267
      %p274 = scmp.eq.s32.totalorder %s27, 1
      %p275 = por %p273, %p274
      %p276 = scmp.ne.s32.totalorder %s267, %s268
      %p277 = scmp.eq.s32.totalorder %s27, 0
      %p278 = por %p276, %p277
      %p279 = scmp.ne.s32.totalorder %s267, %s268
      %p280 = scmp.eq.s32.totalorder %s28, 1
      %p281 = por %p279, %p280
      %p283 = scmp.ne.s32.totalorder %s268, %s282
      %p284 = scmp.eq.s32.totalorder %s28, 0
      %p285 = por %p283, %p284
      %s287 = sadd.s32 %s286, 1
      %p290 = scmp.eq.s32.totalorder %s22, 1
      %p291 = scmp.ne.s32.totalorder %s286, %s288
      %p292 = scmp.eq.s32.totalorder %s22, 0
      %p293 = por %p291, %p292
      %p294 = scmp.ne.s32.totalorder %s286, %s288
      %p295 = scmp.eq.s32.totalorder %s27, 1
      %p296 = por %p294, %p295
      %p297 = scmp.ne.s32.totalorder %s288, %s289
      %p298 = scmp.eq.s32.totalorder %s27, 0
      %p299 = por %p297, %p298
      %p300 = scmp.ne.s32.totalorder %s288, %s289
      %p301 = scmp.eq.s32.totalorder %s28, 1
      %p302 = por %p300, %p301
      %p304 = scmp.ne.s32.totalorder %s289, %s303
      %p305 = scmp.eq.s32.totalorder %s28, 0
      %p306 = por %p304, %p305
      %s308 = sadd.s32 %s307, 1
      %p311 = scmp.eq.s32.totalorder %s22, 1
      %p312 = scmp.ne.s32.totalorder %s307, %s309
      %p313 = scmp.eq.s32.totalorder %s22, 0
      %p314 = por %p312, %p313
      %p315 = scmp.ne.s32.totalorder %s307, %s309
      %p316 = scmp.eq.s32.totalorder %s27, 1
      %p317 = por %p315, %p316
      %p318 = scmp.ne.s32.totalorder %s309, %s310
      %p319 = scmp.eq.s32.totalorder %s27, 0
      %p320 = por %p318, %p319
      %p321 = scmp.ne.s32.totalorder %s309, %s310
      %p322 = scmp.eq.s32.totalorder %s28, 1
      %p323 = por %p321, %p322
      %p325 = scmp.ne.s32.totalorder %s310, %s324
      %p326 = scmp.eq.s32.totalorder %s28, 0
      %p327 = por %p325, %p326
      %p328 = scmp.le.s32.totalorder 1, %s22
      %p329 = scmp.lt.s32.totalorder %s22, 3
      %p330 = pnand %p328, %p329
      %p331 = pneg %p330
      // Predicated region
      $region9: #{tpu_custom_call.1} parent=5 // pred_check
        _
      $region10: #{tpu_custom_call.1} parent=5 // pred_check_branch
        %333 = sbr.rel (%p330) target = $region12
      $region11: #{tpu_custom_call.1} parent=5 // pred_region
        %s334 = ssub.s32 %s22, 1
        // Predicated region
        $region13: #{tpu_custom_call.1} parent=11 // pred_check
          %p335 = pneg %p43
        $region14: #{tpu_custom_call.1} parent=11 // pred_check_branch
          %337 = sbr.rel (%p335) target = $region16
        $region15: #{tpu_custom_call.1} parent=11 // pred_region
          %s339 = ssub.s32 1024, 1024
          %340 = vsyncadd [#allocation4], %s339
          %s341 = sshll.u32 [#allocation3], 4
          %s342 = int_to_ptr.vmem [resolvable:$true] %s341
          %347 = dma.hbm_to_vmem [thread:$0]  %s0, 1024, %s342, [#allocation4], 512, 512, 32
        $region16: #{tpu_custom_call.1} parent=11 // pred_fallthru
          _
        // Predicated region
        $region17: #{tpu_custom_call.1} parent=11 // pred_check
          %p348 = pneg %p64
        $region18: #{tpu_custom_call.1} parent=11 // pred_check_branch
          %350 = sbr.rel (%p348) target = $region20
        $region19: #{tpu_custom_call.1} parent=11 // pred_region
          _
        $region20: #{tpu_custom_call.1} parent=11 // pred_fallthru
          _
        // Predicated region
        $region21: #{tpu_custom_call.1} parent=11 // pred_check
          %p351 = pneg %p85
        $region22: #{tpu_custom_call.1} parent=11 // pred_check_branch
          %353 = sbr.rel (%p351) target = $region24
        $region23: #{tpu_custom_call.1} parent=11 // pred_region
          %s355 = ssub.s32 4096, 4096
          %356 = vsyncadd [#allocation7], %s355
          %s357 = sshll.u32 [#allocation6], 4
          %s358 = int_to_ptr.vmem [resolvable:$true] %s357
          %363 = dma.hbm_to_vmem [thread:$0]  %s2, 4096, %s358, [#allocation7], 64, 64, 4
        $region24: #{tpu_custom_call.1} parent=11 // pred_fallthru
          _
        // Predicated region
        $region25: #{tpu_custom_call.1} parent=11 // pred_check
          %p364 = pneg %p106
        $region26: #{tpu_custom_call.1} parent=11 // pred_check_branch
          %366 = sbr.rel (%p364) target = $region28
        $region27: #{tpu_custom_call.1} parent=11 // pred_region
          _
        $region28: #{tpu_custom_call.1} parent=11 // pred_fallthru
          _
        // Predicated region
        $region29: #{tpu_custom_call.1} parent=11 // pred_check
          %p367 = pneg %p257
        $region30: #{tpu_custom_call.1} parent=11 // pred_check_branch
          %369 = sbr.rel (%p367) target = $region32
        $region31: #{tpu_custom_call.1} parent=11 // pred_region
          %s371 = ssub.s32 1024, 1024
          %372 = vsyncadd [#allocation7], %s371
          %s373 = sshll.u32 [#allocation13], 4
          %s374 = int_to_ptr.vmem [resolvable:$true] %s373
          %379 = dma.hbm_to_vmem [thread:$0]  %s9, 1024, %s374, [#allocation7], 64, 64, 4
        $region32: #{tpu_custom_call.1} parent=11 // pred_fallthru
          _
        // Predicated region
        $region33: #{tpu_custom_call.1} parent=11 // pred_check
          %p380 = pneg %p278
        $region34: #{tpu_custom_call.1} parent=11 // pred_check_branch
          %382 = sbr.rel (%p380) target = $region36
        $region35: #{tpu_custom_call.1} parent=11 // pred_region
          _
        $region36: #{tpu_custom_call.1} parent=11 // pred_fallthru
          _
        // Predicated region
        $region37: #{tpu_custom_call.1} parent=11 // pred_check
          %p383 = pneg %p299
        $region38: #{tpu_custom_call.1} parent=11 // pred_check_branch
          %385 = sbr.rel (%p383) target = $region40
        $region39: #{tpu_custom_call.1} parent=11 // pred_region
          %s387 = ssub.s32 1024, 1024
          %388 = vsyncadd [#allocation15], %s387
          %s389 = sshll.u32 [#allocation14], 4
          %s390 = int_to_ptr.vmem [resolvable:$true] %s389
          %395 = dma.hbm_to_vmem [thread:$0]  %s11, 1024, %s390, [#allocation15], 64, 64, 4
        $region40: #{tpu_custom_call.1} parent=11 // pred_fallthru
          _
      $region12: #{tpu_custom_call.1} parent=5 // pred_fallthru
        _
      %p396 = scmp.lt.s32.totalorder %s22, 2
      // Predicated region
      $region41: #{tpu_custom_call.1} parent=5 // pred_check
        %p397 = pneg %p396
      $region42: #{tpu_custom_call.1} parent=5 // pred_check_branch
        %399 = sbr.rel (%p397) target = $region44
      $region43: #{tpu_custom_call.1} parent=5 // pred_region
        // Predicated region
        $region45: #{tpu_custom_call.1} parent=43 // pred_check
          %p400 = pneg %p126
        $region46: #{tpu_custom_call.1} parent=43 // pred_check_branch
          %402 = sbr.rel (%p400) target = $region48
        $region47: #{tpu_custom_call.1} parent=43 // pred_region
          %s403 = sand.u32 %s22, 1
          %s404 = scalar_lea.sflag [#allocation4], %s403
          %s405 = sand.u32 %s116, 1
          %s406 = smul.addr %s405, 192
          %s407 = scalar_lea.vmem [#allocation8], %s406
          %s409 = ssub.s32 3072, 3072
          %410 = vsyncadd %s404, %s409
          %s411 = smul.addr %s22, 48
          %s412 = smul.addr %s411, 64
          %s413 = scalar_lea.hbm %s4, %s412
          %s414 = sshll.u32 %s407, 4
          %s415 = int_to_ptr.vmem [resolvable:$true] %s414
          %420 = dma.hbm_to_vmem [thread:$0]  %s413, 3072, %s415, %s404, 192, 192, 12
        $region48: #{tpu_custom_call.1} parent=43 // pred_fallthru
          _
        // Predicated region
        $region49: #{tpu_custom_call.1} parent=43 // pred_check
          %p421 = pneg %p152
        $region50: #{tpu_custom_call.1} parent=43 // pred_check_branch
          %423 = sbr.rel (%p421) target = $region52
        $region51: #{tpu_custom_call.1} parent=43 // pred_region
          %s424 = sand.u32 %s22, 1
          %s425 = scalar_lea.sflag [#allocation4], %s424
          %s426 = sand.u32 %s142, 1
          %s427 = smul.addr %s426, 64
          %s428 = scalar_lea.vmem [#allocation9], %s427
          %s430 = ssub.s32 1024, 1024
          %431 = vsyncadd %s425, %s430
          %s432 = smul.addr %s22, 16
          %s433 = smul.addr %s432, 64
          %s434 = scalar_lea.hbm %s5, %s433
          %s435 = sshll.u32 %s428, 4
          %s436 = int_to_ptr.vmem [resolvable:$true] %s435
          %441 = dma.hbm_to_vmem [thread:$0]  %s434, 1024, %s436, %s425, 64, 64, 4
        $region52: #{tpu_custom_call.1} parent=43 // pred_fallthru
          _
        // Predicated region
        $region53: #{tpu_custom_call.1} parent=43 // pred_check
          %p442 = pneg %p178
        $region54: #{tpu_custom_call.1} parent=43 // pred_check_branch
          %444 = sbr.rel (%p442) target = $region56
        $region55: #{tpu_custom_call.1} parent=43 // pred_region
          %s445 = sand.u32 %s22, 1
          %s446 = scalar_lea.sflag [#allocation4], %s445
          %s447 = sand.u32 %s168, 1
          %s448 = smul.addr %s447, 256
          %s449 = scalar_lea.vmem [#allocation10], %s448
          %s451 = ssub.s32 4096, 4096
          %452 = vsyncadd %s446, %s451
          %s453 = smul.addr %s22, 64
          %s454 = smul.addr %s453, 64
          %s455 = scalar_lea.hbm %s6, %s454
          %s456 = sshll.u32 %s449, 4
          %s457 = int_to_ptr.vmem [resolvable:$true] %s456
          %462 = dma.hbm_to_vmem [thread:$0]  %s455, 4096, %s457, %s446, 256, 256, 16
        $region56: #{tpu_custom_call.1} parent=43 // pred_fallthru
          _
        // Predicated region
        $region57: #{tpu_custom_call.1} parent=43 // pred_check
          %p463 = pneg %p204
        $region58: #{tpu_custom_call.1} parent=43 // pred_check_branch
          %465 = sbr.rel (%p463) target = $region60
        $region59: #{tpu_custom_call.1} parent=43 // pred_region
          %s466 = sand.u32 %s22, 1
          %s467 = scalar_lea.sflag [#allocation4], %s466
          %s468 = sand.u32 %s194, 1
          %s469 = smul.addr %s468, 256
          %s470 = scalar_lea.vmem [#allocation11], %s469
          %s472 = ssub.s32 4096, 4096
          %473 = vsyncadd %s467, %s472
          %s474 = smul.addr %s22, 64
          %s475 = smul.addr %s474, 64
          %s476 = scalar_lea.hbm %s7, %s475
          %s477 = sshll.u32 %s470, 4
          %s478 = int_to_ptr.vmem [resolvable:$true] %s477
          %483 = dma.hbm_to_vmem [thread:$0]  %s476, 4096, %s478, %s467, 64, 64, 4
        $region60: #{tpu_custom_call.1} parent=43 // pred_fallthru
          _
        // Predicated region
        $region61: #{tpu_custom_call.1} parent=43 // pred_check
          %p484 = pneg %p230
        $region62: #{tpu_custom_call.1} parent=43 // pred_check_branch
          %486 = sbr.rel (%p484) target = $region64
        $region63: #{tpu_custom_call.1} parent=43 // pred_region
          %s487 = sand.u32 %s22, 1
          %s488 = scalar_lea.sflag [#allocation4], %s487
          %s489 = sand.u32 %s220, 1
          %s490 = smul.addr %s489, 32
          %s491 = scalar_lea.vmem [#allocation12], %s490
          %s493 = ssub.s32 512, 512
          %494 = vsyncadd %s488, %s493
          %s495 = smul.addr %s22, 4
          %s496 = smul.addr %s495, 128
          %s497 = scalar_lea.hbm %s8, %s496
          %s499 = sshll.u32 %s491, 4
          %s500 = int_to_ptr.vmem [resolvable:$true] %s499
          %502 = dma.hbm_to_vmem [thread:$0]  %s497, 512, %s500, %s488
        $region64: #{tpu_custom_call.1} parent=43 // pred_fallthru
          _
      $region44: #{tpu_custom_call.1} parent=5 // pred_fallthru
        _
      %p503 = scmp.le.s32.totalorder 1, %s22
      %p504 = scmp.lt.s32.totalorder %s22, 3
      %p505 = pnand %p503, %p504
      %p506 = pneg %p505
      // Predicated region
      $region65: #{tpu_custom_call.1} parent=5 // pred_check
        _
      $region66: #{tpu_custom_call.1} parent=5 // pred_check_branch
        %508 = sbr.rel (%p505) target = $region68
      $region67: #{tpu_custom_call.1} parent=5 // pred_region
        %s509 = ssub.s32 %s22, 1
        // Predicated region
        $region69: #{tpu_custom_call.1} parent=67 // pred_check
          %p510 = pneg %p43
        $region70: #{tpu_custom_call.1} parent=67 // pred_check_branch
          %512 = sbr.rel (%p510) target = $region72
        $region71: #{tpu_custom_call.1} parent=67 // pred_region
          %513 = dma.done [#allocation4], 1024
        $region72: #{tpu_custom_call.1} parent=67 // pred_fallthru
          _
        // Predicated region
        $region73: #{tpu_custom_call.1} parent=67 // pred_check
          %p514 = pneg %p85
        $region74: #{tpu_custom_call.1} parent=67 // pred_check_branch
          %516 = sbr.rel (%p514) target = $region76
        $region75: #{tpu_custom_call.1} parent=67 // pred_region
          %517 = dma.done [#allocation7], 4096
        $region76: #{tpu_custom_call.1} parent=67 // pred_fallthru
          _
        %s518 = sand.u32 %s27, 1
        %s519 = scalar_lea.sflag [#allocation4], %s518
        %s520 = sand.u32 %s119, 1
        %s521 = smul.addr %s520, 192
        %s522 = scalar_lea.vmem [#allocation8], %s521
        // Predicated region
        $region77: #{tpu_custom_call.1} parent=67 // pred_check
          %p523 = pneg %p132
        $region78: #{tpu_custom_call.1} parent=67 // pred_check_branch
          %525 = sbr.rel (%p523) target = $region80
        $region79: #{tpu_custom_call.1} parent=67 // pred_region
          %526 = dma.done %s519, 3072
        $region80: #{tpu_custom_call.1} parent=67 // pred_fallthru
          _
        %s527 = sand.u32 %s27, 1
        %s528 = scalar_lea.sflag [#allocation4], %s527
        %s529 = sand.u32 %s145, 1
        %s530 = smul.addr %s529, 64
        %s531 = scalar_lea.vmem [#allocation9], %s530
        // Predicated region
        $region81: #{tpu_custom_call.1} parent=67 // pred_check
          %p532 = pneg %p158
        $region82: #{tpu_custom_call.1} parent=67 // pred_check_branch
          %534 = sbr.rel (%p532) target = $region84
        $region83: #{tpu_custom_call.1} parent=67 // pred_region
          %535 = dma.done %s528, 1024
        $region84: #{tpu_custom_call.1} parent=67 // pred_fallthru
          _
        %s536 = sand.u32 %s27, 1
        %s537 = scalar_lea.sflag [#allocation4], %s536
        %s538 = sand.u32 %s171, 1
        %s539 = smul.addr %s538, 256
        %s540 = scalar_lea.vmem [#allocation10], %s539
        // Predicated region
        $region85: #{tpu_custom_call.1} parent=67 // pred_check
          %p541 = pneg %p184
        $region86: #{tpu_custom_call.1} parent=67 // pred_check_branch
          %543 = sbr.rel (%p541) target = $region88
        $region87: #{tpu_custom_call.1} parent=67 // pred_region
          %544 = dma.done %s537, 4096
        $region88: #{tpu_custom_call.1} parent=67 // pred_fallthru
          _
        %s545 = sand.u32 %s27, 1
        %s546 = scalar_lea.sflag [#allocation4], %s545
        %s547 = sand.u32 %s197, 1
        %s548 = smul.addr %s547, 256
        %s549 = scalar_lea.vmem [#allocation11], %s548
        // Predicated region
        $region89: #{tpu_custom_call.1} parent=67 // pred_check
          %p550 = pneg %p210
        $region90: #{tpu_custom_call.1} parent=67 // pred_check_branch
          %552 = sbr.rel (%p550) target = $region92
        $region91: #{tpu_custom_call.1} parent=67 // pred_region
          %553 = dma.done %s546, 4096
        $region92: #{tpu_custom_call.1} parent=67 // pred_fallthru
          _
        %s554 = sand.u32 %s27, 1
        %s555 = scalar_lea.sflag [#allocation4], %s554
        %s556 = sand.u32 %s223, 1
        %s557 = smul.addr %s556, 32
        %s558 = scalar_lea.vmem [#allocation12], %s557
        // Predicated region
        $region93: #{tpu_custom_call.1} parent=67 // pred_check
          %p559 = pneg %p236
        $region94: #{tpu_custom_call.1} parent=67 // pred_check_branch
          %561 = sbr.rel (%p559) target = $region96
        $region95: #{tpu_custom_call.1} parent=67 // pred_region
          %562 = dma.done %s555, 512
        $region96: #{tpu_custom_call.1} parent=67 // pred_fallthru
          _
        // Predicated region
        $region97: #{tpu_custom_call.1} parent=67 // pred_check
          %p563 = pneg %p257
        $region98: #{tpu_custom_call.1} parent=67 // pred_check_branch
          %565 = sbr.rel (%p563) target = $region100
        $region99: #{tpu_custom_call.1} parent=67 // pred_region
          %566 = dma.done [#allocation7], 1024
        $region100: #{tpu_custom_call.1} parent=67 // pred_fallthru
          _
        // Predicated region
        $region101: #{tpu_custom_call.1} parent=67 // pred_check
          %p567 = pneg %p299
        $region102: #{tpu_custom_call.1} parent=67 // pred_check_branch
          %569 = sbr.rel (%p567) target = $region104
        $region103: #{tpu_custom_call.1} parent=67 // pred_region
          %570 = dma.done [#allocation15], 1024
        $region104: #{tpu_custom_call.1} parent=67 // pred_fallthru
          _
        %p571 = pneg %p43
        %p572 = pneg %p40
        %p573 = pneg %p64
        %p574 = pneg %p61
        %p575 = pneg %p85
        %p576 = pneg %p82
        %p577 = pneg %p106
        %p578 = pneg %p103
        %s579 = sand.u32 %s27, 1
        %s580 = scalar_lea.sflag [#allocation4], %s579
        %s581 = sand.u32 %s119, 1
        %s582 = smul.addr %s581, 192
        %s583 = scalar_lea.vmem [#allocation8], %s582
        %p584 = pneg %p132
        %p585 = pneg %p129
        %s586 = sand.u32 %s27, 1
        %s587 = scalar_lea.sflag [#allocation4], %s586
        %s588 = sand.u32 %s145, 1
        %s589 = smul.addr %s588, 64
        %s590 = scalar_lea.vmem [#allocation9], %s589
        %p591 = pneg %p158
        %p592 = pneg %p155
        %s593 = sand.u32 %s27, 1
        %s594 = scalar_lea.sflag [#allocation4], %s593
        %s595 = sand.u32 %s171, 1
        %s596 = smul.addr %s595, 256
        %s597 = scalar_lea.vmem [#allocation10], %s596
        %p598 = pneg %p184
        %p599 = pneg %p181
        %s600 = sand.u32 %s27, 1
        %s601 = scalar_lea.sflag [#allocation4], %s600
        %s602 = sand.u32 %s197, 1
        %s603 = smul.addr %s602, 256
        %s604 = scalar_lea.vmem [#allocation11], %s603
        %p605 = pneg %p210
        %p606 = pneg %p207
        %s607 = sand.u32 %s27, 1
        %s608 = scalar_lea.sflag [#allocation4], %s607
        %s609 = sand.u32 %s223, 1
        %s610 = smul.addr %s609, 32
        %s611 = scalar_lea.vmem [#allocation12], %s610
        %p612 = pneg %p236
        %p613 = pneg %p233
        %p614 = pneg %p257
        %p615 = pneg %p254
        %p616 = pneg %p278
        %p617 = pneg %p275
        %p618 = pneg %p299
        %p619 = pneg %p296
        %p620 = pneg %p320
        %p621 = pneg %p317
        %p623 = scmp.eq.s32.totalorder %s27, 0
        // Predicated region
        $region105: #{tpu_custom_call.1} parent=67 // pred_check
          %p624 = pneg %p623
        $region106: #{tpu_custom_call.1} parent=67 // pred_check_branch
          %626 = sbr.rel (%p624) target = $region108
        $region107: #{tpu_custom_call.1} parent=67 // pred_region
          %v627 = vld [vmem:[#allocation3] sm:$0xff]
          %v628 = vld [vmem:[#allocation3 + $0x8] sm:$0xff]
          %v629 = vld [vmem:[#allocation3 + $0x10] sm:$0xff]
          %v630 = vld [vmem:[#allocation3 + $0x18] sm:$0xff]
          %v631 = vld [vmem:[#allocation3 + $0x20] sm:$0xff]
          %v632 = vld [vmem:[#allocation3 + $0x28] sm:$0xff]
          %v633 = vld [vmem:[#allocation3 + $0x30] sm:$0xff]
          %v634 = vld [vmem:[#allocation3 + $0x38] sm:$0xff]
          %v635 = vmul.f32 %v627, 0.5
          %v636 = vmul.f32 %v628, 0.5
          %v637 = vmul.f32 %v629, 0.5
          %v638 = vmul.f32 %v630, 0.5
          %v639 = vmul.f32 %v631, 0.5
          %v640 = vmul.f32 %v632, 0.5
          %v641 = vmul.f32 %v633, 0.5
          %v642 = vmul.f32 %v634, 0.5
          %v643 = vmul.f32 %v627, 0.044715
          %v644 = vmul.f32 %v628, 0.044715
          %v645 = vmul.f32 %v629, 0.044715
          %v646 = vmul.f32 %v630, 0.044715
          %v647 = vmul.f32 %v631, 0.044715
          %v648 = vmul.f32 %v632, 0.044715
          %v649 = vmul.f32 %v633, 0.044715
          %v650 = vmul.f32 %v634, 0.044715
          %v651 = vmul.f32 %v643, %v627
          %v652 = vmul.f32 %v644, %v628
          %v653 = vmul.f32 %v645, %v629
          %v654 = vmul.f32 %v646, %v630
          %v655 = vmul.f32 %v647, %v631
          %v656 = vmul.f32 %v648, %v632
          %v657 = vmul.f32 %v649, %v633
          %v658 = vmul.f32 %v650, %v634
          %v659 = vmul.f32 %v651, %v627
          %v660 = vmul.f32 %v652, %v628
          %v661 = vmul.f32 %v653, %v629
          %v662 = vmul.f32 %v654, %v630
          %v663 = vmul.f32 %v655, %v631
          %v664 = vmul.f32 %v656, %v632
          %v665 = vmul.f32 %v657, %v633
          %v666 = vmul.f32 %v658, %v634
          %v667 = vadd.f32 %v627, %v659
          %v668 = vadd.f32 %v628, %v660
          %v669 = vadd.f32 %v629, %v661
          %v670 = vadd.f32 %v630, %v662
          %v671 = vadd.f32 %v631, %v663
          %v672 = vadd.f32 %v632, %v664
          %v673 = vadd.f32 %v633, %v665
          %v674 = vadd.f32 %v634, %v666
          %v675 = vmul.f32 %v667, 0.7978846
          %v676 = vmul.f32 %v668, 0.7978846
          %v677 = vmul.f32 %v669, 0.7978846
          %v678 = vmul.f32 %v670, 0.7978846
          %v679 = vmul.f32 %v671, 0.7978846
          %v680 = vmul.f32 %v672, 0.7978846
          %v681 = vmul.f32 %v673, 0.7978846
          %v682 = vmul.f32 %v674, 0.7978846
          %v683 = vtanh.pop %v675
          %v684 = vtanh.pop %v676
          %v685 = vtanh.pop %v677
          %v686 = vtanh.pop %v678
          %v687 = vtanh.pop %v679
          %v688 = vtanh.pop %v680
          %v689 = vtanh.pop %v681
          %v690 = vtanh.pop %v682
          %v691 = vadd.f32 %v683, 1.0
          %v692 = vadd.f32 %v684, 1.0
          %v693 = vadd.f32 %v685, 1.0
          %v694 = vadd.f32 %v686, 1.0
          %v695 = vadd.f32 %v687, 1.0
          %v696 = vadd.f32 %v688, 1.0
          %v697 = vadd.f32 %v689, 1.0
          %v698 = vadd.f32 %v690, 1.0
          %v699 = vmul.f32 %v635, %v691
          %v700 = vmul.f32 %v636, %v692
          %v701 = vmul.f32 %v637, %v693
          %v702 = vmul.f32 %v638, %v694
          %v703 = vmul.f32 %v639, %v695
          %v704 = vmul.f32 %v640, %v696
          %v705 = vmul.f32 %v641, %v697
          %v706 = vmul.f32 %v642, %v698
          %v707 = vld [vmem:[#allocation6] sm:$0xf]
          %v708 = vld [vmem:[#allocation6 + $0x4] sm:$0xf]
          %v709 = vld [vmem:[#allocation6 + $0x8] sm:$0xf]
          %v710 = vld [vmem:[#allocation6 + $0xc] sm:$0xf]
          %v711 = vld [vmem:[#allocation6 + $0x10] sm:$0xf]
          %v712 = vld [vmem:[#allocation6 + $0x14] sm:$0xf]
          %v713 = vld [vmem:[#allocation6 + $0x18] sm:$0xf]
          %v714 = vld [vmem:[#allocation6 + $0x1c] sm:$0xf]
          %v715 = vld [vmem:[#allocation6 + $0x20] sm:$0xf]
          %v716 = vld [vmem:[#allocation6 + $0x24] sm:$0xf]
          %v717 = vld [vmem:[#allocation6 + $0x28] sm:$0xf]
          %v718 = vld [vmem:[#allocation6 + $0x2c] sm:$0xf]
          %v719 = vld [vmem:[#allocation6 + $0x30] sm:$0xf]
          %v720 = vld [vmem:[#allocation6 + $0x34] sm:$0xf]
          %v721 = vld [vmem:[#allocation6 + $0x38] sm:$0xf]
          %v722 = vld [vmem:[#allocation6 + $0x3c] sm:$0xf]
          %v723 = vld [vmem:[#allocation6 + $0x40] sm:$0xf]
          %v724 = vld [vmem:[#allocation6 + $0x44] sm:$0xf]
          %v725 = vld [vmem:[#allocation6 + $0x48] sm:$0xf]
          %v726 = vld [vmem:[#allocation6 + $0x4c] sm:$0xf]
          %v727 = vld [vmem:[#allocation6 + $0x50] sm:$0xf]
          %v728 = vld [vmem:[#allocation6 + $0x54] sm:$0xf]
          %v729 = vld [vmem:[#allocation6 + $0x58] sm:$0xf]
          %v730 = vld [vmem:[#allocation6 + $0x5c] sm:$0xf]
          %v731 = vld [vmem:[#allocation6 + $0x60] sm:$0xf]
          %v732 = vld [vmem:[#allocation6 + $0x64] sm:$0xf]
          %v733 = vld [vmem:[#allocation6 + $0x68] sm:$0xf]
          %v734 = vld [vmem:[#allocation6 + $0x6c] sm:$0xf]
          %v735 = vld [vmem:[#allocation6 + $0x70] sm:$0xf]
          %v736 = vld [vmem:[#allocation6 + $0x74] sm:$0xf]
          %v737 = vld [vmem:[#allocation6 + $0x78] sm:$0xf]
          %v738 = vld [vmem:[#allocation6 + $0x7c] sm:$0xf]
          %v739 = vld [vmem:[#allocation6 + $0x80] sm:$0xf]
          %v740 = vld [vmem:[#allocation6 + $0x84] sm:$0xf]
          %v741 = vld [vmem:[#allocation6 + $0x88] sm:$0xf]
          %v742 = vld [vmem:[#allocation6 + $0x8c] sm:$0xf]
          %v743 = vld [vmem:[#allocation6 + $0x90] sm:$0xf]
          %v744 = vld [vmem:[#allocation6 + $0x94] sm:$0xf]
          %v745 = vld [vmem:[#allocation6 + $0x98] sm:$0xf]
          %v746 = vld [vmem:[#allocation6 + $0x9c] sm:$0xf]
          %v747 = vld [vmem:[#allocation6 + $0xa0] sm:$0xf]
          %v748 = vld [vmem:[#allocation6 + $0xa4] sm:$0xf]
          %v749 = vld [vmem:[#allocation6 + $0xa8] sm:$0xf]
          %v750 = vld [vmem:[#allocation6 + $0xac] sm:$0xf]
          %v751 = vld [vmem:[#allocation6 + $0xb0] sm:$0xf]
          %v752 = vld [vmem:[#allocation6 + $0xb4] sm:$0xf]
          %v753 = vld [vmem:[#allocation6 + $0xb8] sm:$0xf]
          %v754 = vld [vmem:[#allocation6 + $0xbc] sm:$0xf]
          %v755 = vld [vmem:[#allocation6 + $0xc0] sm:$0xf]
          %v756 = vld [vmem:[#allocation6 + $0xc4] sm:$0xf]
          %v757 = vld [vmem:[#allocation6 + $0xc8] sm:$0xf]
          %v758 = vld [vmem:[#allocation6 + $0xcc] sm:$0xf]
          %v759 = vld [vmem:[#allocation6 + $0xd0] sm:$0xf]
          %v760 = vld [vmem:[#allocation6 + $0xd4] sm:$0xf]
          %v761 = vld [vmem:[#allocation6 + $0xd8] sm:$0xf]
          %v762 = vld [vmem:[#allocation6 + $0xdc] sm:$0xf]
          %v763 = vld [vmem:[#allocation6 + $0xe0] sm:$0xf]
          %v764 = vld [vmem:[#allocation6 + $0xe4] sm:$0xf]
          %v765 = vld [vmem:[#allocation6 + $0xe8] sm:$0xf]
          %v766 = vld [vmem:[#allocation6 + $0xec] sm:$0xf]
          %v767 = vld [vmem:[#allocation6 + $0xf0] sm:$0xf]
          %v768 = vld [vmem:[#allocation6 + $0xf4] sm:$0xf]
          %v769 = vld [vmem:[#allocation6 + $0xf8] sm:$0xf]
          %v770 = vld [vmem:[#allocation6 + $0xfc] sm:$0xf]
          %v771 = vpack.c.bf16 %v703, %v699
          %v772 = vpack.c.bf16 %v704, %v700
          %v773 = vpack.c.bf16 %v705, %v701
          %v774 = vpack.c.bf16 %v706, %v702
          %v775 = vld [vmem:[%s3] sm:$0x1]
          %v776 = vlaneseq
          %v777 = vshrl.u32 %v776, 7
          %v778 = vsub.s32 0, %v777
          %v779 = vrot.slane %v775, %v778
          %v844 = vunpack.c.l.b16 %v707
          %v845 = vunpack.c.l.b16 %v708
          %v846 = vunpack.c.l.b16 %v709
          %v847 = vunpack.c.l.b16 %v710
          %v848 = vunpack.c.l.b16 %v711
          %v849 = vunpack.c.l.b16 %v712
          %v850 = vunpack.c.l.b16 %v713
          %v851 = vunpack.c.l.b16 %v714
          %v852 = vunpack.c.l.b16 %v715
          %v853 = vunpack.c.l.b16 %v716
          %v854 = vunpack.c.l.b16 %v717
          %v855 = vunpack.c.l.b16 %v718
          %v856 = vunpack.c.l.b16 %v719
          %v857 = vunpack.c.l.b16 %v720
          %v858 = vunpack.c.l.b16 %v721
          %v859 = vunpack.c.l.b16 %v722
          %v860 = vunpack.c.l.b16 %v723
          %v861 = vunpack.c.l.b16 %v724
          %v862 = vunpack.c.l.b16 %v725
          %v863 = vunpack.c.l.b16 %v726
          %v864 = vunpack.c.l.b16 %v727
          %v865 = vunpack.c.l.b16 %v728
          %v866 = vunpack.c.l.b16 %v729
          %v867 = vunpack.c.l.b16 %v730
          %v868 = vunpack.c.l.b16 %v731
          %v869 = vunpack.c.l.b16 %v732
          %v870 = vunpack.c.l.b16 %v733
          %v871 = vunpack.c.l.b16 %v734
          %v872 = vunpack.c.l.b16 %v735
          %v873 = vunpack.c.l.b16 %v736
          %v874 = vunpack.c.l.b16 %v737
          %v875 = vunpack.c.l.b16 %v738
          %v876 = vunpack.c.l.b16 %v739
          %v877 = vunpack.c.l.b16 %v740
          %v878 = vunpack.c.l.b16 %v741
          %v879 = vunpack.c.l.b16 %v742
          %v880 = vunpack.c.l.b16 %v743
          %v881 = vunpack.c.l.b16 %v744
          %v882 = vunpack.c.l.b16 %v745
          %v883 = vunpack.c.l.b16 %v746
          %v884 = vunpack.c.l.b16 %v747
          %v885 = vunpack.c.l.b16 %v748
          %v886 = vunpack.c.l.b16 %v749
          %v887 = vunpack.c.l.b16 %v750
          %v888 = vunpack.c.l.b16 %v751
          %v889 = vunpack.c.l.b16 %v752
          %v890 = vunpack.c.l.b16 %v753
          %v891 = vunpack.c.l.b16 %v754
          %v892 = vunpack.c.l.b16 %v755
          %v893 = vunpack.c.l.b16 %v756
          %v894 = vunpack.c.l.b16 %v757
          %v895 = vunpack.c.l.b16 %v758
          %v896 = vunpack.c.l.b16 %v759
          %v897 = vunpack.c.l.b16 %v760
          %v898 = vunpack.c.l.b16 %v761
          %v899 = vunpack.c.l.b16 %v762
          %v900 = vunpack.c.l.b16 %v763
          %v901 = vunpack.c.l.b16 %v764
          %v902 = vunpack.c.l.b16 %v765
          %v903 = vunpack.c.l.b16 %v766
          %v904 = vunpack.c.l.b16 %v767
          %v905 = vunpack.c.l.b16 %v768
          %v906 = vunpack.c.l.b16 %v769
          %v907 = vunpack.c.l.b16 %v770
          %v908 = vpack.c.b16 %v845, %v844
          %v909 = vpack.c.b16 %v847, %v846
          %v910 = vpack.c.b16 %v849, %v848
          %v911 = vpack.c.b16 %v851, %v850
          %v912 = vpack.c.b16 %v853, %v852
          %v913 = vpack.c.b16 %v855, %v854
          %v914 = vpack.c.b16 %v857, %v856
          %v915 = vpack.c.b16 %v859, %v858
          %v916 = vpack.c.b16 %v861, %v860
          %v917 = vpack.c.b16 %v863, %v862
          %v918 = vpack.c.b16 %v865, %v864
          %v919 = vpack.c.b16 %v867, %v866
          %v920 = vpack.c.b16 %v869, %v868
          %v921 = vpack.c.b16 %v871, %v870
          %v922 = vpack.c.b16 %v873, %v872
          %v923 = vpack.c.b16 %v875, %v874
          %v924 = vpack.c.b16 %v877, %v876
          %v925 = vpack.c.b16 %v879, %v878
          %v926 = vpack.c.b16 %v881, %v880
          %v927 = vpack.c.b16 %v883, %v882
          %v928 = vpack.c.b16 %v885, %v884
          %v929 = vpack.c.b16 %v887, %v886
          %v930 = vpack.c.b16 %v889, %v888
          %v931 = vpack.c.b16 %v891, %v890
          %v932 = vpack.c.b16 %v893, %v892
          %v933 = vpack.c.b16 %v895, %v894
          %v934 = vpack.c.b16 %v897, %v896
          %v935 = vpack.c.b16 %v899, %v898
          %v936 = vpack.c.b16 %v901, %v900
          %v937 = vpack.c.b16 %v903, %v902
          %v938 = vpack.c.b16 %v905, %v904
          %v939 = vpack.c.b16 %v907, %v906
          %972 = vmatprep.subr.bf16.mxu0 0
          %973 = vmatpush1.bf16.msra.mxu0 %v908
          %974 = vmatprep.subr.bf16.mxu0 0
          %975 = vmatpush1.bf16.msra.mxu0 %v909
          %976 = vmatprep.subr.bf16.mxu0 0
          %977 = vmatpush1.bf16.msra.mxu0 %v910
          %978 = vmatprep.subr.bf16.mxu0 0
          %979 = vmatpush1.bf16.msra.mxu0 %v911
          %980 = vmatprep.subr.bf16.mxu0 0
          %981 = vmatpush1.bf16.msra.mxu0 %v912
          %982 = vmatprep.subr.bf16.mxu0 0
          %983 = vmatpush1.bf16.msra.mxu0 %v913
          %984 = vmatprep.subr.bf16.mxu0 0
          %985 = vmatpush1.bf16.msra.mxu0 %v914
          %986 = vmatprep.subr.bf16.mxu0 0
          %987 = vmatpush1.bf16.msra.mxu0 %v915
          %988 = vmatprep.subr.bf16.mxu0 0
          %989 = vmatpush1.bf16.msra.mxu0 %v916
          %990 = vmatprep.subr.bf16.mxu0 0
          %991 = vmatpush1.bf16.msra.mxu0 %v917
          %992 = vmatprep.subr.bf16.mxu0 0
          %993 = vmatpush1.bf16.msra.mxu0 %v918
          %994 = vmatprep.subr.bf16.mxu0 0
          %995 = vmatpush1.bf16.msra.mxu0 %v919
          %996 = vmatprep.subr.bf16.mxu0 0
          %997 = vmatpush1.bf16.msra.mxu0 %v920
          %998 = vmatprep.subr.bf16.mxu0 0
          %999 = vmatpush1.bf16.msra.mxu0 %v921
          %1000 = vmatprep.subr.bf16.mxu0 0
          %1001 = vmatpush1.bf16.msra.mxu0 %v922
          %1002 = vmatprep.subr.bf16.mxu0 0
          %1003 = vmatpush1.bf16.msra.mxu0 %v923
          %1004 = vmatprep.mubr.bf16.mxu0 %v772
          %1005 = vmatmul.mubr.bf16.gmra.mrb[0].mxu0 %v771
          %v1006 = vpop.f32.mrb[0].mxu0
          %v1007 = vadd.f32 %v779, %v1006
          %v1008 = vpop.f32.mrb[0].mxu0
          %v1009 = vpop.f32.mrb[0].mxu0
          %v1010 = vadd.f32 %v779, %v1009
          %v1011 = vpop.f32.mrb[0].mxu0
          %1012 = vdwg.mxu0
          %1013 = vmatprep.subr.bf16.mxu0 0
          %1014 = vmatpush1.bf16.msra.mxu0 %v924
          %1015 = vmatprep.subr.bf16.mxu0 0
          %1016 = vmatpush1.bf16.msra.mxu0 %v925
          %1017 = vmatprep.subr.bf16.mxu0 0
          %1018 = vmatpush1.bf16.msra.mxu0 %v926
          %1019 = vmatprep.subr.bf16.mxu0 0
          %1020 = vmatpush1.bf16.msra.mxu0 %v927
          %1021 = vmatprep.subr.bf16.mxu0 0
          %1022 = vmatpush1.bf16.msra.mxu0 %v928
          %1023 = vmatprep.subr.bf16.mxu0 0
          %1024 = vmatpush1.bf16.msra.mxu0 %v929
          %1025 = vmatprep.subr.bf16.mxu0 0
          %1026 = vmatpush1.bf16.msra.mxu0 %v930
          %1027 = vmatprep.subr.bf16.mxu0 0
          %1028 = vmatpush1.bf16.msra.mxu0 %v931
          %1029 = vmatprep.subr.bf16.mxu0 0
          %1030 = vmatpush1.bf16.msra.mxu0 %v932
          %1031 = vmatprep.subr.bf16.mxu0 0
          %1032 = vmatpush1.bf16.msra.mxu0 %v933
          %1033 = vmatprep.subr.bf16.mxu0 0
          %1034 = vmatpush1.bf16.msra.mxu0 %v934
          %1035 = vmatprep.subr.bf16.mxu0 0
          %1036 = vmatpush1.bf16.msra.mxu0 %v935
          %1037 = vmatprep.subr.bf16.mxu0 0
          %1038 = vmatpush1.bf16.msra.mxu0 %v936
          %1039 = vmatprep.subr.bf16.mxu0 0
          %1040 = vmatpush1.bf16.msra.mxu0 %v937
          %1041 = vmatprep.subr.bf16.mxu0 0
          %1042 = vmatpush1.bf16.msra.mxu0 %v938
          %1043 = vmatprep.subr.bf16.mxu0 0
          %1044 = vmatpush1.bf16.msra.mxu0 %v939
          %1045 = vmatprep.mubr.bf16.mxu0 %v774
          %1046 = vmatmul.mubr.bf16.gmra.mrb[0].mxu0 %v773
          %v1047 = vpop.f32.mrb[0].mxu0
          %v1048 = vadd.f32 %v1007, %v1047
          %v1049 = vpop.f32.mrb[0].mxu0
          %v1050 = vpop.f32.mrb[0].mxu0
          %v1051 = vadd.f32 %v1010, %v1050
          %v1052 = vpop.f32.mrb[0].mxu0
          %1053 = vdwg.mxu0
          %v1054 = vld [vmem:[%s3 + $0x1] sm:$0x1]
          %v1055 = vld [vmem:[%s3 + $0x2] sm:$0x1]
          %1056 = vadd.xlane.f32.xlu0 %v1048
          %v1057 = vpop.xlane.xlu0 %1056
          %1058 = vadd.xlane.f32.xlu0 %v1051
          %v1059 = vpop.xlane.xlu0 %1058
          %v1060 = vrcp.pop 128.0
          %v1061 = vmul.f32 %v1057, %v1060
          %v1062 = vmul.f32 %v1059, %v1060
          %v1063 = vsub.f32 %v1048, %v1061
          %v1064 = vsub.f32 %v1051, %v1062
          %v1065 = vmul.f32 %v1063, %v1063
          %v1066 = vmul.f32 %v1064, %v1064
          %1067 = vadd.xlane.f32.xlu0 %v1065
          %v1068 = vpop.xlane.xlu0 %1067
          %1069 = vadd.xlane.f32.xlu0 %v1066
          %v1070 = vpop.xlane.xlu0 %1069
          %v1071 = vmul.f32 %v1068, %v1060
          %v1072 = vmul.f32 %v1070, %v1060
          %v1073 = vadd.f32 %v1071, 1e-12
          %v1074 = vadd.f32 %v1072, 1e-12
          %v1075 = vrsqrt.pop %v1073
          %v1076 = vrsqrt.pop %v1074
          %v1077 = vmul.f32 %v1063, %v1075
          %v1078 = vmul.f32 %v1064, %v1076
          %v1079 = vlaneseq
          %v1080 = vshrl.u32 %v1079, 7
          %v1081 = vsub.s32 0, %v1080
          %v1082 = vrot.slane %v1054, %v1081
          %v1083 = vmul.f32 %v1077, %v1082
          %v1084 = vmul.f32 %v1078, %v1082
          %v1085 = vlaneseq
          %v1086 = vshrl.u32 %v1085, 7
          %v1087 = vsub.s32 0, %v1086
          %v1088 = vrot.slane %v1055, %v1087
          %v1089 = vadd.f32 %v1083, %v1088
          %v1090 = vadd.f32 %v1084, %v1088
          %1091 = vst [vmem:[#allocation2] sm:$0xff] %v1089
          %1092 = vst [vmem:[#allocation2 + $0x8] sm:$0xff] %v1090
        $region108: #{tpu_custom_call.1} parent=67 // pred_fallthru
          _
        %v1093 = vld [vmem:[#allocation2] sm:$0xff]
        %v1094 = vld [vmem:[#allocation2 + $0x8] sm:$0xff]
        %v1095 = vld [vmem:[%s522] sm:$0xff]
        %v1096 = vld [vmem:[%s522 + $0x8] sm:$0xf]
        %v1097 = vld [vmem:[%s522 + $0xc] sm:$0xff]
        %v1098 = vld [vmem:[%s522 + $0x14] sm:$0xf]
        %v1099 = vld [vmem:[%s522 + $0x18] sm:$0xff]
        %v1100 = vld [vmem:[%s522 + $0x20] sm:$0xf]
        %v1101 = vld [vmem:[%s522 + $0x24] sm:$0xff]
        %v1102 = vld [vmem:[%s522 + $0x2c] sm:$0xf]
        %v1103 = vld [vmem:[%s522 + $0x30] sm:$0xff]
        %v1104 = vld [vmem:[%s522 + $0x38] sm:$0xf]
        %v1105 = vld [vmem:[%s522 + $0x3c] sm:$0xff]
        %v1106 = vld [vmem:[%s522 + $0x44] sm:$0xf]
        %v1107 = vld [vmem:[%s522 + $0x48] sm:$0xff]
        %v1108 = vld [vmem:[%s522 + $0x50] sm:$0xf]
        %v1109 = vld [vmem:[%s522 + $0x54] sm:$0xff]
        %v1110 = vld [vmem:[%s522 + $0x5c] sm:$0xf]
        %v1111 = vld [vmem:[%s522 + $0x60] sm:$0xff]
        %v1112 = vld [vmem:[%s522 + $0x68] sm:$0xf]
        %v1113 = vld [vmem:[%s522 + $0x6c] sm:$0xff]
        %v1114 = vld [vmem:[%s522 + $0x74] sm:$0xf]
        %v1115 = vld [vmem:[%s522 + $0x78] sm:$0xff]
        %v1116 = vld [vmem:[%s522 + $0x80] sm:$0xf]
        %v1117 = vld [vmem:[%s522 + $0x84] sm:$0xff]
        %v1118 = vld [vmem:[%s522 + $0x8c] sm:$0xf]
        %v1119 = vld [vmem:[%s522 + $0x90] sm:$0xff]
        %v1120 = vld [vmem:[%s522 + $0x98] sm:$0xf]
        %v1121 = vld [vmem:[%s522 + $0x9c] sm:$0xff]
        %v1122 = vld [vmem:[%s522 + $0xa4] sm:$0xf]
        %v1123 = vld [vmem:[%s522 + $0xa8] sm:$0xff]
        %v1124 = vld [vmem:[%s522 + $0xb0] sm:$0xf]
        %v1125 = vld [vmem:[%s522 + $0xb4] sm:$0xff]
        %v1126 = vld [vmem:[%s522 + $0xbc] sm:$0xf]
        %v1127 = vpack.c.bf16 %v1094, %v1093
        %s1128 = scalar_lea.vmem %s558, 1 [#allocation12]
        %v1129 = vld [vmem:[%s1128] ss:$8 sm:$0x7]
        %v1131 = vlaneseq
        %v1132 = vshrl.u32 %v1131, 7
        %v1133 = vsub.s32 0, %v1132
        %v1134 = vrot.slane %v1129, %v1133
        %v1135 = vlaneseq
        %v1136 = vshrl.u32 %v1135, 7
        %v1137 = vsub.s32 1, %v1136
        %v1138 = vrot.slane %v1129, %v1137
        %v1139 = vlaneseq
        %v1140 = vshrl.u32 %v1139, 7
        %v1141 = vsub.s32 2, %v1140
        %v1142 = vrot.slane %v1129, %v1141
        %v1178 = vunpack.c.l.b16 %v1095
        %v1179 = vunpack.c.h.b16 %v1095
        %v1180 = vunpack.c.l.b16 %v1096
        %v1181 = vunpack.c.l.b16 %v1097
        %v1182 = vunpack.c.h.b16 %v1097
        %v1183 = vunpack.c.l.b16 %v1098
        %v1184 = vunpack.c.l.b16 %v1099
        %v1185 = vunpack.c.h.b16 %v1099
        %v1186 = vunpack.c.l.b16 %v1100
        %v1187 = vunpack.c.l.b16 %v1101
        %v1188 = vunpack.c.h.b16 %v1101
        %v1189 = vunpack.c.l.b16 %v1102
        %v1190 = vunpack.c.l.b16 %v1103
        %v1191 = vunpack.c.h.b16 %v1103
        %v1192 = vunpack.c.l.b16 %v1104
        %v1193 = vunpack.c.l.b16 %v1105
        %v1194 = vunpack.c.h.b16 %v1105
        %v1195 = vunpack.c.l.b16 %v1106
        %v1196 = vunpack.c.l.b16 %v1107
        %v1197 = vunpack.c.h.b16 %v1107
        %v1198 = vunpack.c.l.b16 %v1108
        %v1199 = vunpack.c.l.b16 %v1109
        %v1200 = vunpack.c.h.b16 %v1109
        %v1201 = vunpack.c.l.b16 %v1110
        %v1202 = vunpack.c.l.b16 %v1111
        %v1203 = vunpack.c.h.b16 %v1111
        %v1204 = vunpack.c.l.b16 %v1112
        %v1205 = vunpack.c.l.b16 %v1113
        %v1206 = vunpack.c.h.b16 %v1113
        %v1207 = vunpack.c.l.b16 %v1114
        %v1208 = vunpack.c.l.b16 %v1115
        %v1209 = vunpack.c.h.b16 %v1115
        %v1210 = vunpack.c.l.b16 %v1116
        %v1211 = vunpack.c.l.b16 %v1117
        %v1212 = vunpack.c.h.b16 %v1117
        %v1213 = vunpack.c.l.b16 %v1118
        %v1214 = vunpack.c.l.b16 %v1119
        %v1215 = vunpack.c.h.b16 %v1119
        %v1216 = vunpack.c.l.b16 %v1120
        %v1217 = vunpack.c.l.b16 %v1121
        %v1218 = vunpack.c.h.b16 %v1121
        %v1219 = vunpack.c.l.b16 %v1122
        %v1220 = vunpack.c.l.b16 %v1123
        %v1221 = vunpack.c.h.b16 %v1123
        %v1222 = vunpack.c.l.b16 %v1124
        %v1223 = vunpack.c.l.b16 %v1125
        %v1224 = vunpack.c.h.b16 %v1125
        %v1225 = vunpack.c.l.b16 %v1126
        %v1226 = vpack.c.b16 %v1181, %v1178
        %v1227 = vpack.c.b16 %v1182, %v1179
        %v1228 = vpack.c.b16 %v1183, %v1180
        %v1229 = vpack.c.b16 %v1187, %v1184
        %v1230 = vpack.c.b16 %v1188, %v1185
        %v1231 = vpack.c.b16 %v1189, %v1186
        %v1232 = vpack.c.b16 %v1193, %v1190
        %v1233 = vpack.c.b16 %v1194, %v1191
        %v1234 = vpack.c.b16 %v1195, %v1192
        %v1235 = vpack.c.b16 %v1199, %v1196
        %v1236 = vpack.c.b16 %v1200, %v1197
        %v1237 = vpack.c.b16 %v1201, %v1198
        %v1238 = vpack.c.b16 %v1205, %v1202
        %v1239 = vpack.c.b16 %v1206, %v1203
        %v1240 = vpack.c.b16 %v1207, %v1204
        %v1241 = vpack.c.b16 %v1211, %v1208
        %v1242 = vpack.c.b16 %v1212, %v1209
        %v1243 = vpack.c.b16 %v1213, %v1210
        %v1244 = vpack.c.b16 %v1217, %v1214
        %v1245 = vpack.c.b16 %v1218, %v1215
        %v1246 = vpack.c.b16 %v1219, %v1216
        %v1247 = vpack.c.b16 %v1223, %v1220
        %v1248 = vpack.c.b16 %v1224, %v1221
        %v1249 = vpack.c.b16 %v1225, %v1222
        %1274 = vmatprep.subr.bf16.mxu0 %v1227
        %1275 = vmatpush1.bf16.msra.mxu0 %v1226
        %1276 = vmatprep.subr.bf16.mxu0 %v1230
        %1277 = vmatpush1.bf16.msra.mxu0 %v1229
        %1278 = vmatprep.subr.bf16.mxu0 %v1233
        %1279 = vmatpush1.bf16.msra.mxu0 %v1232
        %1280 = vmatprep.subr.bf16.mxu0 %v1236
        %1281 = vmatpush1.bf16.msra.mxu0 %v1235
        %1282 = vmatprep.subr.bf16.mxu0 %v1239
        %1283 = vmatpush1.bf16.msra.mxu0 %v1238
        %1284 = vmatprep.subr.bf16.mxu0 %v1242
        %1285 = vmatpush1.bf16.msra.mxu0 %v1241
        %1286 = vmatprep.subr.bf16.mxu0 %v1245
        %1287 = vmatpush1.bf16.msra.mxu0 %v1244
        %1288 = vmatprep.subr.bf16.mxu0 %v1248
        %1289 = vmatpush1.bf16.msra.mxu0 %v1247
        %1290 = vmatprep.subr.bf16.mxu0 0
        %1291 = vmatpush1.bf16.msra.mxu0 0
        %1292 = vmatprep.subr.bf16.mxu0 0
        %1293 = vmatpush1.bf16.msra.mxu0 0
        %1294 = vmatprep.subr.bf16.mxu0 0
        %1295 = vmatpush1.bf16.msra.mxu0 0
        %1296 = vmatprep.subr.bf16.mxu0 0
        %1297 = vmatpush1.bf16.msra.mxu0 0
        %1298 = vmatprep.subr.bf16.mxu0 0
        %1299 = vmatpush1.bf16.msra.mxu0 0
        %1300 = vmatprep.subr.bf16.mxu0 0
        %1301 = vmatpush1.bf16.msra.mxu0 0
        %1302 = vmatprep.subr.bf16.mxu0 0
        %1303 = vmatpush1.bf16.msra.mxu0 0
        %1304 = vmatprep.subr.bf16.mxu0 0
        %1305 = vmatpush1.bf16.msra.mxu0 0
        %1306 = vmatprep.mubr.bf16.mxu0 0
        %1307 = vmatmul.mubr.bf16.gmra.mrb[0].mxu0 %v1127
        %v1308 = vpop.f32.mrb[0].mxu0
        %v1309 = vadd.f32 %v1134, %v1308
        %v1310 = vpop.f32.mrb[0].mxu0
        %v1311 = vadd.f32 %v1138, %v1310
        %v1312 = vpop.f32.mrb[0].mxu0
        %v1313 = vadd.f32 %v1134, %v1312
        %v1314 = vpop.f32.mrb[0].mxu0
        %v1315 = vadd.f32 %v1138, %v1314
        %1316 = vdwg.mxu0
        %1317 = vmatprep.subr.bf16.mxu0 0
        %1318 = vmatpush1.bf16.msra.mxu0 %v1228
        %1319 = vmatprep.subr.bf16.mxu0 0
        %1320 = vmatpush1.bf16.msra.mxu0 %v1231
        %1321 = vmatprep.subr.bf16.mxu0 0
        %1322 = vmatpush1.bf16.msra.mxu0 %v1234
        %1323 = vmatprep.subr.bf16.mxu0 0
        %1324 = vmatpush1.bf16.msra.mxu0 %v1237
        %1325 = vmatprep.subr.bf16.mxu0 0
        %1326 = vmatpush1.bf16.msra.mxu0 %v1240
        %1327 = vmatprep.subr.bf16.mxu0 0
        %1328 = vmatpush1.bf16.msra.mxu0 %v1243
        %1329 = vmatprep.subr.bf16.mxu0 0
        %1330 = vmatpush1.bf16.msra.mxu0 %v1246
        %1331 = vmatprep.subr.bf16.mxu0 0
        %1332 = vmatpush1.bf16.msra.mxu0 %v1249
        %1333 = vmatprep.subr.bf16.mxu0 0
        %1334 = vmatpush1.bf16.msra.mxu0 0
        %1335 = vmatprep.subr.bf16.mxu0 0
        %1336 = vmatpush1.bf16.msra.mxu0 0
        %1337 = vmatprep.subr.bf16.mxu0 0
        %1338 = vmatpush1.bf16.msra.mxu0 0
        %1339 = vmatprep.subr.bf16.mxu0 0
        %1340 = vmatpush1.bf16.msra.mxu0 0
        %1341 = vmatprep.subr.bf16.mxu0 0
        %1342 = vmatpush1.bf16.msra.mxu0 0
        %1343 = vmatprep.subr.bf16.mxu0 0
        %1344 = vmatpush1.bf16.msra.mxu0 0
        %1345 = vmatprep.subr.bf16.mxu0 0
        %1346 = vmatpush1.bf16.msra.mxu0 0
        %1347 = vmatprep.subr.bf16.mxu0 0
        %1348 = vmatpush1.bf16.msra.mxu0 0
        %1349 = vmatprep.mubr.bf16.mxu0 0
        %1350 = vmatmul.mubr.bf16.gmra.mrb[0].mxu0 %v1127
        %v1351 = vpop.f32.mrb[0].mxu0
        %v1352 = vadd.f32 %v1142, %v1351
        %v1353 = vpop.f32.mrb[0].mxu0
        %v1354 = vpop.f32.mrb[0].mxu0
        %v1355 = vadd.f32 %v1142, %v1354
        %v1356 = vpop.f32.mrb[0].mxu0
        %1357 = vdwg.mxu0
        %v1358 = vld [vmem:[%s1] sm:$0x1]
        %v1359 = vld [vmem:[%s1 + $0x1] sm:$0x1]
        %v1360 = vpack.c.bf16 %v1309, %v1309
        %v1361 = vpack.c.bf16 %v1313, %v1313
        %v1362 = vpack.c.bf16 %v1311, %v1311
        %v1363 = vpack.c.bf16 %v1315, %v1315
        %vm1364 = vcmask 261120
        %v1366 = vsel %vm1364, %v1360, 0
        %v1369 = vsel %vm1364, %v1362, 0
        %1371 = vmatprep.subr.bf16.mxu0 0
        %1372 = vmatpush1.bf16.xpose.msra.mxu0 %v1369
        %1373 = vmatprep.subr.bf16.mxu0 0
        %1374 = vmatpush1.bf16.xpose.msra.mxu0 0
        %1375 = vmatprep.subr.bf16.mxu0 0
        %1376 = vmatpush1.bf16.xpose.msra.mxu0 0
        %1377 = vmatprep.subr.bf16.mxu0 0
        %1378 = vmatpush1.bf16.xpose.msra.mxu0 0
        %1379 = vmatprep.subr.bf16.mxu0 0
        %1380 = vmatpush1.bf16.xpose.msra.mxu0 0
        %1381 = vmatprep.subr.bf16.mxu0 0
        %1382 = vmatpush1.bf16.xpose.msra.mxu0 0
        %1383 = vmatprep.subr.bf16.mxu0 0
        %1384 = vmatpush1.bf16.xpose.msra.mxu0 0
        %1385 = vmatprep.subr.bf16.mxu0 0
        %1386 = vmatpush1.bf16.xpose.msra.mxu0 0
        %1387 = vmatprep.subr.bf16.mxu0 0
        %1388 = vmatpush1.bf16.xpose.msra.mxu0 0
        %1389 = vmatprep.subr.bf16.mxu0 0
        %1390 = vmatpush1.bf16.xpose.msra.mxu0 0
        %1391 = vmatprep.subr.bf16.mxu0 0
        %1392 = vmatpush1.bf16.xpose.msra.mxu0 0
        %1393 = vmatprep.subr.bf16.mxu0 0
        %1394 = vmatpush1.bf16.xpose.msra.mxu0 0
        %1395 = vmatprep.subr.bf16.mxu0 0
        %1396 = vmatpush1.bf16.xpose.msra.mxu0 0
        %1397 = vmatprep.subr.bf16.mxu0 0
        %1398 = vmatpush1.bf16.xpose.msra.mxu0 0
        %1399 = vmatprep.subr.bf16.mxu0 0
        %1400 = vmatpush1.bf16.xpose.msra.mxu0 0
        %1401 = vmatprep.subr.bf16.mxu0 0
        %1402 = vmatpush1.bf16.xpose.msra.mxu0 0
        %1403 = vmatprep.mubr.bf16.mxu0 0
        %1404 = vmatmul.mubr.bf16.gmra.mrb[0].mxu0 %v1366
        %v1405 = vpop.f32.mrb[0].mxu0
        %v1406 = vadd.f32 0.0, %v1405
        %v1407 = vpop.f32.mrb[0].mxu0
        %v1408 = vpop.f32.mrb[0].mxu0
        %v1409 = vpop.f32.mrb[0].mxu0
        %1410 = vdwg.mxu0
        %v1412 = vsel %vm1364, %v1361, 0
        %v1415 = vsel %vm1364, %v1363, 0
        %1417 = vmatprep.subr.bf16.mxu0 0
        %1418 = vmatpush1.bf16.xpose.msra.mxu0 %v1415
        %1419 = vmatprep.subr.bf16.mxu0 0
        %1420 = vmatpush1.bf16.xpose.msra.mxu0 0
        %1421 = vmatprep.subr.bf16.mxu0 0
        %1422 = vmatpush1.bf16.xpose.msra.mxu0 0
        %1423 = vmatprep.subr.bf16.mxu0 0
        %1424 = vmatpush1.bf16.xpose.msra.mxu0 0
        %1425 = vmatprep.subr.bf16.mxu0 0
        %1426 = vmatpush1.bf16.xpose.msra.mxu0 0
        %1427 = vmatprep.subr.bf16.mxu0 0
        %1428 = vmatpush1.bf16.xpose.msra.mxu0 0
        %1429 = vmatprep.subr.bf16.mxu0 0
        %1430 = vmatpush1.bf16.xpose.msra.mxu0 0
        %1431 = vmatprep.subr.bf16.mxu0 0
        %1432 = vmatpush1.bf16.xpose.msra.mxu0 0
        %1433 = vmatprep.subr.bf16.mxu0 0
        %1434 = vmatpush1.bf16.xpose.msra.mxu0 0
        %1435 = vmatprep.subr.bf16.mxu0 0
        %1436 = vmatpush1.bf16.xpose.msra.mxu0 0
        %1437 = vmatprep.subr.bf16.mxu0 0
        %1438 = vmatpush1.bf16.xpose.msra.mxu0 0
        %1439 = vmatprep.subr.bf16.mxu0 0
        %1440 = vmatpush1.bf16.xpose.msra.mxu0 0
        %1441 = vmatprep.subr.bf16.mxu0 0
        %1442 = vmatpush1.bf16.xpose.msra.mxu0 0
        %1443 = vmatprep.subr.bf16.mxu0 0
        %1444 = vmatpush1.bf16.xpose.msra.mxu0 0
        %1445 = vmatprep.subr.bf16.mxu0 0
        %1446 = vmatpush1.bf16.xpose.msra.mxu0 0
        %1447 = vmatprep.subr.bf16.mxu0 0
        %1448 = vmatpush1.bf16.xpose.msra.mxu0 0
        %1449 = vmatprep.mubr.bf16.mxu0 0
        %1450 = vmatmul.mubr.bf16.gmra.mrb[0].mxu0 %v1412
        %v1451 = vpop.f32.mrb[0].mxu0
        %v1452 = vadd.f32 0.0, %v1451
        %v1453 = vpop.f32.mrb[0].mxu0
        %v1454 = vpop.f32.mrb[0].mxu0
        %v1455 = vpop.f32.mrb[0].mxu0
        %1456 = vdwg.mxu0
        %v1457 = vmul.f32 %v1406, 0.17677669
        %v1458 = vmul.f32 %v1452, 0.17677669
        %v1461 = vlaneseq
        %v1462 = vshrl.u32 %v1461, 7
        %v1463 = vsub.s32 0, %v1462
        %v1464 = vrot.slane %v1358, %v1463
        %v1465 = vlaneseq
        %v1466 = vshrl.u32 %v1465, 7
        %v1467 = vsub.s32 0, %v1466
        %v1468 = vrot.slane %v1359, %v1467
        %v1471 = vadd.f32 %v1457, %v1464
        %v1472 = vadd.f32 %v1458, %v1468
        %vm1473 = vcmask 64512
        %v1474 = vsel %vm1473, %v1471, -inf
        %1475 = vmax.xlane.f32.xlu0 %v1474
        %v1476 = vpop.xlane.xlu0 %1475
        %v1477 = vsel %vm1473, %v1472, -inf
        %1478 = vmax.xlane.f32.xlu0 %v1477
        %v1479 = vpop.xlane.xlu0 %1478
        %v1480 = vsub.f32 %v1471, %v1476
        %v1481 = vsub.f32 %v1472, %v1479
        %v1482 = vmul.f32 %v1480, 1.442695
        %v1483 = vpow.pop %v1482
        %v1484 = vmul.f32 %v1481, 1.442695
        %v1485 = vpow.pop %v1484
        %v1486 = vsel %vm1473, %v1483, 0.0
        %1487 = vadd.xlane.f32.xlu0 %v1486
        %v1488 = vpop.xlane.xlu0 %1487
        %v1489 = vsel %vm1473, %v1485, 0.0
        %1490 = vadd.xlane.f32.xlu0 %v1489
        %v1491 = vpop.xlane.xlu0 %1490
        %v1492 = vrcp.pop %v1488
        %v1493 = vrcp.pop %v1491
        %v1494 = vmul.f32 %v1483, %v1492
        %v1495 = vmul.f32 %v1485, %v1493
        %v1496 = vpack.c.bf16 %v1494, %v1494
        %v1497 = vpack.c.bf16 %v1495, %v1495
        %v1498 = vpack.c.bf16 %v1352, %v1352
        %v1499 = vpack.c.bf16 %v1355, %v1355
        %v1501 = vsel %vm1473, %v1496, 0
        %vm1503 = vcmask 1043456
        %v1505 = vsel %vm1503, %v1498, 0
        %1507 = vmatprep.subr.bf16.mxu0 0
        %1508 = vmatpush1.bf16.msra.mxu0 %v1505
        %1509 = vmatprep.subr.bf16.mxu0 0
        %1510 = vmatpush1.bf16.msra.mxu0 0
        %1511 = vmatprep.subr.bf16.mxu0 0
        %1512 = vmatpush1.bf16.msra.mxu0 0
        %1513 = vmatprep.subr.bf16.mxu0 0
        %1514 = vmatpush1.bf16.msra.mxu0 0
        %1515 = vmatprep.subr.bf16.mxu0 0
        %1516 = vmatpush1.bf16.msra.mxu0 0
        %1517 = vmatprep.subr.bf16.mxu0 0
        %1518 = vmatpush1.bf16.msra.mxu0 0
        %1519 = vmatprep.subr.bf16.mxu0 0
        %1520 = vmatpush1.bf16.msra.mxu0 0
        %1521 = vmatprep.subr.bf16.mxu0 0
        %1522 = vmatpush1.bf16.msra.mxu0 0
        %1523 = vmatprep.subr.bf16.mxu0 0
        %1524 = vmatpush1.bf16.msra.mxu0 0
        %1525 = vmatprep.subr.bf16.mxu0 0
        %1526 = vmatpush1.bf16.msra.mxu0 0
        %1527 = vmatprep.subr.bf16.mxu0 0
        %1528 = vmatpush1.bf16.msra.mxu0 0
        %1529 = vmatprep.subr.bf16.mxu0 0
        %1530 = vmatpush1.bf16.msra.mxu0 0
        %1531 = vmatprep.subr.bf16.mxu0 0
        %1532 = vmatpush1.bf16.msra.mxu0 0
        %1533 = vmatprep.subr.bf16.mxu0 0
        %1534 = vmatpush1.bf16.msra.mxu0 0
        %1535 = vmatprep.subr.bf16.mxu0 0
        %1536 = vmatpush1.bf16.msra.mxu0 0
        %1537 = vmatprep.subr.bf16.mxu0 0
        %1538 = vmatpush1.bf16.msra.mxu0 0
        %1539 = vmatprep.mubr.bf16.mxu0 0
        %1540 = vmatmul.mubr.bf16.gmra.mrb[0].mxu0 %v1501
        %v1541 = vpop.f32.mrb[0].mxu0
        %v1542 = vadd.f32 0.0, %v1541
        %v1543 = vpop.f32.mrb[0].mxu0
        %v1544 = vpop.f32.mrb[0].mxu0
        %v1545 = vpop.f32.mrb[0].mxu0
        %1546 = vdwg.mxu0
        %v1548 = vsel %vm1473, %v1497, 0
        %v1551 = vsel %vm1503, %v1499, 0
        %1553 = vmatprep.subr.bf16.mxu0 0
        %1554 = vmatpush1.bf16.msra.mxu0 %v1551
        %1555 = vmatprep.subr.bf16.mxu0 0
        %1556 = vmatpush1.bf16.msra.mxu0 0
        %1557 = vmatprep.subr.bf16.mxu0 0
        %1558 = vmatpush1.bf16.msra.mxu0 0
        %1559 = vmatprep.subr.bf16.mxu0 0
        %1560 = vmatpush1.bf16.msra.mxu0 0
        %1561 = vmatprep.subr.bf16.mxu0 0
        %1562 = vmatpush1.bf16.msra.mxu0 0
        %1563 = vmatprep.subr.bf16.mxu0 0
        %1564 = vmatpush1.bf16.msra.mxu0 0
        %1565 = vmatprep.subr.bf16.mxu0 0
        %1566 = vmatpush1.bf16.msra.mxu0 0
        %1567 = vmatprep.subr.bf16.mxu0 0
        %1568 = vmatpush1.bf16.msra.mxu0 0
        %1569 = vmatprep.subr.bf16.mxu0 0
        %1570 = vmatpush1.bf16.msra.mxu0 0
        %1571 = vmatprep.subr.bf16.mxu0 0
        %1572 = vmatpush1.bf16.msra.mxu0 0
        %1573 = vmatprep.subr.bf16.mxu0 0
        %1574 = vmatpush1.bf16.msra.mxu0 0
        %1575 = vmatprep.subr.bf16.mxu0 0
        %1576 = vmatpush1.bf16.msra.mxu0 0
        %1577 = vmatprep.subr.bf16.mxu0 0
        %1578 = vmatpush1.bf16.msra.mxu0 0
        %1579 = vmatprep.subr.bf16.mxu0 0
        %1580 = vmatpush1.bf16.msra.mxu0 0
        %1581 = vmatprep.subr.bf16.mxu0 0
        %1582 = vmatpush1.bf16.msra.mxu0 0
        %1583 = vmatprep.subr.bf16.mxu0 0
        %1584 = vmatpush1.bf16.msra.mxu0 0
        %1585 = vmatprep.mubr.bf16.mxu0 0
        %1586 = vmatmul.mubr.bf16.gmra.mrb[0].mxu0 %v1548
        %v1587 = vpop.f32.mrb[0].mxu0
        %v1588 = vadd.f32 0.0, %v1587
        %v1589 = vpop.f32.mrb[0].mxu0
        %v1590 = vpop.f32.mrb[0].mxu0
        %v1591 = vpop.f32.mrb[0].mxu0
        %1592 = vdwg.mxu0
        %1594 = vrot.lane.b32.xlu0 %v1360, 96
        %v1595 = vpop.permute.xlu0 %1594
        %1597 = vrot.lane.b32.xlu0 %v1362, 96
        %v1598 = vpop.permute.xlu0 %1597
        %v1600 = vsel %vm1364, %v1595, 0
        %v1603 = vsel %vm1364, %v1598, 0
        %1605 = vmatprep.subr.bf16.mxu0 0
        %1606 = vmatpush1.bf16.xpose.msra.mxu0 %v1603
        %1607 = vmatprep.subr.bf16.mxu0 0
        %1608 = vmatpush1.bf16.xpose.msra.mxu0 0
        %1609 = vmatprep.subr.bf16.mxu0 0
        %1610 = vmatpush1.bf16.xpose.msra.mxu0 0
        %1611 = vmatprep.subr.bf16.mxu0 0
        %1612 = vmatpush1.bf16.xpose.msra.mxu0 0
        %1613 = vmatprep.subr.bf16.mxu0 0
        %1614 = vmatpush1.bf16.xpose.msra.mxu0 0
        %1615 = vmatprep.subr.bf16.mxu0 0
        %1616 = vmatpush1.bf16.xpose.msra.mxu0 0
        %1617 = vmatprep.subr.bf16.mxu0 0
        %1618 = vmatpush1.bf16.xpose.msra.mxu0 0
        %1619 = vmatprep.subr.bf16.mxu0 0
        %1620 = vmatpush1.bf16.xpose.msra.mxu0 0
        %1621 = vmatprep.subr.bf16.mxu0 0
        %1622 = vmatpush1.bf16.xpose.msra.mxu0 0
        %1623 = vmatprep.subr.bf16.mxu0 0
        %1624 = vmatpush1.bf16.xpose.msra.mxu0 0
        %1625 = vmatprep.subr.bf16.mxu0 0
        %1626 = vmatpush1.bf16.xpose.msra.mxu0 0
        %1627 = vmatprep.subr.bf16.mxu0 0
        %1628 = vmatpush1.bf16.xpose.msra.mxu0 0
        %1629 = vmatprep.subr.bf16.mxu0 0
        %1630 = vmatpush1.bf16.xpose.msra.mxu0 0
        %1631 = vmatprep.subr.bf16.mxu0 0
        %1632 = vmatpush1.bf16.xpose.msra.mxu0 0
        %1633 = vmatprep.subr.bf16.mxu0 0
        %1634 = vmatpush1.bf16.xpose.msra.mxu0 0
        %1635 = vmatprep.subr.bf16.mxu0 0
        %1636 = vmatpush1.bf16.xpose.msra.mxu0 0
        %1637 = vmatprep.mubr.bf16.mxu0 0
        %1638 = vmatmul.mubr.bf16.gmra.mrb[0].mxu0 %v1600
        %v1639 = vpop.f32.mrb[0].mxu0
        %v1640 = vadd.f32 0.0, %v1639
        %v1641 = vpop.f32.mrb[0].mxu0
        %v1642 = vpop.f32.mrb[0].mxu0
        %v1643 = vpop.f32.mrb[0].mxu0
        %1644 = vdwg.mxu0
        %1646 = vrot.lane.b32.xlu0 %v1361, 96
        %v1647 = vpop.permute.xlu0 %1646
        %1649 = vrot.lane.b32.xlu0 %v1363, 96
        %v1650 = vpop.permute.xlu0 %1649
        %v1652 = vsel %vm1364, %v1647, 0
        %v1655 = vsel %vm1364, %v1650, 0
        %1657 = vmatprep.subr.bf16.mxu0 0
        %1658 = vmatpush1.bf16.xpose.msra.mxu0 %v1655
        %1659 = vmatprep.subr.bf16.mxu0 0
        %1660 = vmatpush1.bf16.xpose.msra.mxu0 0
        %1661 = vmatprep.subr.bf16.mxu0 0
        %1662 = vmatpush1.bf16.xpose.msra.mxu0 0
        %1663 = vmatprep.subr.bf16.mxu0 0
        %1664 = vmatpush1.bf16.xpose.msra.mxu0 0
        %1665 = vmatprep.subr.bf16.mxu0 0
        %1666 = vmatpush1.bf16.xpose.msra.mxu0 0
        %1667 = vmatprep.subr.bf16.mxu0 0
        %1668 = vmatpush1.bf16.xpose.msra.mxu0 0
        %1669 = vmatprep.subr.bf16.mxu0 0
        %1670 = vmatpush1.bf16.xpose.msra.mxu0 0
        %1671 = vmatprep.subr.bf16.mxu0 0
        %1672 = vmatpush1.bf16.xpose.msra.mxu0 0
        %1673 = vmatprep.subr.bf16.mxu0 0
        %1674 = vmatpush1.bf16.xpose.msra.mxu0 0
        %1675 = vmatprep.subr.bf16.mxu0 0
        %1676 = vmatpush1.bf16.xpose.msra.mxu0 0
        %1677 = vmatprep.subr.bf16.mxu0 0
        %1678 = vmatpush1.bf16.xpose.msra.mxu0 0
        %1679 = vmatprep.subr.bf16.mxu0 0
        %1680 = vmatpush1.bf16.xpose.msra.mxu0 0
        %1681 = vmatprep.subr.bf16.mxu0 0
        %1682 = vmatpush1.bf16.xpose.msra.mxu0 0
        %1683 = vmatprep.subr.bf16.mxu0 0
        %1684 = vmatpush1.bf16.xpose.msra.mxu0 0
        %1685 = vmatprep.subr.bf16.mxu0 0
        %1686 = vmatpush1.bf16.xpose.msra.mxu0 0
        %1687 = vmatprep.subr.bf16.mxu0 0
        %1688 = vmatpush1.bf16.xpose.msra.mxu0 0
        %1689 = vmatprep.mubr.bf16.mxu0 0
        %1690 = vmatmul.mubr.bf16.gmra.mrb[0].mxu0 %v1652
        %v1691 = vpop.f32.mrb[0].mxu0
        %v1692 = vadd.f32 0.0, %v1691
        %v1693 = vpop.f32.mrb[0].mxu0
        %v1694 = vpop.f32.mrb[0].mxu0
        %v1695 = vpop.f32.mrb[0].mxu0
        %1696 = vdwg.mxu0
        %v1697 = vmul.f32 %v1640, 0.17677669
        %v1698 = vmul.f32 %v1692, 0.17677669
        %v1699 = vadd.f32 %v1697, %v1464
        %v1700 = vadd.f32 %v1698, %v1468
        %v1701 = vsel %vm1473, %v1699, -inf
        %1702 = vmax.xlane.f32.xlu0 %v1701
        %v1703 = vpop.xlane.xlu0 %1702
        %v1704 = vsel %vm1473, %v1700, -inf
        %1705 = vmax.xlane.f32.xlu0 %v1704
        %v1706 = vpop.xlane.xlu0 %1705
        %v1707 = vsub.f32 %v1699, %v1703
        %v1708 = vsub.f32 %v1700, %v1706
        %v1709 = vmul.f32 %v1707, 1.442695
        %v1710 = vpow.pop %v1709
        %v1711 = vmul.f32 %v1708, 1.442695
        %v1712 = vpow.pop %v1711
        %v1713 = vsel %vm1473, %v1710, 0.0
        %1714 = vadd.xlane.f32.xlu0 %v1713
        %v1715 = vpop.xlane.xlu0 %1714
        %v1716 = vsel %vm1473, %v1712, 0.0
        %1717 = vadd.xlane.f32.xlu0 %v1716
        %v1718 = vpop.xlane.xlu0 %1717
        %v1719 = vrcp.pop %v1715
        %v1720 = vrcp.pop %v1718
        %v1721 = vmul.f32 %v1710, %v1719
        %v1722 = vmul.f32 %v1712, %v1720
        %v1723 = vpack.c.bf16 %v1721, %v1721
        %v1724 = vpack.c.bf16 %v1722, %v1722
        %1726 = vrot.lane.b32.xlu0 %v1498, 96
        %v1727 = vpop.permute.xlu0 %1726
        %v1729 = vsel %vm1473, %v1723, 0
        %v1732 = vsel %vm1503, %v1727, 0
        %1734 = vmatprep.subr.bf16.mxu0 0
        %1735 = vmatpush1.bf16.msra.mxu0 %v1732
        %1736 = vmatprep.subr.bf16.mxu0 0
        %1737 = vmatpush1.bf16.msra.mxu0 0
        %1738 = vmatprep.subr.bf16.mxu0 0
        %1739 = vmatpush1.bf16.msra.mxu0 0
        %1740 = vmatprep.subr.bf16.mxu0 0
        %1741 = vmatpush1.bf16.msra.mxu0 0
        %1742 = vmatprep.subr.bf16.mxu0 0
        %1743 = vmatpush1.bf16.msra.mxu0 0
        %1744 = vmatprep.subr.bf16.mxu0 0
        %1745 = vmatpush1.bf16.msra.mxu0 0
        %1746 = vmatprep.subr.bf16.mxu0 0
        %1747 = vmatpush1.bf16.msra.mxu0 0
        %1748 = vmatprep.subr.bf16.mxu0 0
        %1749 = vmatpush1.bf16.msra.mxu0 0
        %1750 = vmatprep.subr.bf16.mxu0 0
        %1751 = vmatpush1.bf16.msra.mxu0 0
        %1752 = vmatprep.subr.bf16.mxu0 0
        %1753 = vmatpush1.bf16.msra.mxu0 0
        %1754 = vmatprep.subr.bf16.mxu0 0
        %1755 = vmatpush1.bf16.msra.mxu0 0
        %1756 = vmatprep.subr.bf16.mxu0 0
        %1757 = vmatpush1.bf16.msra.mxu0 0
        %1758 = vmatprep.subr.bf16.mxu0 0
        %1759 = vmatpush1.bf16.msra.mxu0 0
        %1760 = vmatprep.subr.bf16.mxu0 0
        %1761 = vmatpush1.bf16.msra.mxu0 0
        %1762 = vmatprep.subr.bf16.mxu0 0
        %1763 = vmatpush1.bf16.msra.mxu0 0
        %1764 = vmatprep.subr.bf16.mxu0 0
        %1765 = vmatpush1.bf16.msra.mxu0 0
        %1766 = vmatprep.mubr.bf16.mxu0 0
        %1767 = vmatmul.mubr.bf16.gmra.mrb[0].mxu0 %v1729
        %v1768 = vpop.f32.mrb[0].mxu0
        %v1769 = vadd.f32 0.0, %v1768
        %v1770 = vpop.f32.mrb[0].mxu0
        %v1771 = vpop.f32.mrb[0].mxu0
        %v1772 = vpop.f32.mrb[0].mxu0
        %1773 = vdwg.mxu0
        %1775 = vrot.lane.b32.xlu0 %v1499, 96
        %v1776 = vpop.permute.xlu0 %1775
        %v1778 = vsel %vm1473, %v1724, 0
        %v1781 = vsel %vm1503, %v1776, 0
        %1783 = vmatprep.subr.bf16.mxu0 0
        %1784 = vmatpush1.bf16.msra.mxu0 %v1781
        %1785 = vmatprep.subr.bf16.mxu0 0
        %1786 = vmatpush1.bf16.msra.mxu0 0
        %1787 = vmatprep.subr.bf16.mxu0 0
        %1788 = vmatpush1.bf16.msra.mxu0 0
        %1789 = vmatprep.subr.bf16.mxu0 0
        %1790 = vmatpush1.bf16.msra.mxu0 0
        %1791 = vmatprep.subr.bf16.mxu0 0
        %1792 = vmatpush1.bf16.msra.mxu0 0
        %1793 = vmatprep.subr.bf16.mxu0 0
        %1794 = vmatpush1.bf16.msra.mxu0 0
        %1795 = vmatprep.subr.bf16.mxu0 0
        %1796 = vmatpush1.bf16.msra.mxu0 0
        %1797 = vmatprep.subr.bf16.mxu0 0
        %1798 = vmatpush1.bf16.msra.mxu0 0
        %1799 = vmatprep.subr.bf16.mxu0 0
        %1800 = vmatpush1.bf16.msra.mxu0 0
        %1801 = vmatprep.subr.bf16.mxu0 0
        %1802 = vmatpush1.bf16.msra.mxu0 0
        %1803 = vmatprep.subr.bf16.mxu0 0
        %1804 = vmatpush1.bf16.msra.mxu0 0
        %1805 = vmatprep.subr.bf16.mxu0 0
        %1806 = vmatpush1.bf16.msra.mxu0 0
        %1807 = vmatprep.subr.bf16.mxu0 0
        %1808 = vmatpush1.bf16.msra.mxu0 0
        %1809 = vmatprep.subr.bf16.mxu0 0
        %1810 = vmatpush1.bf16.msra.mxu0 0
        %1811 = vmatprep.subr.bf16.mxu0 0
        %1812 = vmatpush1.bf16.msra.mxu0 0
        %1813 = vmatprep.subr.bf16.mxu0 0
        %1814 = vmatpush1.bf16.msra.mxu0 0
        %1815 = vmatprep.mubr.bf16.mxu0 0
        %1816 = vmatmul.mubr.bf16.gmra.mrb[0].mxu0 %v1778
        %v1817 = vpop.f32.mrb[0].mxu0
        %v1818 = vadd.f32 0.0, %v1817
        %v1819 = vpop.f32.mrb[0].mxu0
        %v1820 = vpop.f32.mrb[0].mxu0
        %v1821 = vpop.f32.mrb[0].mxu0
        %1822 = vdwg.mxu0
        %1823 = vrot.lane.b32.xlu0 %v1360, 64
        %v1824 = vpop.permute.xlu0 %1823
        %1825 = vrot.lane.b32.xlu0 %v1362, 64
        %v1826 = vpop.permute.xlu0 %1825
        %v1828 = vsel %vm1364, %v1824, 0
        %v1831 = vsel %vm1364, %v1826, 0
        %1833 = vmatprep.subr.bf16.mxu0 0
        %1834 = vmatpush1.bf16.xpose.msra.mxu0 %v1831
        %1835 = vmatprep.subr.bf16.mxu0 0
        %1836 = vmatpush1.bf16.xpose.msra.mxu0 0
        %1837 = vmatprep.subr.bf16.mxu0 0
        %1838 = vmatpush1.bf16.xpose.msra.mxu0 0
        %1839 = vmatprep.subr.bf16.mxu0 0
        %1840 = vmatpush1.bf16.xpose.msra.mxu0 0
        %1841 = vmatprep.subr.bf16.mxu0 0
        %1842 = vmatpush1.bf16.xpose.msra.mxu0 0
        %1843 = vmatprep.subr.bf16.mxu0 0
        %1844 = vmatpush1.bf16.xpose.msra.mxu0 0
        %1845 = vmatprep.subr.bf16.mxu0 0
        %1846 = vmatpush1.bf16.xpose.msra.mxu0 0
        %1847 = vmatprep.subr.bf16.mxu0 0
        %1848 = vmatpush1.bf16.xpose.msra.mxu0 0
        %1849 = vmatprep.subr.bf16.mxu0 0
        %1850 = vmatpush1.bf16.xpose.msra.mxu0 0
        %1851 = vmatprep.subr.bf16.mxu0 0
        %1852 = vmatpush1.bf16.xpose.msra.mxu0 0
        %1853 = vmatprep.subr.bf16.mxu0 0
        %1854 = vmatpush1.bf16.xpose.msra.mxu0 0
        %1855 = vmatprep.subr.bf16.mxu0 0
        %1856 = vmatpush1.bf16.xpose.msra.mxu0 0
        %1857 = vmatprep.subr.bf16.mxu0 0
        %1858 = vmatpush1.bf16.xpose.msra.mxu0 0
        %1859 = vmatprep.subr.bf16.mxu0 0
        %1860 = vmatpush1.bf16.xpose.msra.mxu0 0
        %1861 = vmatprep.subr.bf16.mxu0 0
        %1862 = vmatpush1.bf16.xpose.msra.mxu0 0
        %1863 = vmatprep.subr.bf16.mxu0 0
        %1864 = vmatpush1.bf16.xpose.msra.mxu0 0
        %1865 = vmatprep.mubr.bf16.mxu0 0
        %1866 = vmatmul.mubr.bf16.gmra.mrb[0].mxu0 %v1828
        %v1867 = vpop.f32.mrb[0].mxu0
        %v1868 = vadd.f32 0.0, %v1867
        %v1869 = vpop.f32.mrb[0].mxu0
        %v1870 = vpop.f32.mrb[0].mxu0
        %v1871 = vpop.f32.mrb[0].mxu0
        %1872 = vdwg.mxu0
        %1873 = vrot.lane.b32.xlu0 %v1361, 64
        %v1874 = vpop.permute.xlu0 %1873
        %1875 = vrot.lane.b32.xlu0 %v1363, 64
        %v1876 = vpop.permute.xlu0 %1875
        %v1878 = vsel %vm1364, %v1874, 0
        %v1881 = vsel %vm1364, %v1876, 0
        %1883 = vmatprep.subr.bf16.mxu0 0
        %1884 = vmatpush1.bf16.xpose.msra.mxu0 %v1881
        %1885 = vmatprep.subr.bf16.mxu0 0
        %1886 = vmatpush1.bf16.xpose.msra.mxu0 0
        %1887 = vmatprep.subr.bf16.mxu0 0
        %1888 = vmatpush1.bf16.xpose.msra.mxu0 0
        %1889 = vmatprep.subr.bf16.mxu0 0
        %1890 = vmatpush1.bf16.xpose.msra.mxu0 0
        %1891 = vmatprep.subr.bf16.mxu0 0
        %1892 = vmatpush1.bf16.xpose.msra.mxu0 0
        %1893 = vmatprep.subr.bf16.mxu0 0
        %1894 = vmatpush1.bf16.xpose.msra.mxu0 0
        %1895 = vmatprep.subr.bf16.mxu0 0
        %1896 = vmatpush1.bf16.xpose.msra.mxu0 0
        %1897 = vmatprep.subr.bf16.mxu0 0
        %1898 = vmatpush1.bf16.xpose.msra.mxu0 0
        %1899 = vmatprep.subr.bf16.mxu0 0
        %1900 = vmatpush1.bf16.xpose.msra.mxu0 0
        %1901 = vmatprep.subr.bf16.mxu0 0
        %1902 = vmatpush1.bf16.xpose.msra.mxu0 0
        %1903 = vmatprep.subr.bf16.mxu0 0
        %1904 = vmatpush1.bf16.xpose.msra.mxu0 0
        %1905 = vmatprep.subr.bf16.mxu0 0
        %1906 = vmatpush1.bf16.xpose.msra.mxu0 0
        %1907 = vmatprep.subr.bf16.mxu0 0
        %1908 = vmatpush1.bf16.xpose.msra.mxu0 0
        %1909 = vmatprep.subr.bf16.mxu0 0
        %1910 = vmatpush1.bf16.xpose.msra.mxu0 0
        %1911 = vmatprep.subr.bf16.mxu0 0
        %1912 = vmatpush1.bf16.xpose.msra.mxu0 0
        %1913 = vmatprep.subr.bf16.mxu0 0
        %1914 = vmatpush1.bf16.xpose.msra.mxu0 0
        %1915 = vmatprep.mubr.bf16.mxu0 0
        %1916 = vmatmul.mubr.bf16.gmra.mrb[0].mxu0 %v1878
        %v1917 = vpop.f32.mrb[0].mxu0
        %v1918 = vadd.f32 0.0, %v1917
        %v1919 = vpop.f32.mrb[0].mxu0
        %v1920 = vpop.f32.mrb[0].mxu0
        %v1921 = vpop.f32.mrb[0].mxu0
        %1922 = vdwg.mxu0
        %v1923 = vmul.f32 %v1868, 0.17677669
        %v1924 = vmul.f32 %v1918, 0.17677669
        %v1925 = vadd.f32 %v1923, %v1464
        %v1926 = vadd.f32 %v1924, %v1468
        %v1927 = vsel %vm1473, %v1925, -inf
        %1928 = vmax.xlane.f32.xlu0 %v1927
        %v1929 = vpop.xlane.xlu0 %1928
        %v1930 = vsel %vm1473, %v1926, -inf
        %1931 = vmax.xlane.f32.xlu0 %v1930
        %v1932 = vpop.xlane.xlu0 %1931
        %v1933 = vsub.f32 %v1925, %v1929
        %v1934 = vsub.f32 %v1926, %v1932
        %v1935 = vmul.f32 %v1933, 1.442695
        %v1936 = vpow.pop %v1935
        %v1937 = vmul.f32 %v1934, 1.442695
        %v1938 = vpow.pop %v1937
        %v1939 = vsel %vm1473, %v1936, 0.0
        %1940 = vadd.xlane.f32.xlu0 %v1939
        %v1941 = vpop.xlane.xlu0 %1940
        %v1942 = vsel %vm1473, %v1938, 0.0
        %1943 = vadd.xlane.f32.xlu0 %v1942
        %v1944 = vpop.xlane.xlu0 %1943
        %v1945 = vrcp.pop %v1941
        %v1946 = vrcp.pop %v1944
        %v1947 = vmul.f32 %v1936, %v1945
        %v1948 = vmul.f32 %v1938, %v1946
        %v1949 = vpack.c.bf16 %v1947, %v1947
        %v1950 = vpack.c.bf16 %v1948, %v1948
        %1951 = vrot.lane.b32.xlu0 %v1498, 64
        %v1952 = vpop.permute.xlu0 %1951
        %v1954 = vsel %vm1473, %v1949, 0
        %v1957 = vsel %vm1503, %v1952, 0
        %1959 = vmatprep.subr.bf16.mxu0 0
        %1960 = vmatpush1.bf16.msra.mxu0 %v1957
        %1961 = vmatprep.subr.bf16.mxu0 0
        %1962 = vmatpush1.bf16.msra.mxu0 0
        %1963 = vmatprep.subr.bf16.mxu0 0
        %1964 = vmatpush1.bf16.msra.mxu0 0
        %1965 = vmatprep.subr.bf16.mxu0 0
        %1966 = vmatpush1.bf16.msra.mxu0 0
        %1967 = vmatprep.subr.bf16.mxu0 0
        %1968 = vmatpush1.bf16.msra.mxu0 0
        %1969 = vmatprep.subr.bf16.mxu0 0
        %1970 = vmatpush1.bf16.msra.mxu0 0
        %1971 = vmatprep.subr.bf16.mxu0 0
        %1972 = vmatpush1.bf16.msra.mxu0 0
        %1973 = vmatprep.subr.bf16.mxu0 0
        %1974 = vmatpush1.bf16.msra.mxu0 0
        %1975 = vmatprep.subr.bf16.mxu0 0
        %1976 = vmatpush1.bf16.msra.mxu0 0
        %1977 = vmatprep.subr.bf16.mxu0 0
        %1978 = vmatpush1.bf16.msra.mxu0 0
        %1979 = vmatprep.subr.bf16.mxu0 0
        %1980 = vmatpush1.bf16.msra.mxu0 0
        %1981 = vmatprep.subr.bf16.mxu0 0
        %1982 = vmatpush1.bf16.msra.mxu0 0
        %1983 = vmatprep.subr.bf16.mxu0 0
        %1984 = vmatpush1.bf16.msra.mxu0 0
        %1985 = vmatprep.subr.bf16.mxu0 0
        %1986 = vmatpush1.bf16.msra.mxu0 0
        %1987 = vmatprep.subr.bf16.mxu0 0
        %1988 = vmatpush1.bf16.msra.mxu0 0
        %1989 = vmatprep.subr.bf16.mxu0 0
        %1990 = vmatpush1.bf16.msra.mxu0 0
        %1991 = vmatprep.mubr.bf16.mxu0 0
        %1992 = vmatmul.mubr.bf16.gmra.mrb[0].mxu0 %v1954
        %v1993 = vpop.f32.mrb[0].mxu0
        %v1994 = vadd.f32 0.0, %v1993
        %v1995 = vpop.f32.mrb[0].mxu0
        %v1996 = vpop.f32.mrb[0].mxu0
        %v1997 = vpop.f32.mrb[0].mxu0
        %1998 = vdwg.mxu0
        %1999 = vrot.lane.b32.xlu0 %v1499, 64
        %v2000 = vpop.permute.xlu0 %1999
        %v2002 = vsel %vm1473, %v1950, 0
        %v2005 = vsel %vm1503, %v2000, 0
        %2007 = vmatprep.subr.bf16.mxu0 0
        %2008 = vmatpush1.bf16.msra.mxu0 %v2005
        %2009 = vmatprep.subr.bf16.mxu0 0
        %2010 = vmatpush1.bf16.msra.mxu0 0
        %2011 = vmatprep.subr.bf16.mxu0 0
        %2012 = vmatpush1.bf16.msra.mxu0 0
        %2013 = vmatprep.subr.bf16.mxu0 0
        %2014 = vmatpush1.bf16.msra.mxu0 0
        %2015 = vmatprep.subr.bf16.mxu0 0
        %2016 = vmatpush1.bf16.msra.mxu0 0
        %2017 = vmatprep.subr.bf16.mxu0 0
        %2018 = vmatpush1.bf16.msra.mxu0 0
        %2019 = vmatprep.subr.bf16.mxu0 0
        %2020 = vmatpush1.bf16.msra.mxu0 0
        %2021 = vmatprep.subr.bf16.mxu0 0
        %2022 = vmatpush1.bf16.msra.mxu0 0
        %2023 = vmatprep.subr.bf16.mxu0 0
        %2024 = vmatpush1.bf16.msra.mxu0 0
        %2025 = vmatprep.subr.bf16.mxu0 0
        %2026 = vmatpush1.bf16.msra.mxu0 0
        %2027 = vmatprep.subr.bf16.mxu0 0
        %2028 = vmatpush1.bf16.msra.mxu0 0
        %2029 = vmatprep.subr.bf16.mxu0 0
        %2030 = vmatpush1.bf16.msra.mxu0 0
        %2031 = vmatprep.subr.bf16.mxu0 0
        %2032 = vmatpush1.bf16.msra.mxu0 0
        %2033 = vmatprep.subr.bf16.mxu0 0
        %2034 = vmatpush1.bf16.msra.mxu0 0
        %2035 = vmatprep.subr.bf16.mxu0 0
        %2036 = vmatpush1.bf16.msra.mxu0 0
        %2037 = vmatprep.subr.bf16.mxu0 0
        %2038 = vmatpush1.bf16.msra.mxu0 0
        %2039 = vmatprep.mubr.bf16.mxu0 0
        %2040 = vmatmul.mubr.bf16.gmra.mrb[0].mxu0 %v2002
        %v2041 = vpop.f32.mrb[0].mxu0
        %v2042 = vadd.f32 0.0, %v2041
        %v2043 = vpop.f32.mrb[0].mxu0
        %v2044 = vpop.f32.mrb[0].mxu0
        %v2045 = vpop.f32.mrb[0].mxu0
        %2046 = vdwg.mxu0
        %2047 = vrot.lane.b32.xlu0 %v1360, 32
        %v2048 = vpop.permute.xlu0 %2047
        %2049 = vrot.lane.b32.xlu0 %v1362, 32
        %v2050 = vpop.permute.xlu0 %2049
        %v2052 = vsel %vm1364, %v2048, 0
        %v2055 = vsel %vm1364, %v2050, 0
        %2057 = vmatprep.subr.bf16.mxu0 0
        %2058 = vmatpush1.bf16.xpose.msra.mxu0 %v2055
        %2059 = vmatprep.subr.bf16.mxu0 0
        %2060 = vmatpush1.bf16.xpose.msra.mxu0 0
        %2061 = vmatprep.subr.bf16.mxu0 0
        %2062 = vmatpush1.bf16.xpose.msra.mxu0 0
        %2063 = vmatprep.subr.bf16.mxu0 0
        %2064 = vmatpush1.bf16.xpose.msra.mxu0 0
        %2065 = vmatprep.subr.bf16.mxu0 0
        %2066 = vmatpush1.bf16.xpose.msra.mxu0 0
        %2067 = vmatprep.subr.bf16.mxu0 0
        %2068 = vmatpush1.bf16.xpose.msra.mxu0 0
        %2069 = vmatprep.subr.bf16.mxu0 0
        %2070 = vmatpush1.bf16.xpose.msra.mxu0 0
        %2071 = vmatprep.subr.bf16.mxu0 0
        %2072 = vmatpush1.bf16.xpose.msra.mxu0 0
        %2073 = vmatprep.subr.bf16.mxu0 0
        %2074 = vmatpush1.bf16.xpose.msra.mxu0 0
        %2075 = vmatprep.subr.bf16.mxu0 0
        %2076 = vmatpush1.bf16.xpose.msra.mxu0 0
        %2077 = vmatprep.subr.bf16.mxu0 0
        %2078 = vmatpush1.bf16.xpose.msra.mxu0 0
        %2079 = vmatprep.subr.bf16.mxu0 0
        %2080 = vmatpush1.bf16.xpose.msra.mxu0 0
        %2081 = vmatprep.subr.bf16.mxu0 0
        %2082 = vmatpush1.bf16.xpose.msra.mxu0 0
        %2083 = vmatprep.subr.bf16.mxu0 0
        %2084 = vmatpush1.bf16.xpose.msra.mxu0 0
        %2085 = vmatprep.subr.bf16.mxu0 0
        %2086 = vmatpush1.bf16.xpose.msra.mxu0 0
        %2087 = vmatprep.subr.bf16.mxu0 0
        %2088 = vmatpush1.bf16.xpose.msra.mxu0 0
        %2089 = vmatprep.mubr.bf16.mxu0 0
        %2090 = vmatmul.mubr.bf16.gmra.mrb[0].mxu0 %v2052
        %v2091 = vpop.f32.mrb[0].mxu0
        %v2092 = vadd.f32 0.0, %v2091
        %v2093 = vpop.f32.mrb[0].mxu0
        %v2094 = vpop.f32.mrb[0].mxu0
        %v2095 = vpop.f32.mrb[0].mxu0
        %2096 = vdwg.mxu0
        %2097 = vrot.lane.b32.xlu0 %v1361, 32
        %v2098 = vpop.permute.xlu0 %2097
        %2099 = vrot.lane.b32.xlu0 %v1363, 32
        %v2100 = vpop.permute.xlu0 %2099
        %v2102 = vsel %vm1364, %v2098, 0
        %v2105 = vsel %vm1364, %v2100, 0
        %2107 = vmatprep.subr.bf16.mxu0 0
        %2108 = vmatpush1.bf16.xpose.msra.mxu0 %v2105
        %2109 = vmatprep.subr.bf16.mxu0 0
        %2110 = vmatpush1.bf16.xpose.msra.mxu0 0
        %2111 = vmatprep.subr.bf16.mxu0 0
        %2112 = vmatpush1.bf16.xpose.msra.mxu0 0
        %2113 = vmatprep.subr.bf16.mxu0 0
        %2114 = vmatpush1.bf16.xpose.msra.mxu0 0
        %2115 = vmatprep.subr.bf16.mxu0 0
        %2116 = vmatpush1.bf16.xpose.msra.mxu0 0
        %2117 = vmatprep.subr.bf16.mxu0 0
        %2118 = vmatpush1.bf16.xpose.msra.mxu0 0
        %2119 = vmatprep.subr.bf16.mxu0 0
        %2120 = vmatpush1.bf16.xpose.msra.mxu0 0
        %2121 = vmatprep.subr.bf16.mxu0 0
        %2122 = vmatpush1.bf16.xpose.msra.mxu0 0
        %2123 = vmatprep.subr.bf16.mxu0 0
        %2124 = vmatpush1.bf16.xpose.msra.mxu0 0
        %2125 = vmatprep.subr.bf16.mxu0 0
        %2126 = vmatpush1.bf16.xpose.msra.mxu0 0
        %2127 = vmatprep.subr.bf16.mxu0 0
        %2128 = vmatpush1.bf16.xpose.msra.mxu0 0
        %2129 = vmatprep.subr.bf16.mxu0 0
        %2130 = vmatpush1.bf16.xpose.msra.mxu0 0
        %2131 = vmatprep.subr.bf16.mxu0 0
        %2132 = vmatpush1.bf16.xpose.msra.mxu0 0
        %2133 = vmatprep.subr.bf16.mxu0 0
        %2134 = vmatpush1.bf16.xpose.msra.mxu0 0
        %2135 = vmatprep.subr.bf16.mxu0 0
        %2136 = vmatpush1.bf16.xpose.msra.mxu0 0
        %2137 = vmatprep.subr.bf16.mxu0 0
        %2138 = vmatpush1.bf16.xpose.msra.mxu0 0
        %2139 = vmatprep.mubr.bf16.mxu0 0
        %2140 = vmatmul.mubr.bf16.gmra.mrb[0].mxu0 %v2102
        %v2141 = vpop.f32.mrb[0].mxu0
        %v2142 = vadd.f32 0.0, %v2141
        %v2143 = vpop.f32.mrb[0].mxu0
        %v2144 = vpop.f32.mrb[0].mxu0
        %v2145 = vpop.f32.mrb[0].mxu0
        %2146 = vdwg.mxu0
        %v2147 = vmul.f32 %v2092, 0.17677669
        %v2148 = vmul.f32 %v2142, 0.17677669
        %v2149 = vadd.f32 %v2147, %v1464
        %v2150 = vadd.f32 %v2148, %v1468
        %v2151 = vsel %vm1473, %v2149, -inf
        %2152 = vmax.xlane.f32.xlu0 %v2151
        %v2153 = vpop.xlane.xlu0 %2152
        %v2154 = vsel %vm1473, %v2150, -inf
        %2155 = vmax.xlane.f32.xlu0 %v2154
        %v2156 = vpop.xlane.xlu0 %2155
        %v2157 = vsub.f32 %v2149, %v2153
        %v2158 = vsub.f32 %v2150, %v2156
        %v2159 = vmul.f32 %v2157, 1.442695
        %v2160 = vpow.pop %v2159
        %v2161 = vmul.f32 %v2158, 1.442695
        %v2162 = vpow.pop %v2161
        %v2163 = vsel %vm1473, %v2160, 0.0
        %2164 = vadd.xlane.f32.xlu0 %v2163
        %v2165 = vpop.xlane.xlu0 %2164
        %v2166 = vsel %vm1473, %v2162, 0.0
        %2167 = vadd.xlane.f32.xlu0 %v2166
        %v2168 = vpop.xlane.xlu0 %2167
        %v2169 = vrcp.pop %v2165
        %v2170 = vrcp.pop %v2168
        %v2171 = vmul.f32 %v2160, %v2169
        %v2172 = vmul.f32 %v2162, %v2170
        %v2173 = vpack.c.bf16 %v2171, %v2171
        %v2174 = vpack.c.bf16 %v2172, %v2172
        %2175 = vrot.lane.b32.xlu0 %v1498, 32
        %v2176 = vpop.permute.xlu0 %2175
        %v2178 = vsel %vm1473, %v2173, 0
        %v2181 = vsel %vm1503, %v2176, 0
        %2183 = vmatprep.subr.bf16.mxu0 0
        %2184 = vmatpush1.bf16.msra.mxu0 %v2181
        %2185 = vmatprep.subr.bf16.mxu0 0
        %2186 = vmatpush1.bf16.msra.mxu0 0
        %2187 = vmatprep.subr.bf16.mxu0 0
        %2188 = vmatpush1.bf16.msra.mxu0 0
        %2189 = vmatprep.subr.bf16.mxu0 0
        %2190 = vmatpush1.bf16.msra.mxu0 0
        %2191 = vmatprep.subr.bf16.mxu0 0
        %2192 = vmatpush1.bf16.msra.mxu0 0
        %2193 = vmatprep.subr.bf16.mxu0 0
        %2194 = vmatpush1.bf16.msra.mxu0 0
        %2195 = vmatprep.subr.bf16.mxu0 0
        %2196 = vmatpush1.bf16.msra.mxu0 0
        %2197 = vmatprep.subr.bf16.mxu0 0
        %2198 = vmatpush1.bf16.msra.mxu0 0
        %2199 = vmatprep.subr.bf16.mxu0 0
        %2200 = vmatpush1.bf16.msra.mxu0 0
        %2201 = vmatprep.subr.bf16.mxu0 0
        %2202 = vmatpush1.bf16.msra.mxu0 0
        %2203 = vmatprep.subr.bf16.mxu0 0
        %2204 = vmatpush1.bf16.msra.mxu0 0
        %2205 = vmatprep.subr.bf16.mxu0 0
        %2206 = vmatpush1.bf16.msra.mxu0 0
        %2207 = vmatprep.subr.bf16.mxu0 0
        %2208 = vmatpush1.bf16.msra.mxu0 0
        %2209 = vmatprep.subr.bf16.mxu0 0
        %2210 = vmatpush1.bf16.msra.mxu0 0
        %2211 = vmatprep.subr.bf16.mxu0 0
        %2212 = vmatpush1.bf16.msra.mxu0 0
        %2213 = vmatprep.subr.bf16.mxu0 0
        %2214 = vmatpush1.bf16.msra.mxu0 0
        %2215 = vmatprep.mubr.bf16.mxu0 0
        %2216 = vmatmul.mubr.bf16.gmra.mrb[0].mxu0 %v2178
        %v2217 = vpop.f32.mrb[0].mxu0
        %v2218 = vadd.f32 0.0, %v2217
        %v2219 = vpop.f32.mrb[0].mxu0
        %v2220 = vpop.f32.mrb[0].mxu0
        %v2221 = vpop.f32.mrb[0].mxu0
        %2222 = vdwg.mxu0
        %2223 = vrot.lane.b32.xlu0 %v1499, 32
        %v2224 = vpop.permute.xlu0 %2223
        %v2226 = vsel %vm1473, %v2174, 0
        %v2229 = vsel %vm1503, %v2224, 0
        %2231 = vmatprep.subr.bf16.mxu0 0
        %2232 = vmatpush1.bf16.msra.mxu0 %v2229
        %2233 = vmatprep.subr.bf16.mxu0 0
        %2234 = vmatpush1.bf16.msra.mxu0 0
        %2235 = vmatprep.subr.bf16.mxu0 0
        %2236 = vmatpush1.bf16.msra.mxu0 0
        %2237 = vmatprep.subr.bf16.mxu0 0
        %2238 = vmatpush1.bf16.msra.mxu0 0
        %2239 = vmatprep.subr.bf16.mxu0 0
        %2240 = vmatpush1.bf16.msra.mxu0 0
        %2241 = vmatprep.subr.bf16.mxu0 0
        %2242 = vmatpush1.bf16.msra.mxu0 0
        %2243 = vmatprep.subr.bf16.mxu0 0
        %2244 = vmatpush1.bf16.msra.mxu0 0
        %2245 = vmatprep.subr.bf16.mxu0 0
        %2246 = vmatpush1.bf16.msra.mxu0 0
        %2247 = vmatprep.subr.bf16.mxu0 0
        %2248 = vmatpush1.bf16.msra.mxu0 0
        %2249 = vmatprep.subr.bf16.mxu0 0
        %2250 = vmatpush1.bf16.msra.mxu0 0
        %2251 = vmatprep.subr.bf16.mxu0 0
        %2252 = vmatpush1.bf16.msra.mxu0 0
        %2253 = vmatprep.subr.bf16.mxu0 0
        %2254 = vmatpush1.bf16.msra.mxu0 0
        %2255 = vmatprep.subr.bf16.mxu0 0
        %2256 = vmatpush1.bf16.msra.mxu0 0
        %2257 = vmatprep.subr.bf16.mxu0 0
        %2258 = vmatpush1.bf16.msra.mxu0 0
        %2259 = vmatprep.subr.bf16.mxu0 0
        %2260 = vmatpush1.bf16.msra.mxu0 0
        %2261 = vmatprep.subr.bf16.mxu0 0
        %2262 = vmatpush1.bf16.msra.mxu0 0
        %2263 = vmatprep.mubr.bf16.mxu0 0
        %2264 = vmatmul.mubr.bf16.gmra.mrb[0].mxu0 %v2226
        %v2265 = vpop.f32.mrb[0].mxu0
        %v2266 = vadd.f32 0.0, %v2265
        %v2267 = vpop.f32.mrb[0].mxu0
        %v2268 = vpop.f32.mrb[0].mxu0
        %v2269 = vpop.f32.mrb[0].mxu0
        %2270 = vdwg.mxu0
        %2273 = vrot.lane.b32.xlu0 %v1769, 32
        %v2274 = vpop.permute.xlu0 %2273
        %2275 = vrot.lane.b32.xlu0 %v1818, 32
        %v2276 = vpop.permute.xlu0 %2275
        %2281 = vrot.lane.b32.xlu0 %v1994, 64
        %v2282 = vpop.permute.xlu0 %2281
        %2283 = vrot.lane.b32.xlu0 %v2042, 64
        %v2284 = vpop.permute.xlu0 %2283
        %2289 = vrot.lane.b32.xlu0 %v2218, 96
        %v2290 = vpop.permute.xlu0 %2289
        %2291 = vrot.lane.b32.xlu0 %v2266, 96
        %v2292 = vpop.permute.xlu0 %2291
        %v2295 = vsel %vm1364, %v1542, %v2274
        %v2296 = vsel %vm1364, %v1588, %v2276
        %vm2297 = vcmask 523264
        %v2298 = vsel %vm2297, %v2295, %v2282
        %v2299 = vsel %vm2297, %v2296, %v2284
        %vm2300 = vcmask 785408
        %v2301 = vsel %vm2300, %v2298, %v2290
        %v2302 = vsel %vm2300, %v2299, %v2292
        %v2303 = vld [vmem:[%s531] sm:$0xf]
        %v2304 = vld [vmem:[%s531 + $0x4] sm:$0xf]
        %v2305 = vld [vmem:[%s531 + $0x8] sm:$0xf]
        %v2306 = vld [vmem:[%s531 + $0xc] sm:$0xf]
        %v2307 = vld [vmem:[%s531 + $0x10] sm:$0xf]
        %v2308 = vld [vmem:[%s531 + $0x14] sm:$0xf]
        %v2309 = vld [vmem:[%s531 + $0x18] sm:$0xf]
        %v2310 = vld [vmem:[%s531 + $0x1c] sm:$0xf]
        %v2311 = vld [vmem:[%s531 + $0x20] sm:$0xf]
        %v2312 = vld [vmem:[%s531 + $0x24] sm:$0xf]
        %v2313 = vld [vmem:[%s531 + $0x28] sm:$0xf]
        %v2314 = vld [vmem:[%s531 + $0x2c] sm:$0xf]
        %v2315 = vld [vmem:[%s531 + $0x30] sm:$0xf]
        %v2316 = vld [vmem:[%s531 + $0x34] sm:$0xf]
        %v2317 = vld [vmem:[%s531 + $0x38] sm:$0xf]
        %v2318 = vld [vmem:[%s531 + $0x3c] sm:$0xf]
        %v2319 = vpack.c.bf16 %v2302, %v2301
        %v2320 = vld [vmem:[%s558 + $0x2] ss:$0 sm:$0xff]
        %v2337 = vunpack.c.l.b16 %v2303
        %v2338 = vunpack.c.l.b16 %v2304
        %v2339 = vunpack.c.l.b16 %v2305
        %v2340 = vunpack.c.l.b16 %v2306
        %v2341 = vunpack.c.l.b16 %v2307
        %v2342 = vunpack.c.l.b16 %v2308
        %v2343 = vunpack.c.l.b16 %v2309
        %v2344 = vunpack.c.l.b16 %v2310
        %v2345 = vunpack.c.l.b16 %v2311
        %v2346 = vunpack.c.l.b16 %v2312
        %v2347 = vunpack.c.l.b16 %v2313
        %v2348 = vunpack.c.l.b16 %v2314
        %v2349 = vunpack.c.l.b16 %v2315
        %v2350 = vunpack.c.l.b16 %v2316
        %v2351 = vunpack.c.l.b16 %v2317
        %v2352 = vunpack.c.l.b16 %v2318
        %v2353 = vpack.c.b16 %v2338, %v2337
        %v2354 = vpack.c.b16 %v2340, %v2339
        %v2355 = vpack.c.b16 %v2342, %v2341
        %v2356 = vpack.c.b16 %v2344, %v2343
        %v2357 = vpack.c.b16 %v2346, %v2345
        %v2358 = vpack.c.b16 %v2348, %v2347
        %v2359 = vpack.c.b16 %v2350, %v2349
        %v2360 = vpack.c.b16 %v2352, %v2351
        %2369 = vmatprep.subr.bf16.mxu0 0
        %2370 = vmatpush1.bf16.msra.mxu0 %v2353
        %2371 = vmatprep.subr.bf16.mxu0 0
        %2372 = vmatpush1.bf16.msra.mxu0 %v2354
        %2373 = vmatprep.subr.bf16.mxu0 0
        %2374 = vmatpush1.bf16.msra.mxu0 %v2355
        %2375 = vmatprep.subr.bf16.mxu0 0
        %2376 = vmatpush1.bf16.msra.mxu0 %v2356
        %2377 = vmatprep.subr.bf16.mxu0 0
        %2378 = vmatpush1.bf16.msra.mxu0 %v2357
        %2379 = vmatprep.subr.bf16.mxu0 0
        %2380 = vmatpush1.bf16.msra.mxu0 %v2358
        %2381 = vmatprep.subr.bf16.mxu0 0
        %2382 = vmatpush1.bf16.msra.mxu0 %v2359
        %2383 = vmatprep.subr.bf16.mxu0 0
        %2384 = vmatpush1.bf16.msra.mxu0 %v2360
        %2385 = vmatprep.subr.bf16.mxu0 0
        %2386 = vmatpush1.bf16.msra.mxu0 0
        %2387 = vmatprep.subr.bf16.mxu0 0
        %2388 = vmatpush1.bf16.msra.mxu0 0
        %2389 = vmatprep.subr.bf16.mxu0 0
        %2390 = vmatpush1.bf16.msra.mxu0 0
        %2391 = vmatprep.subr.bf16.mxu0 0
        %2392 = vmatpush1.bf16.msra.mxu0 0
        %2393 = vmatprep.subr.bf16.mxu0 0
        %2394 = vmatpush1.bf16.msra.mxu0 0
        %2395 = vmatprep.subr.bf16.mxu0 0
        %2396 = vmatpush1.bf16.msra.mxu0 0
        %2397 = vmatprep.subr.bf16.mxu0 0
        %2398 = vmatpush1.bf16.msra.mxu0 0
        %2399 = vmatprep.subr.bf16.mxu0 0
        %2400 = vmatpush1.bf16.msra.mxu0 0
        %2401 = vmatprep.mubr.bf16.mxu0 0
        %2402 = vmatmul.mubr.bf16.gmra.mrb[0].mxu0 %v2319
        %v2403 = vpop.f32.mrb[0].mxu0
        %v2404 = vadd.f32 %v2320, %v2403
        %v2405 = vpop.f32.mrb[0].mxu0
        %v2406 = vpop.f32.mrb[0].mxu0
        %v2407 = vadd.f32 %v2320, %v2406
        %v2408 = vpop.f32.mrb[0].mxu0
        %2409 = vdwg.mxu0
        %v2410 = vadd.f32 %v2404, %v1093
        %v2411 = vadd.f32 %v2407, %v1094
        %v2412 = vld [vmem:[%s558 + $0xa] ss:$0 sm:$0xff]
        %v2413 = vld [vmem:[%s558 + $0x12] ss:$0 sm:$0xff]
        %2414 = vadd.xlane.f32.xlu0 %v2410
        %v2415 = vpop.xlane.xlu0 %2414
        %2416 = vadd.xlane.f32.xlu0 %v2411
        %v2417 = vpop.xlane.xlu0 %2416
        %v2418 = vrcp.pop 128.0
        %v2419 = vmul.f32 %v2415, %v2418
        %v2420 = vmul.f32 %v2417, %v2418
        %v2421 = vsub.f32 %v2410, %v2419
        %v2422 = vsub.f32 %v2411, %v2420
        %v2423 = vmul.f32 %v2421, %v2421
        %v2424 = vmul.f32 %v2422, %v2422
        %2425 = vadd.xlane.f32.xlu0 %v2423
        %v2426 = vpop.xlane.xlu0 %2425
        %2427 = vadd.xlane.f32.xlu0 %v2424
        %v2428 = vpop.xlane.xlu0 %2427
        %v2429 = vmul.f32 %v2426, %v2418
        %v2430 = vmul.f32 %v2428, %v2418
        %v2431 = vadd.f32 %v2429, 1e-12
        %v2432 = vadd.f32 %v2430, 1e-12
        %v2433 = vrsqrt.pop %v2431
        %v2434 = vrsqrt.pop %v2432
        %v2435 = vmul.f32 %v2421, %v2433
        %v2436 = vmul.f32 %v2422, %v2434
        %v2437 = vmul.f32 %v2435, %v2412
        %v2438 = vmul.f32 %v2436, %v2412
        %v2439 = vadd.f32 %v2437, %v2413
        %v2440 = vadd.f32 %v2438, %v2413
        %v2441 = vld [vmem:[%s540] sm:$0xff]
        %v2442 = vld [vmem:[%s540 + $0x8] sm:$0xff]
        %v2443 = vld [vmem:[%s540 + $0x10] sm:$0xff]
        %v2444 = vld [vmem:[%s540 + $0x18] sm:$0xff]
        %v2445 = vld [vmem:[%s540 + $0x20] sm:$0xff]
        %v2446 = vld [vmem:[%s540 + $0x28] sm:$0xff]
        %v2447 = vld [vmem:[%s540 + $0x30] sm:$0xff]
        %v2448 = vld [vmem:[%s540 + $0x38] sm:$0xff]
        %v2449 = vld [vmem:[%s540 + $0x40] sm:$0xff]
        %v2450 = vld [vmem:[%s540 + $0x48] sm:$0xff]
        %v2451 = vld [vmem:[%s540 + $0x50] sm:$0xff]
        %v2452 = vld [vmem:[%s540 + $0x58] sm:$0xff]
        %v2453 = vld [vmem:[%s540 + $0x60] sm:$0xff]
        %v2454 = vld [vmem:[%s540 + $0x68] sm:$0xff]
        %v2455 = vld [vmem:[%s540 + $0x70] sm:$0xff]
        %v2456 = vld [vmem:[%s540 + $0x78] sm:$0xff]
        %v2457 = vld [vmem:[%s540 + $0x80] sm:$0xff]
        %v2458 = vld [vmem:[%s540 + $0x88] sm:$0xff]
        %v2459 = vld [vmem:[%s540 + $0x90] sm:$0xff]
        %v2460 = vld [vmem:[%s540 + $0x98] sm:$0xff]
        %v2461 = vld [vmem:[%s540 + $0xa0] sm:$0xff]
        %v2462 = vld [vmem:[%s540 + $0xa8] sm:$0xff]
        %v2463 = vld [vmem:[%s540 + $0xb0] sm:$0xff]
        %v2464 = vld [vmem:[%s540 + $0xb8] sm:$0xff]
        %v2465 = vld [vmem:[%s540 + $0xc0] sm:$0xff]
        %v2466 = vld [vmem:[%s540 + $0xc8] sm:$0xff]
        %v2467 = vld [vmem:[%s540 + $0xd0] sm:$0xff]
        %v2468 = vld [vmem:[%s540 + $0xd8] sm:$0xff]
        %v2469 = vld [vmem:[%s540 + $0xe0] sm:$0xff]
        %v2470 = vld [vmem:[%s540 + $0xe8] sm:$0xff]
        %v2471 = vld [vmem:[%s540 + $0xf0] sm:$0xff]
        %v2472 = vld [vmem:[%s540 + $0xf8] sm:$0xff]
        %v2473 = vpack.c.bf16 %v2440, %v2439
        %v2474 = vld [vmem:[%s558] ss:$8 sm:$0xf]
        %v2476 = vlaneseq
        %v2477 = vshrl.u32 %v2476, 7
        %v2478 = vsub.s32 0, %v2477
        %v2479 = vrot.slane %v2474, %v2478
        %v2480 = vlaneseq
        %v2481 = vshrl.u32 %v2480, 7
        %v2482 = vsub.s32 1, %v2481
        %v2483 = vrot.slane %v2474, %v2482
        %v2484 = vlaneseq
        %v2485 = vshrl.u32 %v2484, 7
        %v2486 = vsub.s32 2, %v2485
        %v2487 = vrot.slane %v2474, %v2486
        %v2488 = vlaneseq
        %v2489 = vshrl.u32 %v2488, 7
        %v2490 = vsub.s32 3, %v2489
        %v2491 = vrot.slane %v2474, %v2490
        %v2528 = vunpack.c.l.b16 %v2441
        %v2529 = vunpack.c.h.b16 %v2441
        %v2530 = vunpack.c.l.b16 %v2442
        %v2531 = vunpack.c.h.b16 %v2442
        %v2532 = vunpack.c.l.b16 %v2443
        %v2533 = vunpack.c.h.b16 %v2443
        %v2534 = vunpack.c.l.b16 %v2444
        %v2535 = vunpack.c.h.b16 %v2444
        %v2536 = vunpack.c.l.b16 %v2445
        %v2537 = vunpack.c.h.b16 %v2445
        %v2538 = vunpack.c.l.b16 %v2446
        %v2539 = vunpack.c.h.b16 %v2446
        %v2540 = vunpack.c.l.b16 %v2447
        %v2541 = vunpack.c.h.b16 %v2447
        %v2542 = vunpack.c.l.b16 %v2448
        %v2543 = vunpack.c.h.b16 %v2448
        %v2544 = vunpack.c.l.b16 %v2449
        %v2545 = vunpack.c.h.b16 %v2449
        %v2546 = vunpack.c.l.b16 %v2450
        %v2547 = vunpack.c.h.b16 %v2450
        %v2548 = vunpack.c.l.b16 %v2451
        %v2549 = vunpack.c.h.b16 %v2451
        %v2550 = vunpack.c.l.b16 %v2452
        %v2551 = vunpack.c.h.b16 %v2452
        %v2552 = vunpack.c.l.b16 %v2453
        %v2553 = vunpack.c.h.b16 %v2453
        %v2554 = vunpack.c.l.b16 %v2454
        %v2555 = vunpack.c.h.b16 %v2454
        %v2556 = vunpack.c.l.b16 %v2455
        %v2557 = vunpack.c.h.b16 %v2455
        %v2558 = vunpack.c.l.b16 %v2456
        %v2559 = vunpack.c.h.b16 %v2456
        %v2560 = vunpack.c.l.b16 %v2457
        %v2561 = vunpack.c.h.b16 %v2457
        %v2562 = vunpack.c.l.b16 %v2458
        %v2563 = vunpack.c.h.b16 %v2458
        %v2564 = vunpack.c.l.b16 %v2459
        %v2565 = vunpack.c.h.b16 %v2459
        %v2566 = vunpack.c.l.b16 %v2460
        %v2567 = vunpack.c.h.b16 %v2460
        %v2568 = vunpack.c.l.b16 %v2461
        %v2569 = vunpack.c.h.b16 %v2461
        %v2570 = vunpack.c.l.b16 %v2462
        %v2571 = vunpack.c.h.b16 %v2462
        %v2572 = vunpack.c.l.b16 %v2463
        %v2573 = vunpack.c.h.b16 %v2463
        %v2574 = vunpack.c.l.b16 %v2464
        %v2575 = vunpack.c.h.b16 %v2464
        %v2576 = vunpack.c.l.b16 %v2465
        %v2577 = vunpack.c.h.b16 %v2465
        %v2578 = vunpack.c.l.b16 %v2466
        %v2579 = vunpack.c.h.b16 %v2466
        %v2580 = vunpack.c.l.b16 %v2467
        %v2581 = vunpack.c.h.b16 %v2467
        %v2582 = vunpack.c.l.b16 %v2468
        %v2583 = vunpack.c.h.b16 %v2468
        %v2584 = vunpack.c.l.b16 %v2469
        %v2585 = vunpack.c.h.b16 %v2469
        %v2586 = vunpack.c.l.b16 %v2470
        %v2587 = vunpack.c.h.b16 %v2470
        %v2588 = vunpack.c.l.b16 %v2471
        %v2589 = vunpack.c.h.b16 %v2471
        %v2590 = vunpack.c.l.b16 %v2472
        %v2591 = vunpack.c.h.b16 %v2472
        %v2592 = vpack.c.b16 %v2532, %v2528
        %v2593 = vpack.c.b16 %v2533, %v2529
        %v2594 = vpack.c.b16 %v2534, %v2530
        %v2595 = vpack.c.b16 %v2535, %v2531
        %v2596 = vpack.c.b16 %v2540, %v2536
        %v2597 = vpack.c.b16 %v2541, %v2537
        %v2598 = vpack.c.b16 %v2542, %v2538
        %v2599 = vpack.c.b16 %v2543, %v2539
        %v2600 = vpack.c.b16 %v2548, %v2544
        %v2601 = vpack.c.b16 %v2549, %v2545
        %v2602 = vpack.c.b16 %v2550, %v2546
        %v2603 = vpack.c.b16 %v2551, %v2547
        %v2604 = vpack.c.b16 %v2556, %v2552
        %v2605 = vpack.c.b16 %v2557, %v2553
        %v2606 = vpack.c.b16 %v2558, %v2554
        %v2607 = vpack.c.b16 %v2559, %v2555
        %v2608 = vpack.c.b16 %v2564, %v2560
        %v2609 = vpack.c.b16 %v2565, %v2561
        %v2610 = vpack.c.b16 %v2566, %v2562
        %v2611 = vpack.c.b16 %v2567, %v2563
        %v2612 = vpack.c.b16 %v2572, %v2568
        %v2613 = vpack.c.b16 %v2573, %v2569
        %v2614 = vpack.c.b16 %v2574, %v2570
        %v2615 = vpack.c.b16 %v2575, %v2571
        %v2616 = vpack.c.b16 %v2580, %v2576
        %v2617 = vpack.c.b16 %v2581, %v2577
        %v2618 = vpack.c.b16 %v2582, %v2578
        %v2619 = vpack.c.b16 %v2583, %v2579
        %v2620 = vpack.c.b16 %v2588, %v2584
        %v2621 = vpack.c.b16 %v2589, %v2585
        %v2622 = vpack.c.b16 %v2590, %v2586
        %v2623 = vpack.c.b16 %v2591, %v2587
        %2656 = vmatprep.subr.bf16.mxu0 %v2593
        %2657 = vmatpush1.bf16.msra.mxu0 %v2592
        %2658 = vmatprep.subr.bf16.mxu0 %v2597
        %2659 = vmatpush1.bf16.msra.mxu0 %v2596
        %2660 = vmatprep.subr.bf16.mxu0 %v2601
        %2661 = vmatpush1.bf16.msra.mxu0 %v2600
        %2662 = vmatprep.subr.bf16.mxu0 %v2605
        %2663 = vmatpush1.bf16.msra.mxu0 %v2604
        %2664 = vmatprep.subr.bf16.mxu0 %v2609
        %2665 = vmatpush1.bf16.msra.mxu0 %v2608
        %2666 = vmatprep.subr.bf16.mxu0 %v2613
        %2667 = vmatpush1.bf16.msra.mxu0 %v2612
        %2668 = vmatprep.subr.bf16.mxu0 %v2617
        %2669 = vmatpush1.bf16.msra.mxu0 %v2616
        %2670 = vmatprep.subr.bf16.mxu0 %v2621
        %2671 = vmatpush1.bf16.msra.mxu0 %v2620
        %2672 = vmatprep.subr.bf16.mxu0 0
        %2673 = vmatpush1.bf16.msra.mxu0 0
        %2674 = vmatprep.subr.bf16.mxu0 0
        %2675 = vmatpush1.bf16.msra.mxu0 0
        %2676 = vmatprep.subr.bf16.mxu0 0
        %2677 = vmatpush1.bf16.msra.mxu0 0
        %2678 = vmatprep.subr.bf16.mxu0 0
        %2679 = vmatpush1.bf16.msra.mxu0 0
        %2680 = vmatprep.subr.bf16.mxu0 0
        %2681 = vmatpush1.bf16.msra.mxu0 0
        %2682 = vmatprep.subr.bf16.mxu0 0
        %2683 = vmatpush1.bf16.msra.mxu0 0
        %2684 = vmatprep.subr.bf16.mxu0 0
        %2685 = vmatpush1.bf16.msra.mxu0 0
        %2686 = vmatprep.subr.bf16.mxu0 0
        %2687 = vmatpush1.bf16.msra.mxu0 0
        %2688 = vmatprep.mubr.bf16.mxu0 0
        %2689 = vmatmul.mubr.bf16.gmra.mrb[0].mxu0 %v2473
        %v2690 = vpop.f32.mrb[0].mxu0
        %v2691 = vadd.f32 %v2479, %v2690
        %v2692 = vpop.f32.mrb[0].mxu0
        %v2693 = vadd.f32 %v2483, %v2692
        %v2694 = vpop.f32.mrb[0].mxu0
        %v2695 = vadd.f32 %v2479, %v2694
        %v2696 = vpop.f32.mrb[0].mxu0
        %v2697 = vadd.f32 %v2483, %v2696
        %2698 = vdwg.mxu0
        %2699 = vmatprep.subr.bf16.mxu0 %v2595
        %2700 = vmatpush1.bf16.msra.mxu0 %v2594
        %2701 = vmatprep.subr.bf16.mxu0 %v2599
        %2702 = vmatpush1.bf16.msra.mxu0 %v2598
        %2703 = vmatprep.subr.bf16.mxu0 %v2603
        %2704 = vmatpush1.bf16.msra.mxu0 %v2602
        %2705 = vmatprep.subr.bf16.mxu0 %v2607
        %2706 = vmatpush1.bf16.msra.mxu0 %v2606
        %2707 = vmatprep.subr.bf16.mxu0 %v2611
        %2708 = vmatpush1.bf16.msra.mxu0 %v2610
        %2709 = vmatprep.subr.bf16.mxu0 %v2615
        %2710 = vmatpush1.bf16.msra.mxu0 %v2614
        %2711 = vmatprep.subr.bf16.mxu0 %v2619
        %2712 = vmatpush1.bf16.msra.mxu0 %v2618
        %2713 = vmatprep.subr.bf16.mxu0 %v2623
        %2714 = vmatpush1.bf16.msra.mxu0 %v2622
        %2715 = vmatprep.subr.bf16.mxu0 0
        %2716 = vmatpush1.bf16.msra.mxu0 0
        %2717 = vmatprep.subr.bf16.mxu0 0
        %2718 = vmatpush1.bf16.msra.mxu0 0
        %2719 = vmatprep.subr.bf16.mxu0 0
        %2720 = vmatpush1.bf16.msra.mxu0 0
        %2721 = vmatprep.subr.bf16.mxu0 0
        %2722 = vmatpush1.bf16.msra.mxu0 0
        %2723 = vmatprep.subr.bf16.mxu0 0
        %2724 = vmatpush1.bf16.msra.mxu0 0
        %2725 = vmatprep.subr.bf16.mxu0 0
        %2726 = vmatpush1.bf16.msra.mxu0 0
        %2727 = vmatprep.subr.bf16.mxu0 0
        %2728 = vmatpush1.bf16.msra.mxu0 0
        %2729 = vmatprep.subr.bf16.mxu0 0
        %2730 = vmatpush1.bf16.msra.mxu0 0
        %2731 = vmatprep.mubr.bf16.mxu0 0
        %2732 = vmatmul.mubr.bf16.gmra.mrb[0].mxu0 %v2473
        %v2733 = vpop.f32.mrb[0].mxu0
        %v2734 = vadd.f32 %v2487, %v2733
        %v2735 = vpop.f32.mrb[0].mxu0
        %v2736 = vadd.f32 %v2491, %v2735
        %v2737 = vpop.f32.mrb[0].mxu0
        %v2738 = vadd.f32 %v2487, %v2737
        %v2739 = vpop.f32.mrb[0].mxu0
        %v2740 = vadd.f32 %v2491, %v2739
        %2741 = vdwg.mxu0
        %v2742 = vmul.f32 %v2691, 0.5
        %v2743 = vmul.f32 %v2693, 0.5
        %v2744 = vmul.f32 %v2734, 0.5
        %v2745 = vmul.f32 %v2736, 0.5
        %v2746 = vmul.f32 %v2695, 0.5
        %v2747 = vmul.f32 %v2697, 0.5
        %v2748 = vmul.f32 %v2738, 0.5
        %v2749 = vmul.f32 %v2740, 0.5
        %v2750 = vmul.f32 %v2691, 0.044715
        %v2751 = vmul.f32 %v2693, 0.044715
        %v2752 = vmul.f32 %v2734, 0.044715
        %v2753 = vmul.f32 %v2736, 0.044715
        %v2754 = vmul.f32 %v2695, 0.044715
        %v2755 = vmul.f32 %v2697, 0.044715
        %v2756 = vmul.f32 %v2738, 0.044715
        %v2757 = vmul.f32 %v2740, 0.044715
        %v2758 = vmul.f32 %v2750, %v2691
        %v2759 = vmul.f32 %v2751, %v2693
        %v2760 = vmul.f32 %v2752, %v2734
        %v2761 = vmul.f32 %v2753, %v2736
        %v2762 = vmul.f32 %v2754, %v2695
        %v2763 = vmul.f32 %v2755, %v2697
        %v2764 = vmul.f32 %v2756, %v2738
        %v2765 = vmul.f32 %v2757, %v2740
        %v2766 = vmul.f32 %v2758, %v2691
        %v2767 = vmul.f32 %v2759, %v2693
        %v2768 = vmul.f32 %v2760, %v2734
        %v2769 = vmul.f32 %v2761, %v2736
        %v2770 = vmul.f32 %v2762, %v2695
        %v2771 = vmul.f32 %v2763, %v2697
        %v2772 = vmul.f32 %v2764, %v2738
        %v2773 = vmul.f32 %v2765, %v2740
        %v2774 = vadd.f32 %v2691, %v2766
        %v2775 = vadd.f32 %v2693, %v2767
        %v2776 = vadd.f32 %v2734, %v2768
        %v2777 = vadd.f32 %v2736, %v2769
        %v2778 = vadd.f32 %v2695, %v2770
        %v2779 = vadd.f32 %v2697, %v2771
        %v2780 = vadd.f32 %v2738, %v2772
        %v2781 = vadd.f32 %v2740, %v2773
        %v2782 = vmul.f32 %v2774, 0.7978846
        %v2783 = vmul.f32 %v2775, 0.7978846
        %v2784 = vmul.f32 %v2776, 0.7978846
        %v2785 = vmul.f32 %v2777, 0.7978846
        %v2786 = vmul.f32 %v2778, 0.7978846
        %v2787 = vmul.f32 %v2779, 0.7978846
        %v2788 = vmul.f32 %v2780, 0.7978846
        %v2789 = vmul.f32 %v2781, 0.7978846
        %v2790 = vtanh.pop %v2782
        %v2791 = vtanh.pop %v2783
        %v2792 = vtanh.pop %v2784
        %v2793 = vtanh.pop %v2785
        %v2794 = vtanh.pop %v2786
        %v2795 = vtanh.pop %v2787
        %v2796 = vtanh.pop %v2788
        %v2797 = vtanh.pop %v2789
        %v2798 = vadd.f32 %v2790, 1.0
        %v2799 = vadd.f32 %v2791, 1.0
        %v2800 = vadd.f32 %v2792, 1.0
        %v2801 = vadd.f32 %v2793, 1.0
        %v2802 = vadd.f32 %v2794, 1.0
        %v2803 = vadd.f32 %v2795, 1.0
        %v2804 = vadd.f32 %v2796, 1.0
        %v2805 = vadd.f32 %v2797, 1.0
        %v2806 = vmul.f32 %v2742, %v2798
        %v2807 = vmul.f32 %v2743, %v2799
        %v2808 = vmul.f32 %v2744, %v2800
        %v2809 = vmul.f32 %v2745, %v2801
        %v2810 = vmul.f32 %v2746, %v2802
        %v2811 = vmul.f32 %v2747, %v2803
        %v2812 = vmul.f32 %v2748, %v2804
        %v2813 = vmul.f32 %v2749, %v2805
        %v2814 = vld [vmem:[%s549] sm:$0xf]
        %v2815 = vld [vmem:[%s549 + $0x4] sm:$0xf]
        %v2816 = vld [vmem:[%s549 + $0x8] sm:$0xf]
        %v2817 = vld [vmem:[%s549 + $0xc] sm:$0xf]
        %v2818 = vld [vmem:[%s549 + $0x10] sm:$0xf]
        %v2819 = vld [vmem:[%s549 + $0x14] sm:$0xf]
        %v2820 = vld [vmem:[%s549 + $0x18] sm:$0xf]
        %v2821 = vld [vmem:[%s549 + $0x1c] sm:$0xf]
        %v2822 = vld [vmem:[%s549 + $0x20] sm:$0xf]
        %v2823 = vld [vmem:[%s549 + $0x24] sm:$0xf]
        %v2824 = vld [vmem:[%s549 + $0x28] sm:$0xf]
        %v2825 = vld [vmem:[%s549 + $0x2c] sm:$0xf]
        %v2826 = vld [vmem:[%s549 + $0x30] sm:$0xf]
        %v2827 = vld [vmem:[%s549 + $0x34] sm:$0xf]
        %v2828 = vld [vmem:[%s549 + $0x38] sm:$0xf]
        %v2829 = vld [vmem:[%s549 + $0x3c] sm:$0xf]
        %v2830 = vld [vmem:[%s549 + $0x40] sm:$0xf]
        %v2831 = vld [vmem:[%s549 + $0x44] sm:$0xf]
        %v2832 = vld [vmem:[%s549 + $0x48] sm:$0xf]
        %v2833 = vld [vmem:[%s549 + $0x4c] sm:$0xf]
        %v2834 = vld [vmem:[%s549 + $0x50] sm:$0xf]
        %v2835 = vld [vmem:[%s549 + $0x54] sm:$0xf]
        %v2836 = vld [vmem:[%s549 + $0x58] sm:$0xf]
        %v2837 = vld [vmem:[%s549 + $0x5c] sm:$0xf]
        %v2838 = vld [vmem:[%s549 + $0x60] sm:$0xf]
        %v2839 = vld [vmem:[%s549 + $0x64] sm:$0xf]
        %v2840 = vld [vmem:[%s549 + $0x68] sm:$0xf]
        %v2841 = vld [vmem:[%s549 + $0x6c] sm:$0xf]
        %v2842 = vld [vmem:[%s549 + $0x70] sm:$0xf]
        %v2843 = vld [vmem:[%s549 + $0x74] sm:$0xf]
        %v2844 = vld [vmem:[%s549 + $0x78] sm:$0xf]
        %v2845 = vld [vmem:[%s549 + $0x7c] sm:$0xf]
        %v2846 = vld [vmem:[%s549 + $0x80] sm:$0xf]
        %v2847 = vld [vmem:[%s549 + $0x84] sm:$0xf]
        %v2848 = vld [vmem:[%s549 + $0x88] sm:$0xf]
        %v2849 = vld [vmem:[%s549 + $0x8c] sm:$0xf]
        %v2850 = vld [vmem:[%s549 + $0x90] sm:$0xf]
        %v2851 = vld [vmem:[%s549 + $0x94] sm:$0xf]
        %v2852 = vld [vmem:[%s549 + $0x98] sm:$0xf]
        %v2853 = vld [vmem:[%s549 + $0x9c] sm:$0xf]
        %v2854 = vld [vmem:[%s549 + $0xa0] sm:$0xf]
        %v2855 = vld [vmem:[%s549 + $0xa4] sm:$0xf]
        %v2856 = vld [vmem:[%s549 + $0xa8] sm:$0xf]
        %v2857 = vld [vmem:[%s549 + $0xac] sm:$0xf]
        %v2858 = vld [vmem:[%s549 + $0xb0] sm:$0xf]
        %v2859 = vld [vmem:[%s549 + $0xb4] sm:$0xf]
        %v2860 = vld [vmem:[%s549 + $0xb8] sm:$0xf]
        %v2861 = vld [vmem:[%s549 + $0xbc] sm:$0xf]
        %v2862 = vld [vmem:[%s549 + $0xc0] sm:$0xf]
        %v2863 = vld [vmem:[%s549 + $0xc4] sm:$0xf]
        %v2864 = vld [vmem:[%s549 + $0xc8] sm:$0xf]
        %v2865 = vld [vmem:[%s549 + $0xcc] sm:$0xf]
        %v2866 = vld [vmem:[%s549 + $0xd0] sm:$0xf]
        %v2867 = vld [vmem:[%s549 + $0xd4] sm:$0xf]
        %v2868 = vld [vmem:[%s549 + $0xd8] sm:$0xf]
        %v2869 = vld [vmem:[%s549 + $0xdc] sm:$0xf]
        %v2870 = vld [vmem:[%s549 + $0xe0] sm:$0xf]
        %v2871 = vld [vmem:[%s549 + $0xe4] sm:$0xf]
        %v2872 = vld [vmem:[%s549 + $0xe8] sm:$0xf]
        %v2873 = vld [vmem:[%s549 + $0xec] sm:$0xf]
        %v2874 = vld [vmem:[%s549 + $0xf0] sm:$0xf]
        %v2875 = vld [vmem:[%s549 + $0xf4] sm:$0xf]
        %v2876 = vld [vmem:[%s549 + $0xf8] sm:$0xf]
        %v2877 = vld [vmem:[%s549 + $0xfc] sm:$0xf]
        %v2878 = vpack.c.bf16 %v2810, %v2806
        %v2879 = vpack.c.bf16 %v2811, %v2807
        %v2880 = vpack.c.bf16 %v2812, %v2808
        %v2881 = vpack.c.bf16 %v2813, %v2809
        %v2882 = vld [vmem:[%s558 + $0x1a] ss:$0 sm:$0xff]
        %v2947 = vunpack.c.l.b16 %v2814
        %v2948 = vunpack.c.l.b16 %v2815
        %v2949 = vunpack.c.l.b16 %v2816
        %v2950 = vunpack.c.l.b16 %v2817
        %v2951 = vunpack.c.l.b16 %v2818
        %v2952 = vunpack.c.l.b16 %v2819
        %v2953 = vunpack.c.l.b16 %v2820
        %v2954 = vunpack.c.l.b16 %v2821
        %v2955 = vunpack.c.l.b16 %v2822
        %v2956 = vunpack.c.l.b16 %v2823
        %v2957 = vunpack.c.l.b16 %v2824
        %v2958 = vunpack.c.l.b16 %v2825
        %v2959 = vunpack.c.l.b16 %v2826
        %v2960 = vunpack.c.l.b16 %v2827
        %v2961 = vunpack.c.l.b16 %v2828
        %v2962 = vunpack.c.l.b16 %v2829
        %v2963 = vunpack.c.l.b16 %v2830
        %v2964 = vunpack.c.l.b16 %v2831
        %v2965 = vunpack.c.l.b16 %v2832
        %v2966 = vunpack.c.l.b16 %v2833
        %v2967 = vunpack.c.l.b16 %v2834
        %v2968 = vunpack.c.l.b16 %v2835
        %v2969 = vunpack.c.l.b16 %v2836
        %v2970 = vunpack.c.l.b16 %v2837
        %v2971 = vunpack.c.l.b16 %v2838
        %v2972 = vunpack.c.l.b16 %v2839
        %v2973 = vunpack.c.l.b16 %v2840
        %v2974 = vunpack.c.l.b16 %v2841
        %v2975 = vunpack.c.l.b16 %v2842
        %v2976 = vunpack.c.l.b16 %v2843
        %v2977 = vunpack.c.l.b16 %v2844
        %v2978 = vunpack.c.l.b16 %v2845
        %v2979 = vunpack.c.l.b16 %v2846
        %v2980 = vunpack.c.l.b16 %v2847
        %v2981 = vunpack.c.l.b16 %v2848
        %v2982 = vunpack.c.l.b16 %v2849
        %v2983 = vunpack.c.l.b16 %v2850
        %v2984 = vunpack.c.l.b16 %v2851
        %v2985 = vunpack.c.l.b16 %v2852
        %v2986 = vunpack.c.l.b16 %v2853
        %v2987 = vunpack.c.l.b16 %v2854
        %v2988 = vunpack.c.l.b16 %v2855
        %v2989 = vunpack.c.l.b16 %v2856
        %v2990 = vunpack.c.l.b16 %v2857
        %v2991 = vunpack.c.l.b16 %v2858
        %v2992 = vunpack.c.l.b16 %v2859
        %v2993 = vunpack.c.l.b16 %v2860
        %v2994 = vunpack.c.l.b16 %v2861
        %v2995 = vunpack.c.l.b16 %v2862
        %v2996 = vunpack.c.l.b16 %v2863
        %v2997 = vunpack.c.l.b16 %v2864
        %v2998 = vunpack.c.l.b16 %v2865
        %v2999 = vunpack.c.l.b16 %v2866
        %v3000 = vunpack.c.l.b16 %v2867
        %v3001 = vunpack.c.l.b16 %v2868
        %v3002 = vunpack.c.l.b16 %v2869
        %v3003 = vunpack.c.l.b16 %v2870
        %v3004 = vunpack.c.l.b16 %v2871
        %v3005 = vunpack.c.l.b16 %v2872
        %v3006 = vunpack.c.l.b16 %v2873
        %v3007 = vunpack.c.l.b16 %v2874
        %v3008 = vunpack.c.l.b16 %v2875
        %v3009 = vunpack.c.l.b16 %v2876
        %v3010 = vunpack.c.l.b16 %v2877
        %v3011 = vpack.c.b16 %v2948, %v2947
        %v3012 = vpack.c.b16 %v2950, %v2949
        %v3013 = vpack.c.b16 %v2952, %v2951
        %v3014 = vpack.c.b16 %v2954, %v2953
        %v3015 = vpack.c.b16 %v2956, %v2955
        %v3016 = vpack.c.b16 %v2958, %v2957
        %v3017 = vpack.c.b16 %v2960, %v2959
        %v3018 = vpack.c.b16 %v2962, %v2961
        %v3019 = vpack.c.b16 %v2964, %v2963
        %v3020 = vpack.c.b16 %v2966, %v2965
        %v3021 = vpack.c.b16 %v2968, %v2967
        %v3022 = vpack.c.b16 %v2970, %v2969
        %v3023 = vpack.c.b16 %v2972, %v2971
        %v3024 = vpack.c.b16 %v2974, %v2973
        %v3025 = vpack.c.b16 %v2976, %v2975
        %v3026 = vpack.c.b16 %v2978, %v2977
        %v3027 = vpack.c.b16 %v2980, %v2979
        %v3028 = vpack.c.b16 %v2982, %v2981
        %v3029 = vpack.c.b16 %v2984, %v2983
        %v3030 = vpack.c.b16 %v2986, %v2985
        %v3031 = vpack.c.b16 %v2988, %v2987
        %v3032 = vpack.c.b16 %v2990, %v2989
        %v3033 = vpack.c.b16 %v2992, %v2991
        %v3034 = vpack.c.b16 %v2994, %v2993
        %v3035 = vpack.c.b16 %v2996, %v2995
        %v3036 = vpack.c.b16 %v2998, %v2997
        %v3037 = vpack.c.b16 %v3000, %v2999
        %v3038 = vpack.c.b16 %v3002, %v3001
        %v3039 = vpack.c.b16 %v3004, %v3003
        %v3040 = vpack.c.b16 %v3006, %v3005
        %v3041 = vpack.c.b16 %v3008, %v3007
        %v3042 = vpack.c.b16 %v3010, %v3009
        %3075 = vmatprep.subr.bf16.mxu0 0
        %3076 = vmatpush1.bf16.msra.mxu0 %v3011
        %3077 = vmatprep.subr.bf16.mxu0 0
        %3078 = vmatpush1.bf16.msra.mxu0 %v3012
        %3079 = vmatprep.subr.bf16.mxu0 0
        %3080 = vmatpush1.bf16.msra.mxu0 %v3013
        %3081 = vmatprep.subr.bf16.mxu0 0
        %3082 = vmatpush1.bf16.msra.mxu0 %v3014
        %3083 = vmatprep.subr.bf16.mxu0 0
        %3084 = vmatpush1.bf16.msra.mxu0 %v3015
        %3085 = vmatprep.subr.bf16.mxu0 0
        %3086 = vmatpush1.bf16.msra.mxu0 %v3016
        %3087 = vmatprep.subr.bf16.mxu0 0
        %3088 = vmatpush1.bf16.msra.mxu0 %v3017
        %3089 = vmatprep.subr.bf16.mxu0 0
        %3090 = vmatpush1.bf16.msra.mxu0 %v3018
        %3091 = vmatprep.subr.bf16.mxu0 0
        %3092 = vmatpush1.bf16.msra.mxu0 %v3019
        %3093 = vmatprep.subr.bf16.mxu0 0
        %3094 = vmatpush1.bf16.msra.mxu0 %v3020
        %3095 = vmatprep.subr.bf16.mxu0 0
        %3096 = vmatpush1.bf16.msra.mxu0 %v3021
        %3097 = vmatprep.subr.bf16.mxu0 0
        %3098 = vmatpush1.bf16.msra.mxu0 %v3022
        %3099 = vmatprep.subr.bf16.mxu0 0
        %3100 = vmatpush1.bf16.msra.mxu0 %v3023
        %3101 = vmatprep.subr.bf16.mxu0 0
        %3102 = vmatpush1.bf16.msra.mxu0 %v3024
        %3103 = vmatprep.subr.bf16.mxu0 0
        %3104 = vmatpush1.bf16.msra.mxu0 %v3025
        %3105 = vmatprep.subr.bf16.mxu0 0
        %3106 = vmatpush1.bf16.msra.mxu0 %v3026
        %3107 = vmatprep.mubr.bf16.mxu0 %v2879
        %3108 = vmatmul.mubr.bf16.gmra.mrb[0].mxu0 %v2878
        %v3109 = vpop.f32.mrb[0].mxu0
        %v3110 = vadd.f32 %v2882, %v3109
        %v3111 = vpop.f32.mrb[0].mxu0
        %v3112 = vpop.f32.mrb[0].mxu0
        %v3113 = vadd.f32 %v2882, %v3112
        %v3114 = vpop.f32.mrb[0].mxu0
        %3115 = vdwg.mxu0
        %3116 = vmatprep.subr.bf16.mxu0 0
        %3117 = vmatpush1.bf16.msra.mxu0 %v3027
        %3118 = vmatprep.subr.bf16.mxu0 0
        %3119 = vmatpush1.bf16.msra.mxu0 %v3028
        %3120 = vmatprep.subr.bf16.mxu0 0
        %3121 = vmatpush1.bf16.msra.mxu0 %v3029
        %3122 = vmatprep.subr.bf16.mxu0 0
        %3123 = vmatpush1.bf16.msra.mxu0 %v3030
        %3124 = vmatprep.subr.bf16.mxu0 0
        %3125 = vmatpush1.bf16.msra.mxu0 %v3031
        %3126 = vmatprep.subr.bf16.mxu0 0
        %3127 = vmatpush1.bf16.msra.mxu0 %v3032
        %3128 = vmatprep.subr.bf16.mxu0 0
        %3129 = vmatpush1.bf16.msra.mxu0 %v3033
        %3130 = vmatprep.subr.bf16.mxu0 0
        %3131 = vmatpush1.bf16.msra.mxu0 %v3034
        %3132 = vmatprep.subr.bf16.mxu0 0
        %3133 = vmatpush1.bf16.msra.mxu0 %v3035
        %3134 = vmatprep.subr.bf16.mxu0 0
        %3135 = vmatpush1.bf16.msra.mxu0 %v3036
        %3136 = vmatprep.subr.bf16.mxu0 0
        %3137 = vmatpush1.bf16.msra.mxu0 %v3037
        %3138 = vmatprep.subr.bf16.mxu0 0
        %3139 = vmatpush1.bf16.msra.mxu0 %v3038
        %3140 = vmatprep.subr.bf16.mxu0 0
        %3141 = vmatpush1.bf16.msra.mxu0 %v3039
        %3142 = vmatprep.subr.bf16.mxu0 0
        %3143 = vmatpush1.bf16.msra.mxu0 %v3040
        %3144 = vmatprep.subr.bf16.mxu0 0
        %3145 = vmatpush1.bf16.msra.mxu0 %v3041
        %3146 = vmatprep.subr.bf16.mxu0 0
        %3147 = vmatpush1.bf16.msra.mxu0 %v3042
        %3148 = vmatprep.mubr.bf16.mxu0 %v2881
        %3149 = vmatmul.mubr.bf16.gmra.mrb[0].mxu0 %v2880
        %v3150 = vpop.f32.mrb[0].mxu0
        %v3151 = vadd.f32 %v3110, %v3150
        %v3152 = vpop.f32.mrb[0].mxu0
        %v3153 = vpop.f32.mrb[0].mxu0
        %v3154 = vadd.f32 %v3113, %v3153
        %v3155 = vpop.f32.mrb[0].mxu0
        %3156 = vdwg.mxu0
        %v3157 = vadd.f32 %v3151, %v2439
        %v3158 = vadd.f32 %v3154, %v2440
        %v3159 = vld [vmem:[%s558 + $0x3] ss:$0 sm:$0xff]
        %v3160 = vld [vmem:[%s558 + $0xb] ss:$0 sm:$0xff]
        %3161 = vadd.xlane.f32.xlu0 %v3157
        %v3162 = vpop.xlane.xlu0 %3161
        %3163 = vadd.xlane.f32.xlu0 %v3158
        %v3164 = vpop.xlane.xlu0 %3163
        %v3165 = vmul.f32 %v3162, %v2418
        %v3166 = vmul.f32 %v3164, %v2418
        %v3167 = vsub.f32 %v3157, %v3165
        %v3168 = vsub.f32 %v3158, %v3166
        %v3169 = vmul.f32 %v3167, %v3167
        %v3170 = vmul.f32 %v3168, %v3168
        %3171 = vadd.xlane.f32.xlu0 %v3169
        %v3172 = vpop.xlane.xlu0 %3171
        %3173 = vadd.xlane.f32.xlu0 %v3170
        %v3174 = vpop.xlane.xlu0 %3173
        %v3175 = vmul.f32 %v3172, %v2418
        %v3176 = vmul.f32 %v3174, %v2418
        %v3177 = vadd.f32 %v3175, 1e-12
        %v3178 = vadd.f32 %v3176, 1e-12
        %v3179 = vrsqrt.pop %v3177
        %v3180 = vrsqrt.pop %v3178
        %v3181 = vmul.f32 %v3167, %v3179
        %v3182 = vmul.f32 %v3168, %v3180
        %v3183 = vmul.f32 %v3181, %v3159
        %v3184 = vmul.f32 %v3182, %v3159
        %v3185 = vadd.f32 %v3183, %v3160
        %v3186 = vadd.f32 %v3184, %v3160
        %3187 = vst [vmem:[#allocation2] sm:$0xff] %v3185
        %3188 = vst [vmem:[#allocation2 + $0x8] sm:$0xff] %v3186
        %p3189 = scmp.eq.s32.totalorder %s27, 1
        // Predicated region
        $region109: #{tpu_custom_call.1} parent=67 // pred_check
          %p3190 = pneg %p3189
        $region110: #{tpu_custom_call.1} parent=67 // pred_check_branch
          %3192 = sbr.rel (%p3190) target = $region112
        $region111: #{tpu_custom_call.1} parent=67 // pred_region
          %v3193 = vld [vmem:[#allocation2] sm:$0x1]
          %v3194 = vld [vmem:[#allocation2 + $0x8] sm:$0x1]
          %v3196 = vrot.slane %v3194, 7
          %vm3198 = vcmask 1040384
          %v3199 = vsel %vm3198, %v3193, %v3196
          %v3200 = vld [vmem:[#allocation13] sm:$0xf]
          %v3201 = vld [vmem:[#allocation13 + $0x4] sm:$0xf]
          %v3202 = vld [vmem:[#allocation13 + $0x8] sm:$0xf]
          %v3203 = vld [vmem:[#allocation13 + $0xc] sm:$0xf]
          %v3204 = vld [vmem:[#allocation13 + $0x10] sm:$0xf]
          %v3205 = vld [vmem:[#allocation13 + $0x14] sm:$0xf]
          %v3206 = vld [vmem:[#allocation13 + $0x18] sm:$0xf]
          %v3207 = vld [vmem:[#allocation13 + $0x1c] sm:$0xf]
          %v3208 = vld [vmem:[#allocation13 + $0x20] sm:$0xf]
          %v3209 = vld [vmem:[#allocation13 + $0x24] sm:$0xf]
          %v3210 = vld [vmem:[#allocation13 + $0x28] sm:$0xf]
          %v3211 = vld [vmem:[#allocation13 + $0x2c] sm:$0xf]
          %v3212 = vld [vmem:[#allocation13 + $0x30] sm:$0xf]
          %v3213 = vld [vmem:[#allocation13 + $0x34] sm:$0xf]
          %v3214 = vld [vmem:[#allocation13 + $0x38] sm:$0xf]
          %v3215 = vld [vmem:[#allocation13 + $0x3c] sm:$0xf]
          %v3216 = vpack.c.bf16 %v3199, %v3199
          %v3217 = vld [vmem:[%s10] sm:$0x1]
          %v3218 = vlaneseq
          %v3219 = vshrl.u32 %v3218, 7
          %v3220 = vsub.s32 0, %v3219
          %v3221 = vrot.slane %v3217, %v3220
          %v3238 = vunpack.c.l.b16 %v3200
          %v3239 = vunpack.c.l.b16 %v3201
          %v3240 = vunpack.c.l.b16 %v3202
          %v3241 = vunpack.c.l.b16 %v3203
          %v3242 = vunpack.c.l.b16 %v3204
          %v3243 = vunpack.c.l.b16 %v3205
          %v3244 = vunpack.c.l.b16 %v3206
          %v3245 = vunpack.c.l.b16 %v3207
          %v3246 = vunpack.c.l.b16 %v3208
          %v3247 = vunpack.c.l.b16 %v3209
          %v3248 = vunpack.c.l.b16 %v3210
          %v3249 = vunpack.c.l.b16 %v3211
          %v3250 = vunpack.c.l.b16 %v3212
          %v3251 = vunpack.c.l.b16 %v3213
          %v3252 = vunpack.c.l.b16 %v3214
          %v3253 = vunpack.c.l.b16 %v3215
          %v3254 = vpack.c.b16 %v3239, %v3238
          %v3255 = vpack.c.b16 %v3241, %v3240
          %v3256 = vpack.c.b16 %v3243, %v3242
          %v3257 = vpack.c.b16 %v3245, %v3244
          %v3258 = vpack.c.b16 %v3247, %v3246
          %v3259 = vpack.c.b16 %v3249, %v3248
          %v3260 = vpack.c.b16 %v3251, %v3250
          %v3261 = vpack.c.b16 %v3253, %v3252
          %3270 = vmatprep.subr.bf16.mxu0 0
          %3271 = vmatpush1.bf16.msra.mxu0 %v3254
          %3272 = vmatprep.subr.bf16.mxu0 0
          %3273 = vmatpush1.bf16.msra.mxu0 %v3255
          %3274 = vmatprep.subr.bf16.mxu0 0
          %3275 = vmatpush1.bf16.msra.mxu0 %v3256
          %3276 = vmatprep.subr.bf16.mxu0 0
          %3277 = vmatpush1.bf16.msra.mxu0 %v3257
          %3278 = vmatprep.subr.bf16.mxu0 0
          %3279 = vmatpush1.bf16.msra.mxu0 %v3258
          %3280 = vmatprep.subr.bf16.mxu0 0
          %3281 = vmatpush1.bf16.msra.mxu0 %v3259
          %3282 = vmatprep.subr.bf16.mxu0 0
          %3283 = vmatpush1.bf16.msra.mxu0 %v3260
          %3284 = vmatprep.subr.bf16.mxu0 0
          %3285 = vmatpush1.bf16.msra.mxu0 %v3261
          %3286 = vmatprep.subr.bf16.mxu0 0
          %3287 = vmatpush1.bf16.msra.mxu0 0
          %3288 = vmatprep.subr.bf16.mxu0 0
          %3289 = vmatpush1.bf16.msra.mxu0 0
          %3290 = vmatprep.subr.bf16.mxu0 0
          %3291 = vmatpush1.bf16.msra.mxu0 0
          %3292 = vmatprep.subr.bf16.mxu0 0
          %3293 = vmatpush1.bf16.msra.mxu0 0
          %3294 = vmatprep.subr.bf16.mxu0 0
          %3295 = vmatpush1.bf16.msra.mxu0 0
          %3296 = vmatprep.subr.bf16.mxu0 0
          %3297 = vmatpush1.bf16.msra.mxu0 0
          %3298 = vmatprep.subr.bf16.mxu0 0
          %3299 = vmatpush1.bf16.msra.mxu0 0
          %3300 = vmatprep.subr.bf16.mxu0 0
          %3301 = vmatpush1.bf16.msra.mxu0 0
          %3302 = vmatprep.mubr.bf16.mxu0 0
          %3303 = vmatmul.mubr.bf16.gmra.mrb[0].mxu0 %v3216
          %v3304 = vpop.f32.mrb[0].mxu0
          %v3305 = vadd.f32 %v3221, %v3304
          %v3306 = vpop.f32.mrb[0].mxu0
          %v3307 = vpop.f32.mrb[0].mxu0
          %v3308 = vpop.f32.mrb[0].mxu0
          %3309 = vdwg.mxu0
          %v3310 = vtanh.pop %v3305
          %v3311 = vld [vmem:[#allocation14] sm:$0xf]
          %v3312 = vld [vmem:[#allocation14 + $0x4] sm:$0xf]
          %v3313 = vld [vmem:[#allocation14 + $0x8] sm:$0xf]
          %v3314 = vld [vmem:[#allocation14 + $0xc] sm:$0xf]
          %v3315 = vld [vmem:[#allocation14 + $0x10] sm:$0xf]
          %v3316 = vld [vmem:[#allocation14 + $0x14] sm:$0xf]
          %v3317 = vld [vmem:[#allocation14 + $0x18] sm:$0xf]
          %v3318 = vld [vmem:[#allocation14 + $0x1c] sm:$0xf]
          %v3319 = vld [vmem:[#allocation14 + $0x20] sm:$0xf]
          %v3320 = vld [vmem:[#allocation14 + $0x24] sm:$0xf]
          %v3321 = vld [vmem:[#allocation14 + $0x28] sm:$0xf]
          %v3322 = vld [vmem:[#allocation14 + $0x2c] sm:$0xf]
          %v3323 = vld [vmem:[#allocation14 + $0x30] sm:$0xf]
          %v3324 = vld [vmem:[#allocation14 + $0x34] sm:$0xf]
          %v3325 = vld [vmem:[#allocation14 + $0x38] sm:$0xf]
          %v3326 = vld [vmem:[#allocation14 + $0x3c] sm:$0xf]
          %v3327 = vpack.c.bf16 %v3310, %v3310
          %v3328 = vld [vmem:[%s10 + $0x1] sm:$0x1]
          %v3329 = vlaneseq
          %v3330 = vshrl.u32 %v3329, 7
          %v3331 = vsub.s32 0, %v3330
          %v3332 = vrot.slane %v3328, %v3331
          %v3349 = vunpack.c.l.b16 %v3311
          %v3350 = vunpack.c.l.b16 %v3312
          %v3351 = vunpack.c.l.b16 %v3313
          %v3352 = vunpack.c.l.b16 %v3314
          %v3353 = vunpack.c.l.b16 %v3315
          %v3354 = vunpack.c.l.b16 %v3316
          %v3355 = vunpack.c.l.b16 %v3317
          %v3356 = vunpack.c.l.b16 %v3318
          %v3357 = vunpack.c.l.b16 %v3319
          %v3358 = vunpack.c.l.b16 %v3320
          %v3359 = vunpack.c.l.b16 %v3321
          %v3360 = vunpack.c.l.b16 %v3322
          %v3361 = vunpack.c.l.b16 %v3323
          %v3362 = vunpack.c.l.b16 %v3324
          %v3363 = vunpack.c.l.b16 %v3325
          %v3364 = vunpack.c.l.b16 %v3326
          %v3365 = vpack.c.b16 %v3350, %v3349
          %v3366 = vpack.c.b16 %v3352, %v3351
          %v3367 = vpack.c.b16 %v3354, %v3353
          %v3368 = vpack.c.b16 %v3356, %v3355
          %v3369 = vpack.c.b16 %v3358, %v3357
          %v3370 = vpack.c.b16 %v3360, %v3359
          %v3371 = vpack.c.b16 %v3362, %v3361
          %v3372 = vpack.c.b16 %v3364, %v3363
          %3381 = vmatprep.subr.bf16.mxu0 0
          %3382 = vmatpush1.bf16.msra.mxu0 %v3365
          %3383 = vmatprep.subr.bf16.mxu0 0
          %3384 = vmatpush1.bf16.msra.mxu0 %v3366
          %3385 = vmatprep.subr.bf16.mxu0 0
          %3386 = vmatpush1.bf16.msra.mxu0 %v3367
          %3387 = vmatprep.subr.bf16.mxu0 0
          %3388 = vmatpush1.bf16.msra.mxu0 %v3368
          %3389 = vmatprep.subr.bf16.mxu0 0
          %3390 = vmatpush1.bf16.msra.mxu0 %v3369
          %3391 = vmatprep.subr.bf16.mxu0 0
          %3392 = vmatpush1.bf16.msra.mxu0 %v3370
          %3393 = vmatprep.subr.bf16.mxu0 0
          %3394 = vmatpush1.bf16.msra.mxu0 %v3371
          %3395 = vmatprep.subr.bf16.mxu0 0
          %3396 = vmatpush1.bf16.msra.mxu0 %v3372
          %3397 = vmatprep.subr.bf16.mxu0 0
          %3398 = vmatpush1.bf16.msra.mxu0 0
          %3399 = vmatprep.subr.bf16.mxu0 0
          %3400 = vmatpush1.bf16.msra.mxu0 0
          %3401 = vmatprep.subr.bf16.mxu0 0
          %3402 = vmatpush1.bf16.msra.mxu0 0
          %3403 = vmatprep.subr.bf16.mxu0 0
          %3404 = vmatpush1.bf16.msra.mxu0 0
          %3405 = vmatprep.subr.bf16.mxu0 0
          %3406 = vmatpush1.bf16.msra.mxu0 0
          %3407 = vmatprep.subr.bf16.mxu0 0
          %3408 = vmatpush1.bf16.msra.mxu0 0
          %3409 = vmatprep.subr.bf16.mxu0 0
          %3410 = vmatpush1.bf16.msra.mxu0 0
          %3411 = vmatprep.subr.bf16.mxu0 0
          %3412 = vmatpush1.bf16.msra.mxu0 0
          %3413 = vmatprep.mubr.bf16.mxu0 0
          %3414 = vmatmul.mubr.bf16.gmra.mrb[0].mxu0 %v3327
          %v3415 = vpop.f32.mrb[0].mxu0
          %v3416 = vadd.f32 %v3332, %v3415
          %v3417 = vpop.f32.mrb[0].mxu0
          %v3418 = vpop.f32.mrb[0].mxu0
          %v3419 = vpop.f32.mrb[0].mxu0
          %3420 = vdwg.mxu0
          %3421 = vst [vmem:[#allocation16] sm:$0x3] %v3416
        $region112: #{tpu_custom_call.1} parent=67 // pred_fallthru
          _
        // Predicated region
        $region113: #{tpu_custom_call.1} parent=67 // pred_check
          %p3422 = pneg %p317
        $region114: #{tpu_custom_call.1} parent=67 // pred_check_branch
          %3424 = sbr.rel (%p3422) target = $region116
        $region115: #{tpu_custom_call.1} parent=67 // pred_region
          %s3426 = ssub.s32 32, 32
          %3427 = vsyncadd [#allocation5], %s3426
          %s3429 = sshll.u32 [#allocation16], 4
          %s3430 = int_to_ptr.vmem [resolvable:$true] %s3429
          %3432 = dma.vmem_to_hbm [thread:$0]  %s3430, 32, %s12, [#allocation5]
        $region116: #{tpu_custom_call.1} parent=67 // pred_fallthru
          _
        // Predicated region
        $region117: #{tpu_custom_call.1} parent=67 // pred_check
          %p3433 = pneg %p317
        $region118: #{tpu_custom_call.1} parent=67 // pred_check_branch
          %3435 = sbr.rel (%p3433) target = $region120
        $region119: #{tpu_custom_call.1} parent=67 // pred_region
          %3436 = dma.done [#allocation5], 32
        $region120: #{tpu_custom_call.1} parent=67 // pred_fallthru
          _
      $region68: #{tpu_custom_call.1} parent=5 // pred_fallthru
        _
      %p3437 = scmp.le.s32.totalorder 2, %s22
      // Predicated region
      $region121: #{tpu_custom_call.1} parent=5 // pred_check
        %p3438 = pneg %p3437
      $region122: #{tpu_custom_call.1} parent=5 // pred_check_branch
        %3440 = sbr.rel (%p3438) target = $region124
      $region123: #{tpu_custom_call.1} parent=5 // pred_region
        %s3441 = ssub.s32 %s22, 2
      $region124: #{tpu_custom_call.1} parent=5 // pred_fallthru
        _
    $region6: #{tpu_custom_call.1} parent=1 // loop_footer
      %s26 = sadd.s32 1, %s22
    $region7: #{tpu_custom_call.1} parent=1 // loop_footer_branch
      %21 = sbr.rel target = $region3
    $region8: #{tpu_custom_call.1} parent=1 // loop_exit
      _
    %3442 = vsyncpa [#allocation4], 1
    %s3443 = scalar_lea.sflag [#allocation4], 1
    %3444 = vsyncpa %s3443, 1
    %3445 = vsyncpa [#allocation7], 1
    %3446 = vsyncpa [#allocation15], 1
    %3447 = vsyncpa [#allocation5], 1
    %s3448 = scalar_lea.sflag [#allocation5], 1
    %3449 = vsyncpa %s3448, 1

</llo_original>
